<compile_context>
chip_gen: v7x
topology: tpu7x:2x2x1
jax: 0.10.0
libtpu: 0.0.40
codegen_flags: <defaults>
</compile_context>

<pallas_src>
import functools

import numpy as np
import jax
import jax.numpy as jnp
from jax.experimental import pallas as pl
from jax.experimental.pallas import tpu as pltpu


def _conv_kernel(x_ref, w_ref, b_ref, o_ref, col_ref, *, K, stride, TR, Wo, Cin):
    """One (batch, output-row-tile) step of the direct convolution.

    x_ref  : (1, Hp, Wp, Cin)   reflection-padded (upsampled) image, one batch
    w_ref  : (Cout, K*K*Cin)    weights, minor order = (kh, kw, cin)
    b_ref  : (Cout, 1)          bias
    o_ref  : (1, Cout, TR*Wo)   flat output rows [t*TR, (t+1)*TR)
    col_ref: (TR*Wo, K*K*Cin)   VMEM scratch: im2col patch matrix
    """
    t = pl.program_id(1)
    row0 = t * (TR * stride)            # first padded-image row of this tile

    # Assemble the im2col matrix: one windowed VMEM load + store per tap.
    for kh in range(K):
        for kw in range(K):
            if stride == 1:
                tap = x_ref[0, pl.ds(row0 + kh, TR), kw:kw + Wo, :]
            else:
                tap = x_ref[0, pl.ds(row0 + kh, TR, stride=stride),
                            pl.ds(kw, Wo, stride=stride), :]
            idx = kh * K + kw
            col_ref[:, idx * Cin:(idx + 1) * Cin] = tap.reshape(TR * Wo, Cin)

    # Single MXU push: (Cout, KKC) x (TR*Wo, KKC)^T -> lane-dense (Cout, TR*Wo).
    acc = jax.lax.dot_general(
        w_ref[...], col_ref[...],
        dimension_numbers=(((1,), (1,)), ((), ())),
        preferred_element_type=jnp.float32)
    acc = acc + b_ref[...]              # bias added once on the dense accumulator
    o_ref[0] = acc.astype(o_ref.dtype)


def _tiled_bytes(shape, itemsize=4):
    """VMEM footprint of an f32 block under (8, 128) tiling."""
    if len(shape) < 2:
        return int(np.prod(shape)) * itemsize
    lead = int(np.prod(shape[:-2])) if len(shape) > 2 else 1
    sub = -(-int(shape[-2]) // 8) * 8
    lane = -(-int(shape[-1]) // 128) * 128
    return lead * sub * lane * itemsize


def _pick_row_tile(Ho, Wo, Cout, budget_bytes=2 << 20):
    """Largest divisor of Ho giving a 128-lane-aligned output block in budget."""
    for tr in range(Ho, 0, -1):
        if Ho % tr:
            continue
        if tr != Ho and (tr * Wo) % 128 != 0:
            continue
        if 2 * tr * Wo * Cout * 4 <= budget_bytes:
            return tr
    return Ho


def upsample_conv_layer(x_nchw, weight, bias, *, kernel_size, stride=1,
                        upsample=None, row_tile=None):
    """Forward pass of UpsampleConvLayer.

    x_nchw : (N, Cin, H, W)
    weight : (Cout, Cin, K, K)   (PyTorch OIHW layout)
    bias   : (Cout,)
    Returns (N, Cout, Ho, Wo) float32.
    """
    K = int(kernel_size)
    stride = int(stride)
    pad = K // 2
    N, Cin, H, W = x_nchw.shape
    Cout = weight.shape[0]
    s = int(upsample) if upsample else 1
    Hu, Wu = H * s, W * s
    Hp, Wp = Hu + 2 * pad, Wu + 2 * pad
    Ho = (Hp - K) // stride + 1
    Wo = (Wp - K) // stride + 1

    # ---- wrapper glue: fold nearest-upsample + reflection pad into ONE gather.
    # (NCHW->NHWC transpose happens on the small pre-upsample tensor only.)
    def _src_map(P, U):
        r = np.arange(P) - pad
        r = np.abs(r)                               # reflect at the low edge
        r = np.where(r >= U, 2 * (U - 1) - r, r)    # reflect at the high edge
        return (r // s).astype(np.int32)

    rmap = _src_map(Hp, Hu)
    cmap = _src_map(Wp, Wu)
    x_nhwc = jnp.transpose(x_nchw, (0, 2, 3, 1))
    x_prep = x_nhwc[:, rmap[:, None], cmap[None, :], :]        # (N, Hp, Wp, Cin)
    # TODO(synk): fold the upsample+reflect gather into the kernel's own
    # DMA/index path (manual halo DMA) so this intermediate never hits HBM.

    # ---- weights / bias in matmul-friendly layout.
    KKC = K * K * Cin
    w2d = jnp.transpose(weight, (0, 2, 3, 1)).reshape(Cout, KKC)   # (kh,kw,c) minor
    b2d = bias.reshape(Cout, 1).astype(jnp.float32)

    # ---- row tiling over the output height.
    if row_tile is None:
        row_tile = _pick_row_tile(Ho, Wo, Cout)
    TR = int(row_tile)
    assert Ho % TR == 0, "row_tile must divide the output height"
    assert (TR * Wo) % 128 == 0 or TR == Ho, \
        "row tile must give a lane-aligned (multiple-of-128) output block"
    n_row_tiles = Ho // TR

    kernel = functools.partial(_conv_kernel, K=K, stride=stride, TR=TR, Wo=Wo,
                               Cin=Cin)

    est = (2 * (_tiled_bytes((Hp, Wp, Cin)) + _tiled_bytes((Cout, TR * Wo)))
           + _tiled_bytes((TR * Wo, KKC)) + _tiled_bytes((Cout, KKC))
           + _tiled_bytes((Cout, 1)) + (8 << 20))
    vmem_limit = int(min(max(est, 32 << 20), 64 << 20))

    out_flat = pl.pallas_call(
        kernel,
        out_shape=jax.ShapeDtypeStruct((N, Cout, Ho * Wo), jnp.float32),
        grid=(N, n_row_tiles),
        in_specs=[
            pl.BlockSpec((1, Hp, Wp, Cin), lambda n, t: (n, 0, 0, 0)),
            pl.BlockSpec((Cout, KKC), lambda n, t: (0, 0)),
            pl.BlockSpec((Cout, 1), lambda n, t: (0, 0)),
        ],
        out_specs=pl.BlockSpec((1, Cout, TR * Wo), lambda n, t: (n, 0, t)),
        scratch_shapes=[pltpu.VMEM((TR * Wo, KKC), jnp.float32)],
        compiler_params=pltpu.CompilerParams(
            dimension_semantics=("parallel", "arbitrary"),
            vmem_limit_bytes=vmem_limit),
    )(x_prep, w2d, b2d)

    # Flat (N, Cout, Ho*Wo) is already channel-major: a free reshape gives NCHW.
    return out_flat.reshape(N, Cout, Ho, Wo)


def _reference(x_nchw, weight, bias, *, kernel_size, stride, upsample=None):
    """Pure-JAX reference (lax conv) for correctness checking."""
    K = kernel_size
    pad = K // 2
    x = x_nchw
    if upsample:
        s = int(upsample)
        x = jnp.repeat(jnp.repeat(x, s, axis=2), s, axis=3)
    x = jnp.pad(x, ((0, 0), (0, 0), (pad, pad), (pad, pad)), mode="reflect")
    out = jax.lax.conv_general_dilated(
        x, weight, window_strides=(stride, stride), padding="VALID",
        dimension_numbers=("NCHW", "OIHW", "NCHW"))
    return out + bias.reshape(1, -1, 1, 1)


if __name__ == "__main__":
    # module config: in_channels=4, out_channels=8, kernel_size=3, stride=1, upsample=2
    in_channels, out_channels, kernel_size, stride, upsample = 4, 8, 3, 1, 2

    key = jax.random.PRNGKey(0)
    kx, kw_key, kb = jax.random.split(key, 3)

    # input: NCHW, batch=2, channels=4, spatial=16
    x = jax.random.normal(kx, (2, in_channels, 16, 16), dtype=jnp.float32)

    # deterministic Conv2d-style init (uniform in +/- 1/sqrt(fan_in))
    fan_in = in_channels * kernel_size * kernel_size
    bound = 1.0 / (fan_in ** 0.5)
    weight = jax.random.uniform(
        kw_key, (out_channels, in_channels, kernel_size, kernel_size),
        minval=-bound, maxval=bound, dtype=jnp.float32)
    bias = jax.random.uniform(
        kb, (out_channels,), minval=-bound, maxval=bound, dtype=jnp.float32)

    # row_tile=16 -> grid (2 batches x 2 row tiles): exercises the tiled /
    # pipelined path while keeping lane-aligned (16*32 = 512) output blocks.
    out = upsample_conv_layer(x, weight, bias,
                              kernel_size=kernel_size, stride=stride,
                              upsample=upsample, row_tile=16)
    out = jax.block_until_ready(out)

    ref = _reference(x, weight, bias,
                     kernel_size=kernel_size, stride=stride, upsample=upsample)
    assert out.shape == ref.shape == (2, out_channels, 32, 32)
    assert jnp.allclose(out, ref, atol=1e-5, rtol=1e-5)

    print("KERNEL_OK")
</pallas_src>

<mosaic_0001>
module attributes {stable_mosaic.version = 11 : i64} {
  func.func @_conv_kernel(%arg0: i32, %arg1: i32, %arg2: memref<1x34x34x4xf32, #tpu.memory_space<vmem>>, %arg3: memref<8x36xf32, #tpu.memory_space<vmem>>, %arg4: memref<8x1xf32, #tpu.memory_space<vmem>>, %arg5: memref<1x8x512xf32, #tpu.memory_space<vmem>>, %arg6: memref<512x36xf32, #tpu.memory_space<vmem>>) attributes {dimension_semantics = [#tpu.dimension_semantics<parallel>, #tpu.dimension_semantics<arbitrary>], iteration_bounds = array<i64: 2, 2>, scalar_prefetch = 0 : i64, scratch_operands = 1 : i64, tpu.core_type = #tpu.core_type<tc>, window_params = [{transform_indices = @transform_0, window_bounds = array<i64: 1, 34, 34, 4>}, {pipeline_mode = #tpu.pipeline_mode<synchronous>, transform_indices = @transform_1, window_bounds = array<i64: 8, 36>}, {pipeline_mode = #tpu.pipeline_mode<synchronous>, transform_indices = @transform_2, window_bounds = array<i64: 8, 1>}, {transform_indices = @transform_3, window_bounds = array<i64: 1, 8, 512>}]} {
    %c16_i32 = arith.constant 16 : i32
    %0 = arith.muli %arg1, %c16_i32 : i32
    %c0_i32 = arith.constant 0 : i32
    %1 = arith.addi %0, %c0_i32 : i32
    %c0 = arith.constant 0 : index
    %2 = arith.index_cast %1 : i32 to index
    %c0_0 = arith.constant 0 : index
    %c0_1 = arith.constant 0 : index
    %3 = vector.load %arg2[%c0, %2, %c0_0, %c0_1] : memref<1x34x34x4xf32, #tpu.memory_space<vmem>>, vector<1x16x32x4xf32>
    %4 = vector.shape_cast %3 : vector<1x16x32x4xf32> to vector<16x32x4xf32>
    %5 = vector.shape_cast %4 : vector<16x32x4xf32> to vector<512x4xf32>
    %c0_2 = arith.constant 0 : index
    %c0_3 = arith.constant 0 : index
    %6 = vector.load %arg6[%c0_2, %c0_3] : memref<512x36xf32, #tpu.memory_space<vmem>>, vector<512x4xf32>
    tpu.vector_store %arg6[%c0_2, %c0_3], %5 {strides = array<i32>} : memref<512x36xf32, #tpu.memory_space<vmem>>, vector<512x4xf32>,
    %c0_i32_4 = arith.constant 0 : i32
    %7 = arith.addi %0, %c0_i32_4 : i32
    %c0_5 = arith.constant 0 : index
    %8 = arith.index_cast %7 : i32 to index
    %c1 = arith.constant 1 : index
    %c0_6 = arith.constant 0 : index
    %9 = vector.load %arg2[%c0_5, %8, %c1, %c0_6] : memref<1x34x34x4xf32, #tpu.memory_space<vmem>>, vector<1x16x32x4xf32>
    %10 = vector.shape_cast %9 : vector<1x16x32x4xf32> to vector<16x32x4xf32>
    %11 = vector.shape_cast %10 : vector<16x32x4xf32> to vector<512x4xf32>
    %c0_7 = arith.constant 0 : index
    %c4 = arith.constant 4 : index
    %12 = vector.load %arg6[%c0_7, %c4] : memref<512x36xf32, #tpu.memory_space<vmem>>, vector<512x4xf32>
    tpu.vector_store %arg6[%c0_7, %c4], %11 {strides = array<i32>} : memref<512x36xf32, #tpu.memory_space<vmem>>, vector<512x4xf32>,
    %c0_i32_8 = arith.constant 0 : i32
    %13 = arith.addi %0, %c0_i32_8 : i32
    %c0_9 = arith.constant 0 : index
    %14 = arith.index_cast %13 : i32 to index
    %c2 = arith.constant 2 : index
    %c0_10 = arith.constant 0 : index
    %15 = vector.load %arg2[%c0_9, %14, %c2, %c0_10] : memref<1x34x34x4xf32, #tpu.memory_space<vmem>>, vector<1x16x32x4xf32>
    %16 = vector.shape_cast %15 : vector<1x16x32x4xf32> to vector<16x32x4xf32>
    %17 = vector.shape_cast %16 : vector<16x32x4xf32> to vector<512x4xf32>
    %c0_11 = arith.constant 0 : index
    %c8 = arith.constant 8 : index
    %18 = vector.load %arg6[%c0_11, %c8] : memref<512x36xf32, #tpu.memory_space<vmem>>, vector<512x4xf32>
    tpu.vector_store %arg6[%c0_11, %c8], %17 {strides = array<i32>} : memref<512x36xf32, #tpu.memory_space<vmem>>, vector<512x4xf32>,
    %c1_i32 = arith.constant 1 : i32
    %19 = arith.addi %0, %c1_i32 : i32
    %c0_12 = arith.constant 0 : index
    %20 = arith.index_cast %19 : i32 to index
    %c0_13 = arith.constant 0 : index
    %c0_14 = arith.constant 0 : index
    %21 = vector.load %arg2[%c0_12, %20, %c0_13, %c0_14] : memref<1x34x34x4xf32, #tpu.memory_space<vmem>>, vector<1x16x32x4xf32>
    %22 = vector.shape_cast %21 : vector<1x16x32x4xf32> to vector<16x32x4xf32>
    %23 = vector.shape_cast %22 : vector<16x32x4xf32> to vector<512x4xf32>
    %c0_15 = arith.constant 0 : index
    %c12 = arith.constant 12 : index
    %24 = vector.load %arg6[%c0_15, %c12] : memref<512x36xf32, #tpu.memory_space<vmem>>, vector<512x4xf32>
    tpu.vector_store %arg6[%c0_15, %c12], %23 {strides = array<i32>} : memref<512x36xf32, #tpu.memory_space<vmem>>, vector<512x4xf32>,
    %c1_i32_16 = arith.constant 1 : i32
    %25 = arith.addi %0, %c1_i32_16 : i32
    %c0_17 = arith.constant 0 : index
    %26 = arith.index_cast %25 : i32 to index
    %c1_18 = arith.constant 1 : index
    %c0_19 = arith.constant 0 : index
    %27 = vector.load %arg2[%c0_17, %26, %c1_18, %c0_19] : memref<1x34x34x4xf32, #tpu.memory_space<vmem>>, vector<1x16x32x4xf32>
    %28 = vector.shape_cast %27 : vector<1x16x32x4xf32> to vector<16x32x4xf32>
    %29 = vector.shape_cast %28 : vector<16x32x4xf32> to vector<512x4xf32>
    %c0_20 = arith.constant 0 : index
    %c16 = arith.constant 16 : index
    %30 = vector.load %arg6[%c0_20, %c16] : memref<512x36xf32, #tpu.memory_space<vmem>>, vector<512x4xf32>
    tpu.vector_store %arg6[%c0_20, %c16], %29 {strides = array<i32>} : memref<512x36xf32, #tpu.memory_space<vmem>>, vector<512x4xf32>,
    %c1_i32_21 = arith.constant 1 : i32
    %31 = arith.addi %0, %c1_i32_21 : i32
    %c0_22 = arith.constant 0 : index
    %32 = arith.index_cast %31 : i32 to index
    %c2_23 = arith.constant 2 : index
    %c0_24 = arith.constant 0 : index
    %33 = vector.load %arg2[%c0_22, %32, %c2_23, %c0_24] : memref<1x34x34x4xf32, #tpu.memory_space<vmem>>, vector<1x16x32x4xf32>
    %34 = vector.shape_cast %33 : vector<1x16x32x4xf32> to vector<16x32x4xf32>
    %35 = vector.shape_cast %34 : vector<16x32x4xf32> to vector<512x4xf32>
    %c0_25 = arith.constant 0 : index
    %c20 = arith.constant 20 : index
    %36 = vector.load %arg6[%c0_25, %c20] : memref<512x36xf32, #tpu.memory_space<vmem>>, vector<512x4xf32>
    tpu.vector_store %arg6[%c0_25, %c20], %35 {strides = array<i32>} : memref<512x36xf32, #tpu.memory_space<vmem>>, vector<512x4xf32>,
    %c2_i32 = arith.constant 2 : i32
    %37 = arith.addi %0, %c2_i32 : i32
    %c0_26 = arith.constant 0 : index
    %38 = arith.index_cast %37 : i32 to index
    %c0_27 = arith.constant 0 : index
    %c0_28 = arith.constant 0 : index
    %39 = vector.load %arg2[%c0_26, %38, %c0_27, %c0_28] : memref<1x34x34x4xf32, #tpu.memory_space<vmem>>, vector<1x16x32x4xf32>
    %40 = vector.shape_cast %39 : vector<1x16x32x4xf32> to vector<16x32x4xf32>
    %41 = vector.shape_cast %40 : vector<16x32x4xf32> to vector<512x4xf32>
    %c0_29 = arith.constant 0 : index
    %c24 = arith.constant 24 : index
    %42 = vector.load %arg6[%c0_29, %c24] : memref<512x36xf32, #tpu.memory_space<vmem>>, vector<512x4xf32>
    tpu.vector_store %arg6[%c0_29, %c24], %41 {strides = array<i32>} : memref<512x36xf32, #tpu.memory_space<vmem>>, vector<512x4xf32>,
    %c2_i32_30 = arith.constant 2 : i32
    %43 = arith.addi %0, %c2_i32_30 : i32
    %c0_31 = arith.constant 0 : index
    %44 = arith.index_cast %43 : i32 to index
    %c1_32 = arith.constant 1 : index
    %c0_33 = arith.constant 0 : index
    %45 = vector.load %arg2[%c0_31, %44, %c1_32, %c0_33] : memref<1x34x34x4xf32, #tpu.memory_space<vmem>>, vector<1x16x32x4xf32>
    %46 = vector.shape_cast %45 : vector<1x16x32x4xf32> to vector<16x32x4xf32>
    %47 = vector.shape_cast %46 : vector<16x32x4xf32> to vector<512x4xf32>
    %c0_34 = arith.constant 0 : index
    %c28 = arith.constant 28 : index
    %48 = vector.load %arg6[%c0_34, %c28] : memref<512x36xf32, #tpu.memory_space<vmem>>, vector<512x4xf32>
    tpu.vector_store %arg6[%c0_34, %c28], %47 {strides = array<i32>} : memref<512x36xf32, #tpu.memory_space<vmem>>, vector<512x4xf32>,
    %c2_i32_35 = arith.constant 2 : i32
    %49 = arith.addi %0, %c2_i32_35 : i32
    %c0_36 = arith.constant 0 : index
    %50 = arith.index_cast %49 : i32 to index
    %c2_37 = arith.constant 2 : index
    %c0_38 = arith.constant 0 : index
    %51 = vector.load %arg2[%c0_36, %50, %c2_37, %c0_38] : memref<1x34x34x4xf32, #tpu.memory_space<vmem>>, vector<1x16x32x4xf32>
    %52 = vector.shape_cast %51 : vector<1x16x32x4xf32> to vector<16x32x4xf32>
    %53 = vector.shape_cast %52 : vector<16x32x4xf32> to vector<512x4xf32>
    %c0_39 = arith.constant 0 : index
    %c32 = arith.constant 32 : index
    %54 = vector.load %arg6[%c0_39, %c32] : memref<512x36xf32, #tpu.memory_space<vmem>>, vector<512x4xf32>
    tpu.vector_store %arg6[%c0_39, %c32], %53 {strides = array<i32>} : memref<512x36xf32, #tpu.memory_space<vmem>>, vector<512x4xf32>,
    %c0_40 = arith.constant 0 : index
    %c0_41 = arith.constant 0 : index
    %55 = vector.load %arg3[%c0_40, %c0_41] : memref<8x36xf32, #tpu.memory_space<vmem>>, vector<8x36xf32>
    %c0_42 = arith.constant 0 : index
    %c0_43 = arith.constant 0 : index
    %56 = vector.load %arg6[%c0_42, %c0_43] : memref<512x36xf32, #tpu.memory_space<vmem>>, vector<512x36xf32>
    %cst = arith.constant dense<0.000000e+00> : vector<8x512xf32>
    %57 = tpu.matmul %55, %56, %cst {dimension_numbers = #tpu.dot_dimension_numbers<[1], [1], [0], [0], [0, 0, 1, 0], [], []>} : vector<8x36xf32>, vector<512x36xf32>, vector<8x512xf32> -> vector<8x512xf32>
    %c0_44 = arith.constant 0 : index
    %c0_45 = arith.constant 0 : index
    %58 = vector.load %arg4[%c0_44, %c0_45] : memref<8x1xf32, #tpu.memory_space<vmem>>, vector<8x1xf32>
    %59 = vector.broadcast %58 : vector<8x1xf32> to vector<8x512xf32>
    %60 = arith.addf %57, %59 : vector<8x512xf32>
    %c0_46 = arith.constant 0 : index
    %c0_47 = arith.constant 0 : index
    %c0_48 = arith.constant 0 : index
    %61 = vector.load %arg5[%c0_46, %c0_47, %c0_48] : memref<1x8x512xf32, #tpu.memory_space<vmem>>, vector<1x8x512xf32>
    %62 = vector.shape_cast %61 : vector<1x8x512xf32> to vector<8x512xf32>
    %63 = vector.shape_cast %60 : vector<8x512xf32> to vector<1x8x512xf32>
    tpu.vector_store %arg5[%c0_46, %c0_47, %c0_48], %63 {strides = array<i32>} : memref<1x8x512xf32, #tpu.memory_space<vmem>>, vector<1x8x512xf32>,
    return
  }
  func.func @transform_0(%arg0: i32, %arg1: i32) -> (i32, i32, i32, i32) {
    %c0_i32 = arith.constant 0 : i32
    %c0_i32_0 = arith.constant 0 : i32
    %c0_i32_1 = arith.constant 0 : i32
    %c0_i32_2 = arith.constant 0 : i32
    return %arg0, %c0_i32, %c0_i32_0, %c0_i32_1 : i32, i32, i32, i32
  }
  func.func @transform_1(%arg0: i32, %arg1: i32) -> (i32, i32) {
    %c0_i32 = arith.constant 0 : i32
    %c0_i32_0 = arith.constant 0 : i32
    %c0_i32_1 = arith.constant 0 : i32
    return %c0_i32, %c0_i32_0 : i32, i32
  }
  func.func @transform_2(%arg0: i32, %arg1: i32) -> (i32, i32) {
    %c0_i32 = arith.constant 0 : i32
    %c0_i32_0 = arith.constant 0 : i32
    %c0_i32_1 = arith.constant 0 : i32
    return %c0_i32, %c0_i32_0 : i32, i32
  }
  func.func @transform_3(%arg0: i32, %arg1: i32) -> (i32, i32, i32) {
    %c0_i32 = arith.constant 0 : i32
    %c0_i32_0 = arith.constant 0 : i32
    return %arg0, %c0_i32, %arg1 : i32, i32, i32
  }
}

</mosaic_0001>

<llo_original>
// kernel: tpu_custom_call.1
$region0: #{tpu_custom_call.1}
  #allocation0 [shape = 'u32[]', space=smem, size = 0x4, offset = 0x4, fixed_abs, tag = 'smem constant byte address 0x4 - core index']
  #allocation1 [shape = 'u32[144,128]{1,0:T(1,128)}', space=vmem, size = 0x12000, scoped, tag = 'internal scratch']
  #allocation2 [shape = 'f32[512,36]{1,0:T(8,128)}', space=vmem, size = 0x40000, scoped, tag = 'scratch operand']
  %s0 = inlined_call_operand.vmem [shape: f32[2,34,34,4], index: 0, kind: input, shape index: {}]
  %s1 = inlined_call_operand.vmem [shape: f32[8,36], index: 1, kind: input, shape index: {}]
  %s2 = inlined_call_operand.vmem [shape: f32[8,1], index: 2, kind: input, shape index: {}]
  %s3 = inlined_call_operand.hbm [shape: f32[2,8,1024], index: 3, kind: output, shape index: {}]
  %s4 = sld [smem:[#allocation0]]
  $region45: #{tpu_custom_call.1} parent=0
    _
  %s6 = ssub.s32 1, %s4
  %s7 = scalar_select 0, %s6, %s4
  $region1: #{tpu_custom_call.1} parent=0
    #allocation3 [shape = 'u8[32768]{0}', space=vmem, size = 0x8000, scoped, tag = 'output window, operand 0']
    #allocation4 [shape = 's32[2]{0}', space=sflag, size = 0x8, scoped, tag = 'scoped memory for tpu_custom_call.1']
    %8 = vsyncpa [#allocation4], 0
    %s9 = scalar_lea.sflag [#allocation4], 1
    %10 = vsyncpa %s9, 0
    loop: start=0, step=1, limit=6
    $region2: #{tpu_custom_call.1} parent=1 // loop_pre_header
      _
    $region3: #{tpu_custom_call.1} parent=1 // loop_header
      %s12 = sphi 0, %s16
      %p13 = scmp.ge.s32.totalorder %s12, 6
      %s19 = sphi 0, %s31
      %s20 = sphi 0, %s27
      %s21 = sphi 0, %s19
      %s22 = sphi 0, %s20
      %s23 = sphi 0, %s21
      %s24 = sphi 0, %s22
      %s34 = sphi 0, %s36
      %s37 = sphi 0, %s34
      %s38 = sphi 0, %s37
      %s54 = sphi 0, %s38
      %s58 = sphi 0, %s58
      %s60 = sphi 0, %s58
      %s61 = sphi 0, %s60
      %s75 = sphi 0, %s61
      %s79 = sphi 0, %s79
      %s81 = sphi 0, %s79
      %s82 = sphi 0, %s81
      %s96 = sphi 0, %s82
      %s104 = sphi 0, %s106
      %s107 = sphi 0, %s104
      %s108 = sphi 0, %s107
      %s124 = sphi 0, %s108
    $region4: #{tpu_custom_call.1} parent=1 // loop_header_branch
      %15 = sbr.rel (%p13) target = $region8
    $region5: #{tpu_custom_call.1} parent=1 // loop_body
      %s17 = ssub.s32 %s12, 1
      %s18 = ssub.s32 %s12, 2
      %s25 = sadd.s32 1, %s20
      %p26 = scmp.ge.s32.totalorder %s25, 2
      %s27 = scalar_select %p26, 0, %s25
      %s28 = sadd.s32 1, %s19
      %s29 = scalar_select %p26, %s28, %s19
      %p30 = scmp.ge.s32.totalorder %s29, 2
      %s31 = scalar_select %p30, 0, %s29
      %s32 = ssub.s32 %s19, %s31
      %p33 = scmp.eq.s32.totalorder %s32, 0
      %s35 = sadd.s32 %s34, 1
      %s36 = scalar_select %p33, %s34, %s35
      %p39 = pneg %p33
      %p40 = scmp.eq.s32.totalorder %s12, 3
      %p41 = por %p39, %p40
      %p42 = scmp.ne.s32.totalorder %s34, %s37
      %p43 = scmp.eq.s32.totalorder %s12, 0
      %p44 = por %p42, %p43
      %p45 = scmp.ne.s32.totalorder %s34, %s37
      %p46 = scmp.eq.s32.totalorder %s17, 3
      %p47 = por %p45, %p46
      %p48 = scmp.ne.s32.totalorder %s37, %s38
      %p49 = scmp.eq.s32.totalorder %s17, 0
      %p50 = por %p48, %p49
      %p51 = scmp.ne.s32.totalorder %s37, %s38
      %p52 = scmp.eq.s32.totalorder %s18, 3
      %p53 = por %p51, %p52
      %p55 = scmp.ne.s32.totalorder %s38, %s54
      %p56 = scmp.eq.s32.totalorder %s18, 0
      %p57 = por %p55, %p56
      %s59 = sadd.s32 %s58, 1
      %p62 = scmp.eq.s32.totalorder %s12, 3
      %p63 = scmp.ne.s32.totalorder %s58, %s60
      %p64 = scmp.eq.s32.totalorder %s12, 0
      %p65 = por %p63, %p64
      %p66 = scmp.ne.s32.totalorder %s58, %s60
      %p67 = scmp.eq.s32.totalorder %s17, 3
      %p68 = por %p66, %p67
      %p69 = scmp.ne.s32.totalorder %s60, %s61
      %p70 = scmp.eq.s32.totalorder %s17, 0
      %p71 = por %p69, %p70
      %p72 = scmp.ne.s32.totalorder %s60, %s61
      %p73 = scmp.eq.s32.totalorder %s18, 3
      %p74 = por %p72, %p73
      %p76 = scmp.ne.s32.totalorder %s61, %s75
      %p77 = scmp.eq.s32.totalorder %s18, 0
      %p78 = por %p76, %p77
      %s80 = sadd.s32 %s79, 1
      %p83 = scmp.eq.s32.totalorder %s12, 3
      %p84 = scmp.ne.s32.totalorder %s79, %s81
      %p85 = scmp.eq.s32.totalorder %s12, 0
      %p86 = por %p84, %p85
      %p87 = scmp.ne.s32.totalorder %s79, %s81
      %p88 = scmp.eq.s32.totalorder %s17, 3
      %p89 = por %p87, %p88
      %p90 = scmp.ne.s32.totalorder %s81, %s82
      %p91 = scmp.eq.s32.totalorder %s17, 0
      %p92 = por %p90, %p91
      %p93 = scmp.ne.s32.totalorder %s81, %s82
      %p94 = scmp.eq.s32.totalorder %s18, 3
      %p95 = por %p93, %p94
      %p97 = scmp.ne.s32.totalorder %s82, %s96
      %p98 = scmp.eq.s32.totalorder %s18, 0
      %p99 = por %p97, %p98
      %s100 = ssub.s32 %s19, %s31
      %s101 = ssub.s32 %s20, %s27
      %s102 = sor.u32 %s100, %s101
      %p103 = scmp.eq.s32.totalorder %s102, 0
      %s105 = sadd.s32 %s104, 1
      %s106 = scalar_select %p103, %s104, %s105
      %p109 = pneg %p103
      %p110 = scmp.eq.s32.totalorder %s12, 3
      %p111 = por %p109, %p110
      %p112 = scmp.ne.s32.totalorder %s104, %s107
      %p113 = scmp.eq.s32.totalorder %s12, 0
      %p114 = por %p112, %p113
      %p115 = scmp.ne.s32.totalorder %s104, %s107
      %p116 = scmp.eq.s32.totalorder %s17, 3
      %p117 = por %p115, %p116
      %p118 = scmp.ne.s32.totalorder %s107, %s108
      %p119 = scmp.eq.s32.totalorder %s17, 0
      %p120 = por %p118, %p119
      %p121 = scmp.ne.s32.totalorder %s107, %s108
      %p122 = scmp.eq.s32.totalorder %s18, 3
      %p123 = por %p121, %p122
      %p125 = scmp.ne.s32.totalorder %s108, %s124
      %p126 = scmp.eq.s32.totalorder %s18, 0
      %p127 = por %p125, %p126
      %p128 = scmp.le.s32.totalorder 1, %s12
      %p129 = scmp.lt.s32.totalorder %s12, 5
      %p130 = pnand %p128, %p129
      %p131 = pneg %p130
      // Predicated region
      $region9: #{tpu_custom_call.1} parent=5 // pred_check
        _
      $region10: #{tpu_custom_call.1} parent=5 // pred_check_branch
        %133 = sbr.rel (%p130) target = $region12
      $region11: #{tpu_custom_call.1} parent=5 // pred_region
        %s134 = ssub.s32 %s12, 1
        // Predicated region
        $region13: #{tpu_custom_call.1} parent=11 // pred_check
          %p135 = pneg %p71
        $region14: #{tpu_custom_call.1} parent=11 // pred_check_branch
          %137 = sbr.rel (%p135) target = $region16
        $region15: #{tpu_custom_call.1} parent=11 // pred_region
          _
        $region16: #{tpu_custom_call.1} parent=11 // pred_fallthru
          _
        // Predicated region
        $region17: #{tpu_custom_call.1} parent=11 // pred_check
          %p138 = pneg %p92
        $region18: #{tpu_custom_call.1} parent=11 // pred_check_branch
          %140 = sbr.rel (%p138) target = $region20
        $region19: #{tpu_custom_call.1} parent=11 // pred_region
          _
        $region20: #{tpu_custom_call.1} parent=11 // pred_fallthru
          _
      $region12: #{tpu_custom_call.1} parent=5 // pred_fallthru
        _
      %p141 = scmp.lt.s32.totalorder %s12, 4
      // Predicated region
      $region21: #{tpu_custom_call.1} parent=5 // pred_check
        %p142 = pneg %p141
      $region22: #{tpu_custom_call.1} parent=5 // pred_check_branch
        %144 = sbr.rel (%p142) target = $region24
      $region23: #{tpu_custom_call.1} parent=5 // pred_region
        // Predicated region
        $region25: #{tpu_custom_call.1} parent=23 // pred_check
          %p145 = pneg %p44
        $region26: #{tpu_custom_call.1} parent=23 // pred_check_branch
          %147 = sbr.rel (%p145) target = $region28
        $region27: #{tpu_custom_call.1} parent=23 // pred_region
          %p148 = scmp.lt.s32.totalorder %s19, 1
          %s149 = scalar_select %p148, %s19, 1
          %s150 = smul.addr %s149, 170
          %s151 = smul.addr %s150, 8
          %s152 = scalar_lea.vmem %s0, %s151
        $region28: #{tpu_custom_call.1} parent=23 // pred_fallthru
          _
      $region24: #{tpu_custom_call.1} parent=5 // pred_fallthru
        _
      %p153 = scmp.le.s32.totalorder 1, %s12
      %p154 = scmp.lt.s32.totalorder %s12, 5
      %p155 = pnand %p153, %p154
      %p156 = pneg %p155
      // Predicated region
      $region29: #{tpu_custom_call.1} parent=5 // pred_check
        _
      $region30: #{tpu_custom_call.1} parent=5 // pred_check_branch
        %158 = sbr.rel (%p155) target = $region32
      $region31: #{tpu_custom_call.1} parent=5 // pred_region
        %s159 = ssub.s32 %s12, 1
        %p160 = scmp.lt.s32.totalorder %s21, 1
        %s161 = scalar_select %p160, %s21, 1
        %s162 = smul.addr %s161, 170
        %s163 = smul.addr %s162, 8
        %s164 = scalar_lea.vmem %s0, %s163
        %p165 = pneg %p50
        %p166 = pneg %p47
        %p167 = pneg %p71
        %p168 = pneg %p68
        %p169 = pneg %p92
        %p170 = pneg %p89
        %p171 = pneg %p120
        %p172 = pneg %p117
        %s173 = sand.u32 %s107, 1
        %s174 = scalar_lea.sflag [#allocation4], %s173
        %s175 = sand.u32 %s107, 1
        %s176 = smul.addr %s175, 32
        %s177 = scalar_lea.vmem [#allocation3], %s176
        %p178 = scmp.lt.s32.totalorder %s21, 1
        %s179 = scalar_select %p178, %s21, 1
        %s180 = smul.addr %s179, 170
        %s181 = smul.addr %s180, 8
        %s182 = scalar_lea.vmem %s0, %s181
        %s183 = smul.u32 4, %s22
        %s184 = smul.u32 %s22, 16
        %s185 = smul.u32 %s184, 40
        %s186 = scalar_lea.vmem %s182, %s185
        %v187 = vld [vmem:[%s186] sm:$0xff]
        %v188 = vld [vmem:[%s186 + $0x8] sm:$0xff]
        %v189 = vld [vmem:[%s186 + $0x10] sm:$0xff]
        %v190 = vld [vmem:[%s186 + $0x18] sm:$0xff]
        %v191 = vld [vmem:[%s186 + $0x28] sm:$0xff]
        %v192 = vld [vmem:[%s186 + $0x30] sm:$0xff]
        %v193 = vld [vmem:[%s186 + $0x38] sm:$0xff]
        %v194 = vld [vmem:[%s186 + $0x40] sm:$0xff]
        %v195 = vld [vmem:[%s186 + $0x50] sm:$0xff]
        %v196 = vld [vmem:[%s186 + $0x58] sm:$0xff]
        %v197 = vld [vmem:[%s186 + $0x60] sm:$0xff]
        %v198 = vld [vmem:[%s186 + $0x68] sm:$0xff]
        %v199 = vld [vmem:[%s186 + $0x78] sm:$0xff]
        %v200 = vld [vmem:[%s186 + $0x80] sm:$0xff]
        %v201 = vld [vmem:[%s186 + $0x88] sm:$0xff]
        %v202 = vld [vmem:[%s186 + $0x90] sm:$0xff]
        %v203 = vld [vmem:[%s186 + $0xa0] sm:$0xff]
        %v204 = vld [vmem:[%s186 + $0xa8] sm:$0xff]
        %v205 = vld [vmem:[%s186 + $0xb0] sm:$0xff]
        %v206 = vld [vmem:[%s186 + $0xb8] sm:$0xff]
        %v207 = vld [vmem:[%s186 + $0xc8] sm:$0xff]
        %v208 = vld [vmem:[%s186 + $0xd0] sm:$0xff]
        %v209 = vld [vmem:[%s186 + $0xd8] sm:$0xff]
        %v210 = vld [vmem:[%s186 + $0xe0] sm:$0xff]
        %v211 = vld [vmem:[%s186 + $0xf0] sm:$0xff]
        %v212 = vld [vmem:[%s186 + $0xf8] sm:$0xff]
        %v213 = vld [vmem:[%s186 + $0x100] sm:$0xff]
        %v214 = vld [vmem:[%s186 + $0x108] sm:$0xff]
        %v215 = vld [vmem:[%s186 + $0x118] sm:$0xff]
        %v216 = vld [vmem:[%s186 + $0x120] sm:$0xff]
        %v217 = vld [vmem:[%s186 + $0x128] sm:$0xff]
        %v218 = vld [vmem:[%s186 + $0x130] sm:$0xff]
        %v219 = vld [vmem:[%s186 + $0x140] sm:$0xff]
        %v220 = vld [vmem:[%s186 + $0x148] sm:$0xff]
        %v221 = vld [vmem:[%s186 + $0x150] sm:$0xff]
        %v222 = vld [vmem:[%s186 + $0x158] sm:$0xff]
        %v223 = vld [vmem:[%s186 + $0x168] sm:$0xff]
        %v224 = vld [vmem:[%s186 + $0x170] sm:$0xff]
        %v225 = vld [vmem:[%s186 + $0x178] sm:$0xff]
        %v226 = vld [vmem:[%s186 + $0x180] sm:$0xff]
        %v227 = vld [vmem:[%s186 + $0x190] sm:$0xff]
        %v228 = vld [vmem:[%s186 + $0x198] sm:$0xff]
        %v229 = vld [vmem:[%s186 + $0x1a0] sm:$0xff]
        %v230 = vld [vmem:[%s186 + $0x1a8] sm:$0xff]
        %v231 = vld [vmem:[%s186 + $0x1b8] sm:$0xff]
        %v232 = vld [vmem:[%s186 + $0x1c0] sm:$0xff]
        %v233 = vld [vmem:[%s186 + $0x1c8] sm:$0xff]
        %v234 = vld [vmem:[%s186 + $0x1d0] sm:$0xff]
        %v235 = vld [vmem:[%s186 + $0x1e0] sm:$0xff]
        %v236 = vld [vmem:[%s186 + $0x1e8] sm:$0xff]
        %v237 = vld [vmem:[%s186 + $0x1f0] sm:$0xff]
        %v238 = vld [vmem:[%s186 + $0x1f8] sm:$0xff]
        %v239 = vld [vmem:[%s186 + $0x208] sm:$0xff]
        %v240 = vld [vmem:[%s186 + $0x210] sm:$0xff]
        %v241 = vld [vmem:[%s186 + $0x218] sm:$0xff]
        %v242 = vld [vmem:[%s186 + $0x220] sm:$0xff]
        %v243 = vld [vmem:[%s186 + $0x230] sm:$0xff]
        %v244 = vld [vmem:[%s186 + $0x238] sm:$0xff]
        %v245 = vld [vmem:[%s186 + $0x240] sm:$0xff]
        %v246 = vld [vmem:[%s186 + $0x248] sm:$0xff]
        %v247 = vld [vmem:[%s186 + $0x258] sm:$0xff]
        %v248 = vld [vmem:[%s186 + $0x260] sm:$0xff]
        %v249 = vld [vmem:[%s186 + $0x268] sm:$0xff]
        %v250 = vld [vmem:[%s186 + $0x270] sm:$0xff]
        %vm251 = vcmask 31744
        %252 = vst.msk [vmem:[#allocation2] sm:$0xff] %vm251, %v187
        %253 = vst.msk [vmem:[#allocation2 + $0x8] sm:$0xff] %vm251, %v188
        %254 = vst.msk [vmem:[#allocation2 + $0x10] sm:$0xff] %vm251, %v189
        %255 = vst.msk [vmem:[#allocation2 + $0x18] sm:$0xff] %vm251, %v190
        %256 = vst.msk [vmem:[#allocation2 + $0x20] sm:$0xff] %vm251, %v191
        %257 = vst.msk [vmem:[#allocation2 + $0x28] sm:$0xff] %vm251, %v192
        %258 = vst.msk [vmem:[#allocation2 + $0x30] sm:$0xff] %vm251, %v193
        %259 = vst.msk [vmem:[#allocation2 + $0x38] sm:$0xff] %vm251, %v194
        %260 = vst.msk [vmem:[#allocation2 + $0x40] sm:$0xff] %vm251, %v195
        %261 = vst.msk [vmem:[#allocation2 + $0x48] sm:$0xff] %vm251, %v196
        %262 = vst.msk [vmem:[#allocation2 + $0x50] sm:$0xff] %vm251, %v197
        %263 = vst.msk [vmem:[#allocation2 + $0x58] sm:$0xff] %vm251, %v198
        %264 = vst.msk [vmem:[#allocation2 + $0x60] sm:$0xff] %vm251, %v199
        %265 = vst.msk [vmem:[#allocation2 + $0x68] sm:$0xff] %vm251, %v200
        %266 = vst.msk [vmem:[#allocation2 + $0x70] sm:$0xff] %vm251, %v201
        %267 = vst.msk [vmem:[#allocation2 + $0x78] sm:$0xff] %vm251, %v202
        %268 = vst.msk [vmem:[#allocation2 + $0x80] sm:$0xff] %vm251, %v203
        %269 = vst.msk [vmem:[#allocation2 + $0x88] sm:$0xff] %vm251, %v204
        %270 = vst.msk [vmem:[#allocation2 + $0x90] sm:$0xff] %vm251, %v205
        %271 = vst.msk [vmem:[#allocation2 + $0x98] sm:$0xff] %vm251, %v206
        %272 = vst.msk [vmem:[#allocation2 + $0xa0] sm:$0xff] %vm251, %v207
        %273 = vst.msk [vmem:[#allocation2 + $0xa8] sm:$0xff] %vm251, %v208
        %274 = vst.msk [vmem:[#allocation2 + $0xb0] sm:$0xff] %vm251, %v209
        %275 = vst.msk [vmem:[#allocation2 + $0xb8] sm:$0xff] %vm251, %v210
        %276 = vst.msk [vmem:[#allocation2 + $0xc0] sm:$0xff] %vm251, %v211
        %277 = vst.msk [vmem:[#allocation2 + $0xc8] sm:$0xff] %vm251, %v212
        %278 = vst.msk [vmem:[#allocation2 + $0xd0] sm:$0xff] %vm251, %v213
        %279 = vst.msk [vmem:[#allocation2 + $0xd8] sm:$0xff] %vm251, %v214
        %280 = vst.msk [vmem:[#allocation2 + $0xe0] sm:$0xff] %vm251, %v215
        %281 = vst.msk [vmem:[#allocation2 + $0xe8] sm:$0xff] %vm251, %v216
        %282 = vst.msk [vmem:[#allocation2 + $0xf0] sm:$0xff] %vm251, %v217
        %283 = vst.msk [vmem:[#allocation2 + $0xf8] sm:$0xff] %vm251, %v218
        %284 = vst.msk [vmem:[#allocation2 + $0x100] sm:$0xff] %vm251, %v219
        %285 = vst.msk [vmem:[#allocation2 + $0x108] sm:$0xff] %vm251, %v220
        %286 = vst.msk [vmem:[#allocation2 + $0x110] sm:$0xff] %vm251, %v221
        %287 = vst.msk [vmem:[#allocation2 + $0x118] sm:$0xff] %vm251, %v222
        %288 = vst.msk [vmem:[#allocation2 + $0x120] sm:$0xff] %vm251, %v223
        %289 = vst.msk [vmem:[#allocation2 + $0x128] sm:$0xff] %vm251, %v224
        %290 = vst.msk [vmem:[#allocation2 + $0x130] sm:$0xff] %vm251, %v225
        %291 = vst.msk [vmem:[#allocation2 + $0x138] sm:$0xff] %vm251, %v226
        %292 = vst.msk [vmem:[#allocation2 + $0x140] sm:$0xff] %vm251, %v227
        %293 = vst.msk [vmem:[#allocation2 + $0x148] sm:$0xff] %vm251, %v228
        %294 = vst.msk [vmem:[#allocation2 + $0x150] sm:$0xff] %vm251, %v229
        %295 = vst.msk [vmem:[#allocation2 + $0x158] sm:$0xff] %vm251, %v230
        %296 = vst.msk [vmem:[#allocation2 + $0x160] sm:$0xff] %vm251, %v231
        %297 = vst.msk [vmem:[#allocation2 + $0x168] sm:$0xff] %vm251, %v232
        %298 = vst.msk [vmem:[#allocation2 + $0x170] sm:$0xff] %vm251, %v233
        %299 = vst.msk [vmem:[#allocation2 + $0x178] sm:$0xff] %vm251, %v234
        %300 = vst.msk [vmem:[#allocation2 + $0x180] sm:$0xff] %vm251, %v235
        %301 = vst.msk [vmem:[#allocation2 + $0x188] sm:$0xff] %vm251, %v236
        %302 = vst.msk [vmem:[#allocation2 + $0x190] sm:$0xff] %vm251, %v237
        %303 = vst.msk [vmem:[#allocation2 + $0x198] sm:$0xff] %vm251, %v238
        %304 = vst.msk [vmem:[#allocation2 + $0x1a0] sm:$0xff] %vm251, %v239
        %305 = vst.msk [vmem:[#allocation2 + $0x1a8] sm:$0xff] %vm251, %v240
        %306 = vst.msk [vmem:[#allocation2 + $0x1b0] sm:$0xff] %vm251, %v241
        %307 = vst.msk [vmem:[#allocation2 + $0x1b8] sm:$0xff] %vm251, %v242
        %308 = vst.msk [vmem:[#allocation2 + $0x1c0] sm:$0xff] %vm251, %v243
        %309 = vst.msk [vmem:[#allocation2 + $0x1c8] sm:$0xff] %vm251, %v244
        %310 = vst.msk [vmem:[#allocation2 + $0x1d0] sm:$0xff] %vm251, %v245
        %311 = vst.msk [vmem:[#allocation2 + $0x1d8] sm:$0xff] %vm251, %v246
        %312 = vst.msk [vmem:[#allocation2 + $0x1e0] sm:$0xff] %vm251, %v247
        %313 = vst.msk [vmem:[#allocation2 + $0x1e8] sm:$0xff] %vm251, %v248
        %314 = vst.msk [vmem:[#allocation2 + $0x1f0] sm:$0xff] %vm251, %v249
        %315 = vst.msk [vmem:[#allocation2 + $0x1f8] sm:$0xff] %vm251, %v250
        %v316 = vld [vmem:[%s186 + $0x1] sm:$0xff]
        %v317 = vld [vmem:[%s186 + $0x9] sm:$0xff]
        %v318 = vld [vmem:[%s186 + $0x11] sm:$0xff]
        %v319 = vld [vmem:[%s186 + $0x19] sm:$0xff]
        %v320 = vld [vmem:[%s186 + $0x29] sm:$0xff]
        %v321 = vld [vmem:[%s186 + $0x31] sm:$0xff]
        %v322 = vld [vmem:[%s186 + $0x39] sm:$0xff]
        %v323 = vld [vmem:[%s186 + $0x41] sm:$0xff]
        %v324 = vld [vmem:[%s186 + $0x51] sm:$0xff]
        %v325 = vld [vmem:[%s186 + $0x59] sm:$0xff]
        %v326 = vld [vmem:[%s186 + $0x61] sm:$0xff]
        %v327 = vld [vmem:[%s186 + $0x69] sm:$0xff]
        %v328 = vld [vmem:[%s186 + $0x79] sm:$0xff]
        %v329 = vld [vmem:[%s186 + $0x81] sm:$0xff]
        %v330 = vld [vmem:[%s186 + $0x89] sm:$0xff]
        %v331 = vld [vmem:[%s186 + $0x91] sm:$0xff]
        %v332 = vld [vmem:[%s186 + $0xa1] sm:$0xff]
        %v333 = vld [vmem:[%s186 + $0xa9] sm:$0xff]
        %v334 = vld [vmem:[%s186 + $0xb1] sm:$0xff]
        %v335 = vld [vmem:[%s186 + $0xb9] sm:$0xff]
        %v336 = vld [vmem:[%s186 + $0xc9] sm:$0xff]
        %v337 = vld [vmem:[%s186 + $0xd1] sm:$0xff]
        %v338 = vld [vmem:[%s186 + $0xd9] sm:$0xff]
        %v339 = vld [vmem:[%s186 + $0xe1] sm:$0xff]
        %v340 = vld [vmem:[%s186 + $0xf1] sm:$0xff]
        %v341 = vld [vmem:[%s186 + $0xf9] sm:$0xff]
        %v342 = vld [vmem:[%s186 + $0x101] sm:$0xff]
        %v343 = vld [vmem:[%s186 + $0x109] sm:$0xff]
        %v344 = vld [vmem:[%s186 + $0x119] sm:$0xff]
        %v345 = vld [vmem:[%s186 + $0x121] sm:$0xff]
        %v346 = vld [vmem:[%s186 + $0x129] sm:$0xff]
        %v347 = vld [vmem:[%s186 + $0x131] sm:$0xff]
        %v348 = vld [vmem:[%s186 + $0x141] sm:$0xff]
        %v349 = vld [vmem:[%s186 + $0x149] sm:$0xff]
        %v350 = vld [vmem:[%s186 + $0x151] sm:$0xff]
        %v351 = vld [vmem:[%s186 + $0x159] sm:$0xff]
        %v352 = vld [vmem:[%s186 + $0x169] sm:$0xff]
        %v353 = vld [vmem:[%s186 + $0x171] sm:$0xff]
        %v354 = vld [vmem:[%s186 + $0x179] sm:$0xff]
        %v355 = vld [vmem:[%s186 + $0x181] sm:$0xff]
        %v356 = vld [vmem:[%s186 + $0x191] sm:$0xff]
        %v357 = vld [vmem:[%s186 + $0x199] sm:$0xff]
        %v358 = vld [vmem:[%s186 + $0x1a1] sm:$0xff]
        %v359 = vld [vmem:[%s186 + $0x1a9] sm:$0xff]
        %v360 = vld [vmem:[%s186 + $0x1b9] sm:$0xff]
        %v361 = vld [vmem:[%s186 + $0x1c1] sm:$0xff]
        %v362 = vld [vmem:[%s186 + $0x1c9] sm:$0xff]
        %v363 = vld [vmem:[%s186 + $0x1d1] sm:$0xff]
        %v364 = vld [vmem:[%s186 + $0x1e1] sm:$0xff]
        %v365 = vld [vmem:[%s186 + $0x1e9] sm:$0xff]
        %v366 = vld [vmem:[%s186 + $0x1f1] sm:$0xff]
        %v367 = vld [vmem:[%s186 + $0x1f9] sm:$0xff]
        %v368 = vld [vmem:[%s186 + $0x209] sm:$0xff]
        %v369 = vld [vmem:[%s186 + $0x211] sm:$0xff]
        %v370 = vld [vmem:[%s186 + $0x219] sm:$0xff]
        %v371 = vld [vmem:[%s186 + $0x221] sm:$0xff]
        %v372 = vld [vmem:[%s186 + $0x231] sm:$0xff]
        %v373 = vld [vmem:[%s186 + $0x239] sm:$0xff]
        %v374 = vld [vmem:[%s186 + $0x241] sm:$0xff]
        %v375 = vld [vmem:[%s186 + $0x249] sm:$0xff]
        %v376 = vld [vmem:[%s186 + $0x259] sm:$0xff]
        %v377 = vld [vmem:[%s186 + $0x261] sm:$0xff]
        %v378 = vld [vmem:[%s186 + $0x269] sm:$0xff]
        %v379 = vld [vmem:[%s186 + $0x271] sm:$0xff]
        %444 = vrot.lane.b32.xlu0 %v316, 4
        %v445 = vpop.permute.xlu0 %444
        %446 = vrot.lane.b32.xlu0 %v317, 4
        %v447 = vpop.permute.xlu0 %446
        %448 = vrot.lane.b32.xlu0 %v318, 4
        %v449 = vpop.permute.xlu0 %448
        %450 = vrot.lane.b32.xlu0 %v319, 4
        %v451 = vpop.permute.xlu0 %450
        %452 = vrot.lane.b32.xlu0 %v320, 4
        %v453 = vpop.permute.xlu0 %452
        %454 = vrot.lane.b32.xlu0 %v321, 4
        %v455 = vpop.permute.xlu0 %454
        %456 = vrot.lane.b32.xlu0 %v322, 4
        %v457 = vpop.permute.xlu0 %456
        %458 = vrot.lane.b32.xlu0 %v323, 4
        %v459 = vpop.permute.xlu0 %458
        %460 = vrot.lane.b32.xlu0 %v324, 4
        %v461 = vpop.permute.xlu0 %460
        %462 = vrot.lane.b32.xlu0 %v325, 4
        %v463 = vpop.permute.xlu0 %462
        %464 = vrot.lane.b32.xlu0 %v326, 4
        %v465 = vpop.permute.xlu0 %464
        %466 = vrot.lane.b32.xlu0 %v327, 4
        %v467 = vpop.permute.xlu0 %466
        %468 = vrot.lane.b32.xlu0 %v328, 4
        %v469 = vpop.permute.xlu0 %468
        %470 = vrot.lane.b32.xlu0 %v329, 4
        %v471 = vpop.permute.xlu0 %470
        %472 = vrot.lane.b32.xlu0 %v330, 4
        %v473 = vpop.permute.xlu0 %472
        %474 = vrot.lane.b32.xlu0 %v331, 4
        %v475 = vpop.permute.xlu0 %474
        %476 = vrot.lane.b32.xlu0 %v332, 4
        %v477 = vpop.permute.xlu0 %476
        %478 = vrot.lane.b32.xlu0 %v333, 4
        %v479 = vpop.permute.xlu0 %478
        %480 = vrot.lane.b32.xlu0 %v334, 4
        %v481 = vpop.permute.xlu0 %480
        %482 = vrot.lane.b32.xlu0 %v335, 4
        %v483 = vpop.permute.xlu0 %482
        %484 = vrot.lane.b32.xlu0 %v336, 4
        %v485 = vpop.permute.xlu0 %484
        %486 = vrot.lane.b32.xlu0 %v337, 4
        %v487 = vpop.permute.xlu0 %486
        %488 = vrot.lane.b32.xlu0 %v338, 4
        %v489 = vpop.permute.xlu0 %488
        %490 = vrot.lane.b32.xlu0 %v339, 4
        %v491 = vpop.permute.xlu0 %490
        %492 = vrot.lane.b32.xlu0 %v340, 4
        %v493 = vpop.permute.xlu0 %492
        %494 = vrot.lane.b32.xlu0 %v341, 4
        %v495 = vpop.permute.xlu0 %494
        %496 = vrot.lane.b32.xlu0 %v342, 4
        %v497 = vpop.permute.xlu0 %496
        %498 = vrot.lane.b32.xlu0 %v343, 4
        %v499 = vpop.permute.xlu0 %498
        %500 = vrot.lane.b32.xlu0 %v344, 4
        %v501 = vpop.permute.xlu0 %500
        %502 = vrot.lane.b32.xlu0 %v345, 4
        %v503 = vpop.permute.xlu0 %502
        %504 = vrot.lane.b32.xlu0 %v346, 4
        %v505 = vpop.permute.xlu0 %504
        %506 = vrot.lane.b32.xlu0 %v347, 4
        %v507 = vpop.permute.xlu0 %506
        %508 = vrot.lane.b32.xlu0 %v348, 4
        %v509 = vpop.permute.xlu0 %508
        %510 = vrot.lane.b32.xlu0 %v349, 4
        %v511 = vpop.permute.xlu0 %510
        %512 = vrot.lane.b32.xlu0 %v350, 4
        %v513 = vpop.permute.xlu0 %512
        %514 = vrot.lane.b32.xlu0 %v351, 4
        %v515 = vpop.permute.xlu0 %514
        %516 = vrot.lane.b32.xlu0 %v352, 4
        %v517 = vpop.permute.xlu0 %516
        %518 = vrot.lane.b32.xlu0 %v353, 4
        %v519 = vpop.permute.xlu0 %518
        %520 = vrot.lane.b32.xlu0 %v354, 4
        %v521 = vpop.permute.xlu0 %520
        %522 = vrot.lane.b32.xlu0 %v355, 4
        %v523 = vpop.permute.xlu0 %522
        %524 = vrot.lane.b32.xlu0 %v356, 4
        %v525 = vpop.permute.xlu0 %524
        %526 = vrot.lane.b32.xlu0 %v357, 4
        %v527 = vpop.permute.xlu0 %526
        %528 = vrot.lane.b32.xlu0 %v358, 4
        %v529 = vpop.permute.xlu0 %528
        %530 = vrot.lane.b32.xlu0 %v359, 4
        %v531 = vpop.permute.xlu0 %530
        %532 = vrot.lane.b32.xlu0 %v360, 4
        %v533 = vpop.permute.xlu0 %532
        %534 = vrot.lane.b32.xlu0 %v361, 4
        %v535 = vpop.permute.xlu0 %534
        %536 = vrot.lane.b32.xlu0 %v362, 4
        %v537 = vpop.permute.xlu0 %536
        %538 = vrot.lane.b32.xlu0 %v363, 4
        %v539 = vpop.permute.xlu0 %538
        %540 = vrot.lane.b32.xlu0 %v364, 4
        %v541 = vpop.permute.xlu0 %540
        %542 = vrot.lane.b32.xlu0 %v365, 4
        %v543 = vpop.permute.xlu0 %542
        %544 = vrot.lane.b32.xlu0 %v366, 4
        %v545 = vpop.permute.xlu0 %544
        %546 = vrot.lane.b32.xlu0 %v367, 4
        %v547 = vpop.permute.xlu0 %546
        %548 = vrot.lane.b32.xlu0 %v368, 4
        %v549 = vpop.permute.xlu0 %548
        %550 = vrot.lane.b32.xlu0 %v369, 4
        %v551 = vpop.permute.xlu0 %550
        %552 = vrot.lane.b32.xlu0 %v370, 4
        %v553 = vpop.permute.xlu0 %552
        %554 = vrot.lane.b32.xlu0 %v371, 4
        %v555 = vpop.permute.xlu0 %554
        %556 = vrot.lane.b32.xlu0 %v372, 4
        %v557 = vpop.permute.xlu0 %556
        %558 = vrot.lane.b32.xlu0 %v373, 4
        %v559 = vpop.permute.xlu0 %558
        %560 = vrot.lane.b32.xlu0 %v374, 4
        %v561 = vpop.permute.xlu0 %560
        %562 = vrot.lane.b32.xlu0 %v375, 4
        %v563 = vpop.permute.xlu0 %562
        %564 = vrot.lane.b32.xlu0 %v376, 4
        %v565 = vpop.permute.xlu0 %564
        %566 = vrot.lane.b32.xlu0 %v377, 4
        %v567 = vpop.permute.xlu0 %566
        %568 = vrot.lane.b32.xlu0 %v378, 4
        %v569 = vpop.permute.xlu0 %568
        %570 = vrot.lane.b32.xlu0 %v379, 4
        %v571 = vpop.permute.xlu0 %570
        %vm636 = vcmask 64544
        %637 = vst.msk [vmem:[#allocation2] sm:$0xff] %vm636, %v445
        %638 = vst.msk [vmem:[#allocation2 + $0x8] sm:$0xff] %vm636, %v447
        %639 = vst.msk [vmem:[#allocation2 + $0x10] sm:$0xff] %vm636, %v449
        %640 = vst.msk [vmem:[#allocation2 + $0x18] sm:$0xff] %vm636, %v451
        %641 = vst.msk [vmem:[#allocation2 + $0x20] sm:$0xff] %vm636, %v453
        %642 = vst.msk [vmem:[#allocation2 + $0x28] sm:$0xff] %vm636, %v455
        %643 = vst.msk [vmem:[#allocation2 + $0x30] sm:$0xff] %vm636, %v457
        %644 = vst.msk [vmem:[#allocation2 + $0x38] sm:$0xff] %vm636, %v459
        %645 = vst.msk [vmem:[#allocation2 + $0x40] sm:$0xff] %vm636, %v461
        %646 = vst.msk [vmem:[#allocation2 + $0x48] sm:$0xff] %vm636, %v463
        %647 = vst.msk [vmem:[#allocation2 + $0x50] sm:$0xff] %vm636, %v465
        %648 = vst.msk [vmem:[#allocation2 + $0x58] sm:$0xff] %vm636, %v467
        %649 = vst.msk [vmem:[#allocation2 + $0x60] sm:$0xff] %vm636, %v469
        %650 = vst.msk [vmem:[#allocation2 + $0x68] sm:$0xff] %vm636, %v471
        %651 = vst.msk [vmem:[#allocation2 + $0x70] sm:$0xff] %vm636, %v473
        %652 = vst.msk [vmem:[#allocation2 + $0x78] sm:$0xff] %vm636, %v475
        %653 = vst.msk [vmem:[#allocation2 + $0x80] sm:$0xff] %vm636, %v477
        %654 = vst.msk [vmem:[#allocation2 + $0x88] sm:$0xff] %vm636, %v479
        %655 = vst.msk [vmem:[#allocation2 + $0x90] sm:$0xff] %vm636, %v481
        %656 = vst.msk [vmem:[#allocation2 + $0x98] sm:$0xff] %vm636, %v483
        %657 = vst.msk [vmem:[#allocation2 + $0xa0] sm:$0xff] %vm636, %v485
        %658 = vst.msk [vmem:[#allocation2 + $0xa8] sm:$0xff] %vm636, %v487
        %659 = vst.msk [vmem:[#allocation2 + $0xb0] sm:$0xff] %vm636, %v489
        %660 = vst.msk [vmem:[#allocation2 + $0xb8] sm:$0xff] %vm636, %v491
        %661 = vst.msk [vmem:[#allocation2 + $0xc0] sm:$0xff] %vm636, %v493
        %662 = vst.msk [vmem:[#allocation2 + $0xc8] sm:$0xff] %vm636, %v495
        %663 = vst.msk [vmem:[#allocation2 + $0xd0] sm:$0xff] %vm636, %v497
        %664 = vst.msk [vmem:[#allocation2 + $0xd8] sm:$0xff] %vm636, %v499
        %665 = vst.msk [vmem:[#allocation2 + $0xe0] sm:$0xff] %vm636, %v501
        %666 = vst.msk [vmem:[#allocation2 + $0xe8] sm:$0xff] %vm636, %v503
        %667 = vst.msk [vmem:[#allocation2 + $0xf0] sm:$0xff] %vm636, %v505
        %668 = vst.msk [vmem:[#allocation2 + $0xf8] sm:$0xff] %vm636, %v507
        %669 = vst.msk [vmem:[#allocation2 + $0x100] sm:$0xff] %vm636, %v509
        %670 = vst.msk [vmem:[#allocation2 + $0x108] sm:$0xff] %vm636, %v511
        %671 = vst.msk [vmem:[#allocation2 + $0x110] sm:$0xff] %vm636, %v513
        %672 = vst.msk [vmem:[#allocation2 + $0x118] sm:$0xff] %vm636, %v515
        %673 = vst.msk [vmem:[#allocation2 + $0x120] sm:$0xff] %vm636, %v517
        %674 = vst.msk [vmem:[#allocation2 + $0x128] sm:$0xff] %vm636, %v519
        %675 = vst.msk [vmem:[#allocation2 + $0x130] sm:$0xff] %vm636, %v521
        %676 = vst.msk [vmem:[#allocation2 + $0x138] sm:$0xff] %vm636, %v523
        %677 = vst.msk [vmem:[#allocation2 + $0x140] sm:$0xff] %vm636, %v525
        %678 = vst.msk [vmem:[#allocation2 + $0x148] sm:$0xff] %vm636, %v527
        %679 = vst.msk [vmem:[#allocation2 + $0x150] sm:$0xff] %vm636, %v529
        %680 = vst.msk [vmem:[#allocation2 + $0x158] sm:$0xff] %vm636, %v531
        %681 = vst.msk [vmem:[#allocation2 + $0x160] sm:$0xff] %vm636, %v533
        %682 = vst.msk [vmem:[#allocation2 + $0x168] sm:$0xff] %vm636, %v535
        %683 = vst.msk [vmem:[#allocation2 + $0x170] sm:$0xff] %vm636, %v537
        %684 = vst.msk [vmem:[#allocation2 + $0x178] sm:$0xff] %vm636, %v539
        %685 = vst.msk [vmem:[#allocation2 + $0x180] sm:$0xff] %vm636, %v541
        %686 = vst.msk [vmem:[#allocation2 + $0x188] sm:$0xff] %vm636, %v543
        %687 = vst.msk [vmem:[#allocation2 + $0x190] sm:$0xff] %vm636, %v545
        %688 = vst.msk [vmem:[#allocation2 + $0x198] sm:$0xff] %vm636, %v547
        %689 = vst.msk [vmem:[#allocation2 + $0x1a0] sm:$0xff] %vm636, %v549
        %690 = vst.msk [vmem:[#allocation2 + $0x1a8] sm:$0xff] %vm636, %v551
        %691 = vst.msk [vmem:[#allocation2 + $0x1b0] sm:$0xff] %vm636, %v553
        %692 = vst.msk [vmem:[#allocation2 + $0x1b8] sm:$0xff] %vm636, %v555
        %693 = vst.msk [vmem:[#allocation2 + $0x1c0] sm:$0xff] %vm636, %v557
        %694 = vst.msk [vmem:[#allocation2 + $0x1c8] sm:$0xff] %vm636, %v559
        %695 = vst.msk [vmem:[#allocation2 + $0x1d0] sm:$0xff] %vm636, %v561
        %696 = vst.msk [vmem:[#allocation2 + $0x1d8] sm:$0xff] %vm636, %v563
        %697 = vst.msk [vmem:[#allocation2 + $0x1e0] sm:$0xff] %vm636, %v565
        %698 = vst.msk [vmem:[#allocation2 + $0x1e8] sm:$0xff] %vm636, %v567
        %699 = vst.msk [vmem:[#allocation2 + $0x1f0] sm:$0xff] %vm636, %v569
        %700 = vst.msk [vmem:[#allocation2 + $0x1f8] sm:$0xff] %vm636, %v571
        %v701 = vld [vmem:[%s186 + $0x2] sm:$0xff]
        %v702 = vld [vmem:[%s186 + $0xa] sm:$0xff]
        %v703 = vld [vmem:[%s186 + $0x12] sm:$0xff]
        %v704 = vld [vmem:[%s186 + $0x1a] sm:$0xff]
        %v705 = vld [vmem:[%s186 + $0x2a] sm:$0xff]
        %v706 = vld [vmem:[%s186 + $0x32] sm:$0xff]
        %v707 = vld [vmem:[%s186 + $0x3a] sm:$0xff]
        %v708 = vld [vmem:[%s186 + $0x42] sm:$0xff]
        %v709 = vld [vmem:[%s186 + $0x52] sm:$0xff]
        %v710 = vld [vmem:[%s186 + $0x5a] sm:$0xff]
        %v711 = vld [vmem:[%s186 + $0x62] sm:$0xff]
        %v712 = vld [vmem:[%s186 + $0x6a] sm:$0xff]
        %v713 = vld [vmem:[%s186 + $0x7a] sm:$0xff]
        %v714 = vld [vmem:[%s186 + $0x82] sm:$0xff]
        %v715 = vld [vmem:[%s186 + $0x8a] sm:$0xff]
        %v716 = vld [vmem:[%s186 + $0x92] sm:$0xff]
        %v717 = vld [vmem:[%s186 + $0xa2] sm:$0xff]
        %v718 = vld [vmem:[%s186 + $0xaa] sm:$0xff]
        %v719 = vld [vmem:[%s186 + $0xb2] sm:$0xff]
        %v720 = vld [vmem:[%s186 + $0xba] sm:$0xff]
        %v721 = vld [vmem:[%s186 + $0xca] sm:$0xff]
        %v722 = vld [vmem:[%s186 + $0xd2] sm:$0xff]
        %v723 = vld [vmem:[%s186 + $0xda] sm:$0xff]
        %v724 = vld [vmem:[%s186 + $0xe2] sm:$0xff]
        %v725 = vld [vmem:[%s186 + $0xf2] sm:$0xff]
        %v726 = vld [vmem:[%s186 + $0xfa] sm:$0xff]
        %v727 = vld [vmem:[%s186 + $0x102] sm:$0xff]
        %v728 = vld [vmem:[%s186 + $0x10a] sm:$0xff]
        %v729 = vld [vmem:[%s186 + $0x11a] sm:$0xff]
        %v730 = vld [vmem:[%s186 + $0x122] sm:$0xff]
        %v731 = vld [vmem:[%s186 + $0x12a] sm:$0xff]
        %v732 = vld [vmem:[%s186 + $0x132] sm:$0xff]
        %v733 = vld [vmem:[%s186 + $0x142] sm:$0xff]
        %v734 = vld [vmem:[%s186 + $0x14a] sm:$0xff]
        %v735 = vld [vmem:[%s186 + $0x152] sm:$0xff]
        %v736 = vld [vmem:[%s186 + $0x15a] sm:$0xff]
        %v737 = vld [vmem:[%s186 + $0x16a] sm:$0xff]
        %v738 = vld [vmem:[%s186 + $0x172] sm:$0xff]
        %v739 = vld [vmem:[%s186 + $0x17a] sm:$0xff]
        %v740 = vld [vmem:[%s186 + $0x182] sm:$0xff]
        %v741 = vld [vmem:[%s186 + $0x192] sm:$0xff]
        %v742 = vld [vmem:[%s186 + $0x19a] sm:$0xff]
        %v743 = vld [vmem:[%s186 + $0x1a2] sm:$0xff]
        %v744 = vld [vmem:[%s186 + $0x1aa] sm:$0xff]
        %v745 = vld [vmem:[%s186 + $0x1ba] sm:$0xff]
        %v746 = vld [vmem:[%s186 + $0x1c2] sm:$0xff]
        %v747 = vld [vmem:[%s186 + $0x1ca] sm:$0xff]
        %v748 = vld [vmem:[%s186 + $0x1d2] sm:$0xff]
        %v749 = vld [vmem:[%s186 + $0x1e2] sm:$0xff]
        %v750 = vld [vmem:[%s186 + $0x1ea] sm:$0xff]
        %v751 = vld [vmem:[%s186 + $0x1f2] sm:$0xff]
        %v752 = vld [vmem:[%s186 + $0x1fa] sm:$0xff]
        %v753 = vld [vmem:[%s186 + $0x20a] sm:$0xff]
        %v754 = vld [vmem:[%s186 + $0x212] sm:$0xff]
        %v755 = vld [vmem:[%s186 + $0x21a] sm:$0xff]
        %v756 = vld [vmem:[%s186 + $0x222] sm:$0xff]
        %v757 = vld [vmem:[%s186 + $0x232] sm:$0xff]
        %v758 = vld [vmem:[%s186 + $0x23a] sm:$0xff]
        %v759 = vld [vmem:[%s186 + $0x242] sm:$0xff]
        %v760 = vld [vmem:[%s186 + $0x24a] sm:$0xff]
        %v761 = vld [vmem:[%s186 + $0x25a] sm:$0xff]
        %v762 = vld [vmem:[%s186 + $0x262] sm:$0xff]
        %v763 = vld [vmem:[%s186 + $0x26a] sm:$0xff]
        %v764 = vld [vmem:[%s186 + $0x272] sm:$0xff]
        %829 = vrot.lane.b32.xlu0 %v701, 8
        %v830 = vpop.permute.xlu0 %829
        %831 = vrot.lane.b32.xlu0 %v702, 8
        %v832 = vpop.permute.xlu0 %831
        %833 = vrot.lane.b32.xlu0 %v703, 8
        %v834 = vpop.permute.xlu0 %833
        %835 = vrot.lane.b32.xlu0 %v704, 8
        %v836 = vpop.permute.xlu0 %835
        %837 = vrot.lane.b32.xlu0 %v705, 8
        %v838 = vpop.permute.xlu0 %837
        %839 = vrot.lane.b32.xlu0 %v706, 8
        %v840 = vpop.permute.xlu0 %839
        %841 = vrot.lane.b32.xlu0 %v707, 8
        %v842 = vpop.permute.xlu0 %841
        %843 = vrot.lane.b32.xlu0 %v708, 8
        %v844 = vpop.permute.xlu0 %843
        %845 = vrot.lane.b32.xlu0 %v709, 8
        %v846 = vpop.permute.xlu0 %845
        %847 = vrot.lane.b32.xlu0 %v710, 8
        %v848 = vpop.permute.xlu0 %847
        %849 = vrot.lane.b32.xlu0 %v711, 8
        %v850 = vpop.permute.xlu0 %849
        %851 = vrot.lane.b32.xlu0 %v712, 8
        %v852 = vpop.permute.xlu0 %851
        %853 = vrot.lane.b32.xlu0 %v713, 8
        %v854 = vpop.permute.xlu0 %853
        %855 = vrot.lane.b32.xlu0 %v714, 8
        %v856 = vpop.permute.xlu0 %855
        %857 = vrot.lane.b32.xlu0 %v715, 8
        %v858 = vpop.permute.xlu0 %857
        %859 = vrot.lane.b32.xlu0 %v716, 8
        %v860 = vpop.permute.xlu0 %859
        %861 = vrot.lane.b32.xlu0 %v717, 8
        %v862 = vpop.permute.xlu0 %861
        %863 = vrot.lane.b32.xlu0 %v718, 8
        %v864 = vpop.permute.xlu0 %863
        %865 = vrot.lane.b32.xlu0 %v719, 8
        %v866 = vpop.permute.xlu0 %865
        %867 = vrot.lane.b32.xlu0 %v720, 8
        %v868 = vpop.permute.xlu0 %867
        %869 = vrot.lane.b32.xlu0 %v721, 8
        %v870 = vpop.permute.xlu0 %869
        %871 = vrot.lane.b32.xlu0 %v722, 8
        %v872 = vpop.permute.xlu0 %871
        %873 = vrot.lane.b32.xlu0 %v723, 8
        %v874 = vpop.permute.xlu0 %873
        %875 = vrot.lane.b32.xlu0 %v724, 8
        %v876 = vpop.permute.xlu0 %875
        %877 = vrot.lane.b32.xlu0 %v725, 8
        %v878 = vpop.permute.xlu0 %877
        %879 = vrot.lane.b32.xlu0 %v726, 8
        %v880 = vpop.permute.xlu0 %879
        %881 = vrot.lane.b32.xlu0 %v727, 8
        %v882 = vpop.permute.xlu0 %881
        %883 = vrot.lane.b32.xlu0 %v728, 8
        %v884 = vpop.permute.xlu0 %883
        %885 = vrot.lane.b32.xlu0 %v729, 8
        %v886 = vpop.permute.xlu0 %885
        %887 = vrot.lane.b32.xlu0 %v730, 8
        %v888 = vpop.permute.xlu0 %887
        %889 = vrot.lane.b32.xlu0 %v731, 8
        %v890 = vpop.permute.xlu0 %889
        %891 = vrot.lane.b32.xlu0 %v732, 8
        %v892 = vpop.permute.xlu0 %891
        %893 = vrot.lane.b32.xlu0 %v733, 8
        %v894 = vpop.permute.xlu0 %893
        %895 = vrot.lane.b32.xlu0 %v734, 8
        %v896 = vpop.permute.xlu0 %895
        %897 = vrot.lane.b32.xlu0 %v735, 8
        %v898 = vpop.permute.xlu0 %897
        %899 = vrot.lane.b32.xlu0 %v736, 8
        %v900 = vpop.permute.xlu0 %899
        %901 = vrot.lane.b32.xlu0 %v737, 8
        %v902 = vpop.permute.xlu0 %901
        %903 = vrot.lane.b32.xlu0 %v738, 8
        %v904 = vpop.permute.xlu0 %903
        %905 = vrot.lane.b32.xlu0 %v739, 8
        %v906 = vpop.permute.xlu0 %905
        %907 = vrot.lane.b32.xlu0 %v740, 8
        %v908 = vpop.permute.xlu0 %907
        %909 = vrot.lane.b32.xlu0 %v741, 8
        %v910 = vpop.permute.xlu0 %909
        %911 = vrot.lane.b32.xlu0 %v742, 8
        %v912 = vpop.permute.xlu0 %911
        %913 = vrot.lane.b32.xlu0 %v743, 8
        %v914 = vpop.permute.xlu0 %913
        %915 = vrot.lane.b32.xlu0 %v744, 8
        %v916 = vpop.permute.xlu0 %915
        %917 = vrot.lane.b32.xlu0 %v745, 8
        %v918 = vpop.permute.xlu0 %917
        %919 = vrot.lane.b32.xlu0 %v746, 8
        %v920 = vpop.permute.xlu0 %919
        %921 = vrot.lane.b32.xlu0 %v747, 8
        %v922 = vpop.permute.xlu0 %921
        %923 = vrot.lane.b32.xlu0 %v748, 8
        %v924 = vpop.permute.xlu0 %923
        %925 = vrot.lane.b32.xlu0 %v749, 8
        %v926 = vpop.permute.xlu0 %925
        %927 = vrot.lane.b32.xlu0 %v750, 8
        %v928 = vpop.permute.xlu0 %927
        %929 = vrot.lane.b32.xlu0 %v751, 8
        %v930 = vpop.permute.xlu0 %929
        %931 = vrot.lane.b32.xlu0 %v752, 8
        %v932 = vpop.permute.xlu0 %931
        %933 = vrot.lane.b32.xlu0 %v753, 8
        %v934 = vpop.permute.xlu0 %933
        %935 = vrot.lane.b32.xlu0 %v754, 8
        %v936 = vpop.permute.xlu0 %935
        %937 = vrot.lane.b32.xlu0 %v755, 8
        %v938 = vpop.permute.xlu0 %937
        %939 = vrot.lane.b32.xlu0 %v756, 8
        %v940 = vpop.permute.xlu0 %939
        %941 = vrot.lane.b32.xlu0 %v757, 8
        %v942 = vpop.permute.xlu0 %941
        %943 = vrot.lane.b32.xlu0 %v758, 8
        %v944 = vpop.permute.xlu0 %943
        %945 = vrot.lane.b32.xlu0 %v759, 8
        %v946 = vpop.permute.xlu0 %945
        %947 = vrot.lane.b32.xlu0 %v760, 8
        %v948 = vpop.permute.xlu0 %947
        %949 = vrot.lane.b32.xlu0 %v761, 8
        %v950 = vpop.permute.xlu0 %949
        %951 = vrot.lane.b32.xlu0 %v762, 8
        %v952 = vpop.permute.xlu0 %951
        %953 = vrot.lane.b32.xlu0 %v763, 8
        %v954 = vpop.permute.xlu0 %953
        %955 = vrot.lane.b32.xlu0 %v764, 8
        %v956 = vpop.permute.xlu0 %955
        %vm1021 = vcmask 97344
        %1022 = vst.msk [vmem:[#allocation2] sm:$0xff] %vm1021, %v830
        %1023 = vst.msk [vmem:[#allocation2 + $0x8] sm:$0xff] %vm1021, %v832
        %1024 = vst.msk [vmem:[#allocation2 + $0x10] sm:$0xff] %vm1021, %v834
        %1025 = vst.msk [vmem:[#allocation2 + $0x18] sm:$0xff] %vm1021, %v836
        %1026 = vst.msk [vmem:[#allocation2 + $0x20] sm:$0xff] %vm1021, %v838
        %1027 = vst.msk [vmem:[#allocation2 + $0x28] sm:$0xff] %vm1021, %v840
        %1028 = vst.msk [vmem:[#allocation2 + $0x30] sm:$0xff] %vm1021, %v842
        %1029 = vst.msk [vmem:[#allocation2 + $0x38] sm:$0xff] %vm1021, %v844
        %1030 = vst.msk [vmem:[#allocation2 + $0x40] sm:$0xff] %vm1021, %v846
        %1031 = vst.msk [vmem:[#allocation2 + $0x48] sm:$0xff] %vm1021, %v848
        %1032 = vst.msk [vmem:[#allocation2 + $0x50] sm:$0xff] %vm1021, %v850
        %1033 = vst.msk [vmem:[#allocation2 + $0x58] sm:$0xff] %vm1021, %v852
        %1034 = vst.msk [vmem:[#allocation2 + $0x60] sm:$0xff] %vm1021, %v854
        %1035 = vst.msk [vmem:[#allocation2 + $0x68] sm:$0xff] %vm1021, %v856
        %1036 = vst.msk [vmem:[#allocation2 + $0x70] sm:$0xff] %vm1021, %v858
        %1037 = vst.msk [vmem:[#allocation2 + $0x78] sm:$0xff] %vm1021, %v860
        %1038 = vst.msk [vmem:[#allocation2 + $0x80] sm:$0xff] %vm1021, %v862
        %1039 = vst.msk [vmem:[#allocation2 + $0x88] sm:$0xff] %vm1021, %v864
        %1040 = vst.msk [vmem:[#allocation2 + $0x90] sm:$0xff] %vm1021, %v866
        %1041 = vst.msk [vmem:[#allocation2 + $0x98] sm:$0xff] %vm1021, %v868
        %1042 = vst.msk [vmem:[#allocation2 + $0xa0] sm:$0xff] %vm1021, %v870
        %1043 = vst.msk [vmem:[#allocation2 + $0xa8] sm:$0xff] %vm1021, %v872
        %1044 = vst.msk [vmem:[#allocation2 + $0xb0] sm:$0xff] %vm1021, %v874
        %1045 = vst.msk [vmem:[#allocation2 + $0xb8] sm:$0xff] %vm1021, %v876
        %1046 = vst.msk [vmem:[#allocation2 + $0xc0] sm:$0xff] %vm1021, %v878
        %1047 = vst.msk [vmem:[#allocation2 + $0xc8] sm:$0xff] %vm1021, %v880
        %1048 = vst.msk [vmem:[#allocation2 + $0xd0] sm:$0xff] %vm1021, %v882
        %1049 = vst.msk [vmem:[#allocation2 + $0xd8] sm:$0xff] %vm1021, %v884
        %1050 = vst.msk [vmem:[#allocation2 + $0xe0] sm:$0xff] %vm1021, %v886
        %1051 = vst.msk [vmem:[#allocation2 + $0xe8] sm:$0xff] %vm1021, %v888
        %1052 = vst.msk [vmem:[#allocation2 + $0xf0] sm:$0xff] %vm1021, %v890
        %1053 = vst.msk [vmem:[#allocation2 + $0xf8] sm:$0xff] %vm1021, %v892
        %1054 = vst.msk [vmem:[#allocation2 + $0x100] sm:$0xff] %vm1021, %v894
        %1055 = vst.msk [vmem:[#allocation2 + $0x108] sm:$0xff] %vm1021, %v896
        %1056 = vst.msk [vmem:[#allocation2 + $0x110] sm:$0xff] %vm1021, %v898
        %1057 = vst.msk [vmem:[#allocation2 + $0x118] sm:$0xff] %vm1021, %v900
        %1058 = vst.msk [vmem:[#allocation2 + $0x120] sm:$0xff] %vm1021, %v902
        %1059 = vst.msk [vmem:[#allocation2 + $0x128] sm:$0xff] %vm1021, %v904
        %1060 = vst.msk [vmem:[#allocation2 + $0x130] sm:$0xff] %vm1021, %v906
        %1061 = vst.msk [vmem:[#allocation2 + $0x138] sm:$0xff] %vm1021, %v908
        %1062 = vst.msk [vmem:[#allocation2 + $0x140] sm:$0xff] %vm1021, %v910
        %1063 = vst.msk [vmem:[#allocation2 + $0x148] sm:$0xff] %vm1021, %v912
        %1064 = vst.msk [vmem:[#allocation2 + $0x150] sm:$0xff] %vm1021, %v914
        %1065 = vst.msk [vmem:[#allocation2 + $0x158] sm:$0xff] %vm1021, %v916
        %1066 = vst.msk [vmem:[#allocation2 + $0x160] sm:$0xff] %vm1021, %v918
        %1067 = vst.msk [vmem:[#allocation2 + $0x168] sm:$0xff] %vm1021, %v920
        %1068 = vst.msk [vmem:[#allocation2 + $0x170] sm:$0xff] %vm1021, %v922
        %1069 = vst.msk [vmem:[#allocation2 + $0x178] sm:$0xff] %vm1021, %v924
        %1070 = vst.msk [vmem:[#allocation2 + $0x180] sm:$0xff] %vm1021, %v926
        %1071 = vst.msk [vmem:[#allocation2 + $0x188] sm:$0xff] %vm1021, %v928
        %1072 = vst.msk [vmem:[#allocation2 + $0x190] sm:$0xff] %vm1021, %v930
        %1073 = vst.msk [vmem:[#allocation2 + $0x198] sm:$0xff] %vm1021, %v932
        %1074 = vst.msk [vmem:[#allocation2 + $0x1a0] sm:$0xff] %vm1021, %v934
        %1075 = vst.msk [vmem:[#allocation2 + $0x1a8] sm:$0xff] %vm1021, %v936
        %1076 = vst.msk [vmem:[#allocation2 + $0x1b0] sm:$0xff] %vm1021, %v938
        %1077 = vst.msk [vmem:[#allocation2 + $0x1b8] sm:$0xff] %vm1021, %v940
        %1078 = vst.msk [vmem:[#allocation2 + $0x1c0] sm:$0xff] %vm1021, %v942
        %1079 = vst.msk [vmem:[#allocation2 + $0x1c8] sm:$0xff] %vm1021, %v944
        %1080 = vst.msk [vmem:[#allocation2 + $0x1d0] sm:$0xff] %vm1021, %v946
        %1081 = vst.msk [vmem:[#allocation2 + $0x1d8] sm:$0xff] %vm1021, %v948
        %1082 = vst.msk [vmem:[#allocation2 + $0x1e0] sm:$0xff] %vm1021, %v950
        %1083 = vst.msk [vmem:[#allocation2 + $0x1e8] sm:$0xff] %vm1021, %v952
        %1084 = vst.msk [vmem:[#allocation2 + $0x1f0] sm:$0xff] %vm1021, %v954
        %1085 = vst.msk [vmem:[#allocation2 + $0x1f8] sm:$0xff] %vm1021, %v956
        %s1086 = sadd.s32 %s184, 1
        %s1087 = smul.u32 %s1086, 40
        %s1088 = scalar_lea.vmem %s182, %s1087
        %v1089 = vld [vmem:[%s1088] sm:$0xff]
        %v1090 = vld [vmem:[%s1088 + $0x8] sm:$0xff]
        %v1091 = vld [vmem:[%s1088 + $0x10] sm:$0xff]
        %v1092 = vld [vmem:[%s1088 + $0x18] sm:$0xff]
        %v1093 = vld [vmem:[%s1088 + $0x28] sm:$0xff]
        %v1094 = vld [vmem:[%s1088 + $0x30] sm:$0xff]
        %v1095 = vld [vmem:[%s1088 + $0x38] sm:$0xff]
        %v1096 = vld [vmem:[%s1088 + $0x40] sm:$0xff]
        %v1097 = vld [vmem:[%s1088 + $0x50] sm:$0xff]
        %v1098 = vld [vmem:[%s1088 + $0x58] sm:$0xff]
        %v1099 = vld [vmem:[%s1088 + $0x60] sm:$0xff]
        %v1100 = vld [vmem:[%s1088 + $0x68] sm:$0xff]
        %v1101 = vld [vmem:[%s1088 + $0x78] sm:$0xff]
        %v1102 = vld [vmem:[%s1088 + $0x80] sm:$0xff]
        %v1103 = vld [vmem:[%s1088 + $0x88] sm:$0xff]
        %v1104 = vld [vmem:[%s1088 + $0x90] sm:$0xff]
        %v1105 = vld [vmem:[%s1088 + $0xa0] sm:$0xff]
        %v1106 = vld [vmem:[%s1088 + $0xa8] sm:$0xff]
        %v1107 = vld [vmem:[%s1088 + $0xb0] sm:$0xff]
        %v1108 = vld [vmem:[%s1088 + $0xb8] sm:$0xff]
        %v1109 = vld [vmem:[%s1088 + $0xc8] sm:$0xff]
        %v1110 = vld [vmem:[%s1088 + $0xd0] sm:$0xff]
        %v1111 = vld [vmem:[%s1088 + $0xd8] sm:$0xff]
        %v1112 = vld [vmem:[%s1088 + $0xe0] sm:$0xff]
        %v1113 = vld [vmem:[%s1088 + $0xf0] sm:$0xff]
        %v1114 = vld [vmem:[%s1088 + $0xf8] sm:$0xff]
        %v1115 = vld [vmem:[%s1088 + $0x100] sm:$0xff]
        %v1116 = vld [vmem:[%s1088 + $0x108] sm:$0xff]
        %v1117 = vld [vmem:[%s1088 + $0x118] sm:$0xff]
        %v1118 = vld [vmem:[%s1088 + $0x120] sm:$0xff]
        %v1119 = vld [vmem:[%s1088 + $0x128] sm:$0xff]
        %v1120 = vld [vmem:[%s1088 + $0x130] sm:$0xff]
        %v1121 = vld [vmem:[%s1088 + $0x140] sm:$0xff]
        %v1122 = vld [vmem:[%s1088 + $0x148] sm:$0xff]
        %v1123 = vld [vmem:[%s1088 + $0x150] sm:$0xff]
        %v1124 = vld [vmem:[%s1088 + $0x158] sm:$0xff]
        %v1125 = vld [vmem:[%s1088 + $0x168] sm:$0xff]
        %v1126 = vld [vmem:[%s1088 + $0x170] sm:$0xff]
        %v1127 = vld [vmem:[%s1088 + $0x178] sm:$0xff]
        %v1128 = vld [vmem:[%s1088 + $0x180] sm:$0xff]
        %v1129 = vld [vmem:[%s1088 + $0x190] sm:$0xff]
        %v1130 = vld [vmem:[%s1088 + $0x198] sm:$0xff]
        %v1131 = vld [vmem:[%s1088 + $0x1a0] sm:$0xff]
        %v1132 = vld [vmem:[%s1088 + $0x1a8] sm:$0xff]
        %v1133 = vld [vmem:[%s1088 + $0x1b8] sm:$0xff]
        %v1134 = vld [vmem:[%s1088 + $0x1c0] sm:$0xff]
        %v1135 = vld [vmem:[%s1088 + $0x1c8] sm:$0xff]
        %v1136 = vld [vmem:[%s1088 + $0x1d0] sm:$0xff]
        %v1137 = vld [vmem:[%s1088 + $0x1e0] sm:$0xff]
        %v1138 = vld [vmem:[%s1088 + $0x1e8] sm:$0xff]
        %v1139 = vld [vmem:[%s1088 + $0x1f0] sm:$0xff]
        %v1140 = vld [vmem:[%s1088 + $0x1f8] sm:$0xff]
        %v1141 = vld [vmem:[%s1088 + $0x208] sm:$0xff]
        %v1142 = vld [vmem:[%s1088 + $0x210] sm:$0xff]
        %v1143 = vld [vmem:[%s1088 + $0x218] sm:$0xff]
        %v1144 = vld [vmem:[%s1088 + $0x220] sm:$0xff]
        %v1145 = vld [vmem:[%s1088 + $0x230] sm:$0xff]
        %v1146 = vld [vmem:[%s1088 + $0x238] sm:$0xff]
        %v1147 = vld [vmem:[%s1088 + $0x240] sm:$0xff]
        %v1148 = vld [vmem:[%s1088 + $0x248] sm:$0xff]
        %v1149 = vld [vmem:[%s1088 + $0x258] sm:$0xff]
        %v1150 = vld [vmem:[%s1088 + $0x260] sm:$0xff]
        %v1151 = vld [vmem:[%s1088 + $0x268] sm:$0xff]
        %v1152 = vld [vmem:[%s1088 + $0x270] sm:$0xff]
        %1217 = vrot.lane.b32.xlu0 %v1089, 12
        %v1218 = vpop.permute.xlu0 %1217
        %1219 = vrot.lane.b32.xlu0 %v1090, 12
        %v1220 = vpop.permute.xlu0 %1219
        %1221 = vrot.lane.b32.xlu0 %v1091, 12
        %v1222 = vpop.permute.xlu0 %1221
        %1223 = vrot.lane.b32.xlu0 %v1092, 12
        %v1224 = vpop.permute.xlu0 %1223
        %1225 = vrot.lane.b32.xlu0 %v1093, 12
        %v1226 = vpop.permute.xlu0 %1225
        %1227 = vrot.lane.b32.xlu0 %v1094, 12
        %v1228 = vpop.permute.xlu0 %1227
        %1229 = vrot.lane.b32.xlu0 %v1095, 12
        %v1230 = vpop.permute.xlu0 %1229
        %1231 = vrot.lane.b32.xlu0 %v1096, 12
        %v1232 = vpop.permute.xlu0 %1231
        %1233 = vrot.lane.b32.xlu0 %v1097, 12
        %v1234 = vpop.permute.xlu0 %1233
        %1235 = vrot.lane.b32.xlu0 %v1098, 12
        %v1236 = vpop.permute.xlu0 %1235
        %1237 = vrot.lane.b32.xlu0 %v1099, 12
        %v1238 = vpop.permute.xlu0 %1237
        %1239 = vrot.lane.b32.xlu0 %v1100, 12
        %v1240 = vpop.permute.xlu0 %1239
        %1241 = vrot.lane.b32.xlu0 %v1101, 12
        %v1242 = vpop.permute.xlu0 %1241
        %1243 = vrot.lane.b32.xlu0 %v1102, 12
        %v1244 = vpop.permute.xlu0 %1243
        %1245 = vrot.lane.b32.xlu0 %v1103, 12
        %v1246 = vpop.permute.xlu0 %1245
        %1247 = vrot.lane.b32.xlu0 %v1104, 12
        %v1248 = vpop.permute.xlu0 %1247
        %1249 = vrot.lane.b32.xlu0 %v1105, 12
        %v1250 = vpop.permute.xlu0 %1249
        %1251 = vrot.lane.b32.xlu0 %v1106, 12
        %v1252 = vpop.permute.xlu0 %1251
        %1253 = vrot.lane.b32.xlu0 %v1107, 12
        %v1254 = vpop.permute.xlu0 %1253
        %1255 = vrot.lane.b32.xlu0 %v1108, 12
        %v1256 = vpop.permute.xlu0 %1255
        %1257 = vrot.lane.b32.xlu0 %v1109, 12
        %v1258 = vpop.permute.xlu0 %1257
        %1259 = vrot.lane.b32.xlu0 %v1110, 12
        %v1260 = vpop.permute.xlu0 %1259
        %1261 = vrot.lane.b32.xlu0 %v1111, 12
        %v1262 = vpop.permute.xlu0 %1261
        %1263 = vrot.lane.b32.xlu0 %v1112, 12
        %v1264 = vpop.permute.xlu0 %1263
        %1265 = vrot.lane.b32.xlu0 %v1113, 12
        %v1266 = vpop.permute.xlu0 %1265
        %1267 = vrot.lane.b32.xlu0 %v1114, 12
        %v1268 = vpop.permute.xlu0 %1267
        %1269 = vrot.lane.b32.xlu0 %v1115, 12
        %v1270 = vpop.permute.xlu0 %1269
        %1271 = vrot.lane.b32.xlu0 %v1116, 12
        %v1272 = vpop.permute.xlu0 %1271
        %1273 = vrot.lane.b32.xlu0 %v1117, 12
        %v1274 = vpop.permute.xlu0 %1273
        %1275 = vrot.lane.b32.xlu0 %v1118, 12
        %v1276 = vpop.permute.xlu0 %1275
        %1277 = vrot.lane.b32.xlu0 %v1119, 12
        %v1278 = vpop.permute.xlu0 %1277
        %1279 = vrot.lane.b32.xlu0 %v1120, 12
        %v1280 = vpop.permute.xlu0 %1279
        %1281 = vrot.lane.b32.xlu0 %v1121, 12
        %v1282 = vpop.permute.xlu0 %1281
        %1283 = vrot.lane.b32.xlu0 %v1122, 12
        %v1284 = vpop.permute.xlu0 %1283
        %1285 = vrot.lane.b32.xlu0 %v1123, 12
        %v1286 = vpop.permute.xlu0 %1285
        %1287 = vrot.lane.b32.xlu0 %v1124, 12
        %v1288 = vpop.permute.xlu0 %1287
        %1289 = vrot.lane.b32.xlu0 %v1125, 12
        %v1290 = vpop.permute.xlu0 %1289
        %1291 = vrot.lane.b32.xlu0 %v1126, 12
        %v1292 = vpop.permute.xlu0 %1291
        %1293 = vrot.lane.b32.xlu0 %v1127, 12
        %v1294 = vpop.permute.xlu0 %1293
        %1295 = vrot.lane.b32.xlu0 %v1128, 12
        %v1296 = vpop.permute.xlu0 %1295
        %1297 = vrot.lane.b32.xlu0 %v1129, 12
        %v1298 = vpop.permute.xlu0 %1297
        %1299 = vrot.lane.b32.xlu0 %v1130, 12
        %v1300 = vpop.permute.xlu0 %1299
        %1301 = vrot.lane.b32.xlu0 %v1131, 12
        %v1302 = vpop.permute.xlu0 %1301
        %1303 = vrot.lane.b32.xlu0 %v1132, 12
        %v1304 = vpop.permute.xlu0 %1303
        %1305 = vrot.lane.b32.xlu0 %v1133, 12
        %v1306 = vpop.permute.xlu0 %1305
        %1307 = vrot.lane.b32.xlu0 %v1134, 12
        %v1308 = vpop.permute.xlu0 %1307
        %1309 = vrot.lane.b32.xlu0 %v1135, 12
        %v1310 = vpop.permute.xlu0 %1309
        %1311 = vrot.lane.b32.xlu0 %v1136, 12
        %v1312 = vpop.permute.xlu0 %1311
        %1313 = vrot.lane.b32.xlu0 %v1137, 12
        %v1314 = vpop.permute.xlu0 %1313
        %1315 = vrot.lane.b32.xlu0 %v1138, 12
        %v1316 = vpop.permute.xlu0 %1315
        %1317 = vrot.lane.b32.xlu0 %v1139, 12
        %v1318 = vpop.permute.xlu0 %1317
        %1319 = vrot.lane.b32.xlu0 %v1140, 12
        %v1320 = vpop.permute.xlu0 %1319
        %1321 = vrot.lane.b32.xlu0 %v1141, 12
        %v1322 = vpop.permute.xlu0 %1321
        %1323 = vrot.lane.b32.xlu0 %v1142, 12
        %v1324 = vpop.permute.xlu0 %1323
        %1325 = vrot.lane.b32.xlu0 %v1143, 12
        %v1326 = vpop.permute.xlu0 %1325
        %1327 = vrot.lane.b32.xlu0 %v1144, 12
        %v1328 = vpop.permute.xlu0 %1327
        %1329 = vrot.lane.b32.xlu0 %v1145, 12
        %v1330 = vpop.permute.xlu0 %1329
        %1331 = vrot.lane.b32.xlu0 %v1146, 12
        %v1332 = vpop.permute.xlu0 %1331
        %1333 = vrot.lane.b32.xlu0 %v1147, 12
        %v1334 = vpop.permute.xlu0 %1333
        %1335 = vrot.lane.b32.xlu0 %v1148, 12
        %v1336 = vpop.permute.xlu0 %1335
        %1337 = vrot.lane.b32.xlu0 %v1149, 12
        %v1338 = vpop.permute.xlu0 %1337
        %1339 = vrot.lane.b32.xlu0 %v1150, 12
        %v1340 = vpop.permute.xlu0 %1339
        %1341 = vrot.lane.b32.xlu0 %v1151, 12
        %v1342 = vpop.permute.xlu0 %1341
        %1343 = vrot.lane.b32.xlu0 %v1152, 12
        %v1344 = vpop.permute.xlu0 %1343
        %vm1409 = vcmask 130144
        %1410 = vst.msk [vmem:[#allocation2] sm:$0xff] %vm1409, %v1218
        %1411 = vst.msk [vmem:[#allocation2 + $0x8] sm:$0xff] %vm1409, %v1220
        %1412 = vst.msk [vmem:[#allocation2 + $0x10] sm:$0xff] %vm1409, %v1222
        %1413 = vst.msk [vmem:[#allocation2 + $0x18] sm:$0xff] %vm1409, %v1224
        %1414 = vst.msk [vmem:[#allocation2 + $0x20] sm:$0xff] %vm1409, %v1226
        %1415 = vst.msk [vmem:[#allocation2 + $0x28] sm:$0xff] %vm1409, %v1228
        %1416 = vst.msk [vmem:[#allocation2 + $0x30] sm:$0xff] %vm1409, %v1230
        %1417 = vst.msk [vmem:[#allocation2 + $0x38] sm:$0xff] %vm1409, %v1232
        %1418 = vst.msk [vmem:[#allocation2 + $0x40] sm:$0xff] %vm1409, %v1234
        %1419 = vst.msk [vmem:[#allocation2 + $0x48] sm:$0xff] %vm1409, %v1236
        %1420 = vst.msk [vmem:[#allocation2 + $0x50] sm:$0xff] %vm1409, %v1238
        %1421 = vst.msk [vmem:[#allocation2 + $0x58] sm:$0xff] %vm1409, %v1240
        %1422 = vst.msk [vmem:[#allocation2 + $0x60] sm:$0xff] %vm1409, %v1242
        %1423 = vst.msk [vmem:[#allocation2 + $0x68] sm:$0xff] %vm1409, %v1244
        %1424 = vst.msk [vmem:[#allocation2 + $0x70] sm:$0xff] %vm1409, %v1246
        %1425 = vst.msk [vmem:[#allocation2 + $0x78] sm:$0xff] %vm1409, %v1248
        %1426 = vst.msk [vmem:[#allocation2 + $0x80] sm:$0xff] %vm1409, %v1250
        %1427 = vst.msk [vmem:[#allocation2 + $0x88] sm:$0xff] %vm1409, %v1252
        %1428 = vst.msk [vmem:[#allocation2 + $0x90] sm:$0xff] %vm1409, %v1254
        %1429 = vst.msk [vmem:[#allocation2 + $0x98] sm:$0xff] %vm1409, %v1256
        %1430 = vst.msk [vmem:[#allocation2 + $0xa0] sm:$0xff] %vm1409, %v1258
        %1431 = vst.msk [vmem:[#allocation2 + $0xa8] sm:$0xff] %vm1409, %v1260
        %1432 = vst.msk [vmem:[#allocation2 + $0xb0] sm:$0xff] %vm1409, %v1262
        %1433 = vst.msk [vmem:[#allocation2 + $0xb8] sm:$0xff] %vm1409, %v1264
        %1434 = vst.msk [vmem:[#allocation2 + $0xc0] sm:$0xff] %vm1409, %v1266
        %1435 = vst.msk [vmem:[#allocation2 + $0xc8] sm:$0xff] %vm1409, %v1268
        %1436 = vst.msk [vmem:[#allocation2 + $0xd0] sm:$0xff] %vm1409, %v1270
        %1437 = vst.msk [vmem:[#allocation2 + $0xd8] sm:$0xff] %vm1409, %v1272
        %1438 = vst.msk [vmem:[#allocation2 + $0xe0] sm:$0xff] %vm1409, %v1274
        %1439 = vst.msk [vmem:[#allocation2 + $0xe8] sm:$0xff] %vm1409, %v1276
        %1440 = vst.msk [vmem:[#allocation2 + $0xf0] sm:$0xff] %vm1409, %v1278
        %1441 = vst.msk [vmem:[#allocation2 + $0xf8] sm:$0xff] %vm1409, %v1280
        %1442 = vst.msk [vmem:[#allocation2 + $0x100] sm:$0xff] %vm1409, %v1282
        %1443 = vst.msk [vmem:[#allocation2 + $0x108] sm:$0xff] %vm1409, %v1284
        %1444 = vst.msk [vmem:[#allocation2 + $0x110] sm:$0xff] %vm1409, %v1286
        %1445 = vst.msk [vmem:[#allocation2 + $0x118] sm:$0xff] %vm1409, %v1288
        %1446 = vst.msk [vmem:[#allocation2 + $0x120] sm:$0xff] %vm1409, %v1290
        %1447 = vst.msk [vmem:[#allocation2 + $0x128] sm:$0xff] %vm1409, %v1292
        %1448 = vst.msk [vmem:[#allocation2 + $0x130] sm:$0xff] %vm1409, %v1294
        %1449 = vst.msk [vmem:[#allocation2 + $0x138] sm:$0xff] %vm1409, %v1296
        %1450 = vst.msk [vmem:[#allocation2 + $0x140] sm:$0xff] %vm1409, %v1298
        %1451 = vst.msk [vmem:[#allocation2 + $0x148] sm:$0xff] %vm1409, %v1300
        %1452 = vst.msk [vmem:[#allocation2 + $0x150] sm:$0xff] %vm1409, %v1302
        %1453 = vst.msk [vmem:[#allocation2 + $0x158] sm:$0xff] %vm1409, %v1304
        %1454 = vst.msk [vmem:[#allocation2 + $0x160] sm:$0xff] %vm1409, %v1306
        %1455 = vst.msk [vmem:[#allocation2 + $0x168] sm:$0xff] %vm1409, %v1308
        %1456 = vst.msk [vmem:[#allocation2 + $0x170] sm:$0xff] %vm1409, %v1310
        %1457 = vst.msk [vmem:[#allocation2 + $0x178] sm:$0xff] %vm1409, %v1312
        %1458 = vst.msk [vmem:[#allocation2 + $0x180] sm:$0xff] %vm1409, %v1314
        %1459 = vst.msk [vmem:[#allocation2 + $0x188] sm:$0xff] %vm1409, %v1316
        %1460 = vst.msk [vmem:[#allocation2 + $0x190] sm:$0xff] %vm1409, %v1318
        %1461 = vst.msk [vmem:[#allocation2 + $0x198] sm:$0xff] %vm1409, %v1320
        %1462 = vst.msk [vmem:[#allocation2 + $0x1a0] sm:$0xff] %vm1409, %v1322
        %1463 = vst.msk [vmem:[#allocation2 + $0x1a8] sm:$0xff] %vm1409, %v1324
        %1464 = vst.msk [vmem:[#allocation2 + $0x1b0] sm:$0xff] %vm1409, %v1326
        %1465 = vst.msk [vmem:[#allocation2 + $0x1b8] sm:$0xff] %vm1409, %v1328
        %1466 = vst.msk [vmem:[#allocation2 + $0x1c0] sm:$0xff] %vm1409, %v1330
        %1467 = vst.msk [vmem:[#allocation2 + $0x1c8] sm:$0xff] %vm1409, %v1332
        %1468 = vst.msk [vmem:[#allocation2 + $0x1d0] sm:$0xff] %vm1409, %v1334
        %1469 = vst.msk [vmem:[#allocation2 + $0x1d8] sm:$0xff] %vm1409, %v1336
        %1470 = vst.msk [vmem:[#allocation2 + $0x1e0] sm:$0xff] %vm1409, %v1338
        %1471 = vst.msk [vmem:[#allocation2 + $0x1e8] sm:$0xff] %vm1409, %v1340
        %1472 = vst.msk [vmem:[#allocation2 + $0x1f0] sm:$0xff] %vm1409, %v1342
        %1473 = vst.msk [vmem:[#allocation2 + $0x1f8] sm:$0xff] %vm1409, %v1344
        %v1474 = vld [vmem:[%s1088 + $0x1] sm:$0xff]
        %v1475 = vld [vmem:[%s1088 + $0x9] sm:$0xff]
        %v1476 = vld [vmem:[%s1088 + $0x11] sm:$0xff]
        %v1477 = vld [vmem:[%s1088 + $0x19] sm:$0xff]
        %v1478 = vld [vmem:[%s1088 + $0x29] sm:$0xff]
        %v1479 = vld [vmem:[%s1088 + $0x31] sm:$0xff]
        %v1480 = vld [vmem:[%s1088 + $0x39] sm:$0xff]
        %v1481 = vld [vmem:[%s1088 + $0x41] sm:$0xff]
        %v1482 = vld [vmem:[%s1088 + $0x51] sm:$0xff]
        %v1483 = vld [vmem:[%s1088 + $0x59] sm:$0xff]
        %v1484 = vld [vmem:[%s1088 + $0x61] sm:$0xff]
        %v1485 = vld [vmem:[%s1088 + $0x69] sm:$0xff]
        %v1486 = vld [vmem:[%s1088 + $0x79] sm:$0xff]
        %v1487 = vld [vmem:[%s1088 + $0x81] sm:$0xff]
        %v1488 = vld [vmem:[%s1088 + $0x89] sm:$0xff]
        %v1489 = vld [vmem:[%s1088 + $0x91] sm:$0xff]
        %v1490 = vld [vmem:[%s1088 + $0xa1] sm:$0xff]
        %v1491 = vld [vmem:[%s1088 + $0xa9] sm:$0xff]
        %v1492 = vld [vmem:[%s1088 + $0xb1] sm:$0xff]
        %v1493 = vld [vmem:[%s1088 + $0xb9] sm:$0xff]
        %v1494 = vld [vmem:[%s1088 + $0xc9] sm:$0xff]
        %v1495 = vld [vmem:[%s1088 + $0xd1] sm:$0xff]
        %v1496 = vld [vmem:[%s1088 + $0xd9] sm:$0xff]
        %v1497 = vld [vmem:[%s1088 + $0xe1] sm:$0xff]
        %v1498 = vld [vmem:[%s1088 + $0xf1] sm:$0xff]
        %v1499 = vld [vmem:[%s1088 + $0xf9] sm:$0xff]
        %v1500 = vld [vmem:[%s1088 + $0x101] sm:$0xff]
        %v1501 = vld [vmem:[%s1088 + $0x109] sm:$0xff]
        %v1502 = vld [vmem:[%s1088 + $0x119] sm:$0xff]
        %v1503 = vld [vmem:[%s1088 + $0x121] sm:$0xff]
        %v1504 = vld [vmem:[%s1088 + $0x129] sm:$0xff]
        %v1505 = vld [vmem:[%s1088 + $0x131] sm:$0xff]
        %v1506 = vld [vmem:[%s1088 + $0x141] sm:$0xff]
        %v1507 = vld [vmem:[%s1088 + $0x149] sm:$0xff]
        %v1508 = vld [vmem:[%s1088 + $0x151] sm:$0xff]
        %v1509 = vld [vmem:[%s1088 + $0x159] sm:$0xff]
        %v1510 = vld [vmem:[%s1088 + $0x169] sm:$0xff]
        %v1511 = vld [vmem:[%s1088 + $0x171] sm:$0xff]
        %v1512 = vld [vmem:[%s1088 + $0x179] sm:$0xff]
        %v1513 = vld [vmem:[%s1088 + $0x181] sm:$0xff]
        %v1514 = vld [vmem:[%s1088 + $0x191] sm:$0xff]
        %v1515 = vld [vmem:[%s1088 + $0x199] sm:$0xff]
        %v1516 = vld [vmem:[%s1088 + $0x1a1] sm:$0xff]
        %v1517 = vld [vmem:[%s1088 + $0x1a9] sm:$0xff]
        %v1518 = vld [vmem:[%s1088 + $0x1b9] sm:$0xff]
        %v1519 = vld [vmem:[%s1088 + $0x1c1] sm:$0xff]
        %v1520 = vld [vmem:[%s1088 + $0x1c9] sm:$0xff]
        %v1521 = vld [vmem:[%s1088 + $0x1d1] sm:$0xff]
        %v1522 = vld [vmem:[%s1088 + $0x1e1] sm:$0xff]
        %v1523 = vld [vmem:[%s1088 + $0x1e9] sm:$0xff]
        %v1524 = vld [vmem:[%s1088 + $0x1f1] sm:$0xff]
        %v1525 = vld [vmem:[%s1088 + $0x1f9] sm:$0xff]
        %v1526 = vld [vmem:[%s1088 + $0x209] sm:$0xff]
        %v1527 = vld [vmem:[%s1088 + $0x211] sm:$0xff]
        %v1528 = vld [vmem:[%s1088 + $0x219] sm:$0xff]
        %v1529 = vld [vmem:[%s1088 + $0x221] sm:$0xff]
        %v1530 = vld [vmem:[%s1088 + $0x231] sm:$0xff]
        %v1531 = vld [vmem:[%s1088 + $0x239] sm:$0xff]
        %v1532 = vld [vmem:[%s1088 + $0x241] sm:$0xff]
        %v1533 = vld [vmem:[%s1088 + $0x249] sm:$0xff]
        %v1534 = vld [vmem:[%s1088 + $0x259] sm:$0xff]
        %v1535 = vld [vmem:[%s1088 + $0x261] sm:$0xff]
        %v1536 = vld [vmem:[%s1088 + $0x269] sm:$0xff]
        %v1537 = vld [vmem:[%s1088 + $0x271] sm:$0xff]
        %1602 = vrot.lane.b32.xlu0 %v1474, 16
        %v1603 = vpop.permute.xlu0 %1602
        %1604 = vrot.lane.b32.xlu0 %v1475, 16
        %v1605 = vpop.permute.xlu0 %1604
        %1606 = vrot.lane.b32.xlu0 %v1476, 16
        %v1607 = vpop.permute.xlu0 %1606
        %1608 = vrot.lane.b32.xlu0 %v1477, 16
        %v1609 = vpop.permute.xlu0 %1608
        %1610 = vrot.lane.b32.xlu0 %v1478, 16
        %v1611 = vpop.permute.xlu0 %1610
        %1612 = vrot.lane.b32.xlu0 %v1479, 16
        %v1613 = vpop.permute.xlu0 %1612
        %1614 = vrot.lane.b32.xlu0 %v1480, 16
        %v1615 = vpop.permute.xlu0 %1614
        %1616 = vrot.lane.b32.xlu0 %v1481, 16
        %v1617 = vpop.permute.xlu0 %1616
        %1618 = vrot.lane.b32.xlu0 %v1482, 16
        %v1619 = vpop.permute.xlu0 %1618
        %1620 = vrot.lane.b32.xlu0 %v1483, 16
        %v1621 = vpop.permute.xlu0 %1620
        %1622 = vrot.lane.b32.xlu0 %v1484, 16
        %v1623 = vpop.permute.xlu0 %1622
        %1624 = vrot.lane.b32.xlu0 %v1485, 16
        %v1625 = vpop.permute.xlu0 %1624
        %1626 = vrot.lane.b32.xlu0 %v1486, 16
        %v1627 = vpop.permute.xlu0 %1626
        %1628 = vrot.lane.b32.xlu0 %v1487, 16
        %v1629 = vpop.permute.xlu0 %1628
        %1630 = vrot.lane.b32.xlu0 %v1488, 16
        %v1631 = vpop.permute.xlu0 %1630
        %1632 = vrot.lane.b32.xlu0 %v1489, 16
        %v1633 = vpop.permute.xlu0 %1632
        %1634 = vrot.lane.b32.xlu0 %v1490, 16
        %v1635 = vpop.permute.xlu0 %1634
        %1636 = vrot.lane.b32.xlu0 %v1491, 16
        %v1637 = vpop.permute.xlu0 %1636
        %1638 = vrot.lane.b32.xlu0 %v1492, 16
        %v1639 = vpop.permute.xlu0 %1638
        %1640 = vrot.lane.b32.xlu0 %v1493, 16
        %v1641 = vpop.permute.xlu0 %1640
        %1642 = vrot.lane.b32.xlu0 %v1494, 16
        %v1643 = vpop.permute.xlu0 %1642
        %1644 = vrot.lane.b32.xlu0 %v1495, 16
        %v1645 = vpop.permute.xlu0 %1644
        %1646 = vrot.lane.b32.xlu0 %v1496, 16
        %v1647 = vpop.permute.xlu0 %1646
        %1648 = vrot.lane.b32.xlu0 %v1497, 16
        %v1649 = vpop.permute.xlu0 %1648
        %1650 = vrot.lane.b32.xlu0 %v1498, 16
        %v1651 = vpop.permute.xlu0 %1650
        %1652 = vrot.lane.b32.xlu0 %v1499, 16
        %v1653 = vpop.permute.xlu0 %1652
        %1654 = vrot.lane.b32.xlu0 %v1500, 16
        %v1655 = vpop.permute.xlu0 %1654
        %1656 = vrot.lane.b32.xlu0 %v1501, 16
        %v1657 = vpop.permute.xlu0 %1656
        %1658 = vrot.lane.b32.xlu0 %v1502, 16
        %v1659 = vpop.permute.xlu0 %1658
        %1660 = vrot.lane.b32.xlu0 %v1503, 16
        %v1661 = vpop.permute.xlu0 %1660
        %1662 = vrot.lane.b32.xlu0 %v1504, 16
        %v1663 = vpop.permute.xlu0 %1662
        %1664 = vrot.lane.b32.xlu0 %v1505, 16
        %v1665 = vpop.permute.xlu0 %1664
        %1666 = vrot.lane.b32.xlu0 %v1506, 16
        %v1667 = vpop.permute.xlu0 %1666
        %1668 = vrot.lane.b32.xlu0 %v1507, 16
        %v1669 = vpop.permute.xlu0 %1668
        %1670 = vrot.lane.b32.xlu0 %v1508, 16
        %v1671 = vpop.permute.xlu0 %1670
        %1672 = vrot.lane.b32.xlu0 %v1509, 16
        %v1673 = vpop.permute.xlu0 %1672
        %1674 = vrot.lane.b32.xlu0 %v1510, 16
        %v1675 = vpop.permute.xlu0 %1674
        %1676 = vrot.lane.b32.xlu0 %v1511, 16
        %v1677 = vpop.permute.xlu0 %1676
        %1678 = vrot.lane.b32.xlu0 %v1512, 16
        %v1679 = vpop.permute.xlu0 %1678
        %1680 = vrot.lane.b32.xlu0 %v1513, 16
        %v1681 = vpop.permute.xlu0 %1680
        %1682 = vrot.lane.b32.xlu0 %v1514, 16
        %v1683 = vpop.permute.xlu0 %1682
        %1684 = vrot.lane.b32.xlu0 %v1515, 16
        %v1685 = vpop.permute.xlu0 %1684
        %1686 = vrot.lane.b32.xlu0 %v1516, 16
        %v1687 = vpop.permute.xlu0 %1686
        %1688 = vrot.lane.b32.xlu0 %v1517, 16
        %v1689 = vpop.permute.xlu0 %1688
        %1690 = vrot.lane.b32.xlu0 %v1518, 16
        %v1691 = vpop.permute.xlu0 %1690
        %1692 = vrot.lane.b32.xlu0 %v1519, 16
        %v1693 = vpop.permute.xlu0 %1692
        %1694 = vrot.lane.b32.xlu0 %v1520, 16
        %v1695 = vpop.permute.xlu0 %1694
        %1696 = vrot.lane.b32.xlu0 %v1521, 16
        %v1697 = vpop.permute.xlu0 %1696
        %1698 = vrot.lane.b32.xlu0 %v1522, 16
        %v1699 = vpop.permute.xlu0 %1698
        %1700 = vrot.lane.b32.xlu0 %v1523, 16
        %v1701 = vpop.permute.xlu0 %1700
        %1702 = vrot.lane.b32.xlu0 %v1524, 16
        %v1703 = vpop.permute.xlu0 %1702
        %1704 = vrot.lane.b32.xlu0 %v1525, 16
        %v1705 = vpop.permute.xlu0 %1704
        %1706 = vrot.lane.b32.xlu0 %v1526, 16
        %v1707 = vpop.permute.xlu0 %1706
        %1708 = vrot.lane.b32.xlu0 %v1527, 16
        %v1709 = vpop.permute.xlu0 %1708
        %1710 = vrot.lane.b32.xlu0 %v1528, 16
        %v1711 = vpop.permute.xlu0 %1710
        %1712 = vrot.lane.b32.xlu0 %v1529, 16
        %v1713 = vpop.permute.xlu0 %1712
        %1714 = vrot.lane.b32.xlu0 %v1530, 16
        %v1715 = vpop.permute.xlu0 %1714
        %1716 = vrot.lane.b32.xlu0 %v1531, 16
        %v1717 = vpop.permute.xlu0 %1716
        %1718 = vrot.lane.b32.xlu0 %v1532, 16
        %v1719 = vpop.permute.xlu0 %1718
        %1720 = vrot.lane.b32.xlu0 %v1533, 16
        %v1721 = vpop.permute.xlu0 %1720
        %1722 = vrot.lane.b32.xlu0 %v1534, 16
        %v1723 = vpop.permute.xlu0 %1722
        %1724 = vrot.lane.b32.xlu0 %v1535, 16
        %v1725 = vpop.permute.xlu0 %1724
        %1726 = vrot.lane.b32.xlu0 %v1536, 16
        %v1727 = vpop.permute.xlu0 %1726
        %1728 = vrot.lane.b32.xlu0 %v1537, 16
        %v1729 = vpop.permute.xlu0 %1728
        %vm1794 = vcmask 162944
        %1795 = vst.msk [vmem:[#allocation2] sm:$0xff] %vm1794, %v1603
        %1796 = vst.msk [vmem:[#allocation2 + $0x8] sm:$0xff] %vm1794, %v1605
        %1797 = vst.msk [vmem:[#allocation2 + $0x10] sm:$0xff] %vm1794, %v1607
        %1798 = vst.msk [vmem:[#allocation2 + $0x18] sm:$0xff] %vm1794, %v1609
        %1799 = vst.msk [vmem:[#allocation2 + $0x20] sm:$0xff] %vm1794, %v1611
        %1800 = vst.msk [vmem:[#allocation2 + $0x28] sm:$0xff] %vm1794, %v1613
        %1801 = vst.msk [vmem:[#allocation2 + $0x30] sm:$0xff] %vm1794, %v1615
        %1802 = vst.msk [vmem:[#allocation2 + $0x38] sm:$0xff] %vm1794, %v1617
        %1803 = vst.msk [vmem:[#allocation2 + $0x40] sm:$0xff] %vm1794, %v1619
        %1804 = vst.msk [vmem:[#allocation2 + $0x48] sm:$0xff] %vm1794, %v1621
        %1805 = vst.msk [vmem:[#allocation2 + $0x50] sm:$0xff] %vm1794, %v1623
        %1806 = vst.msk [vmem:[#allocation2 + $0x58] sm:$0xff] %vm1794, %v1625
        %1807 = vst.msk [vmem:[#allocation2 + $0x60] sm:$0xff] %vm1794, %v1627
        %1808 = vst.msk [vmem:[#allocation2 + $0x68] sm:$0xff] %vm1794, %v1629
        %1809 = vst.msk [vmem:[#allocation2 + $0x70] sm:$0xff] %vm1794, %v1631
        %1810 = vst.msk [vmem:[#allocation2 + $0x78] sm:$0xff] %vm1794, %v1633
        %1811 = vst.msk [vmem:[#allocation2 + $0x80] sm:$0xff] %vm1794, %v1635
        %1812 = vst.msk [vmem:[#allocation2 + $0x88] sm:$0xff] %vm1794, %v1637
        %1813 = vst.msk [vmem:[#allocation2 + $0x90] sm:$0xff] %vm1794, %v1639
        %1814 = vst.msk [vmem:[#allocation2 + $0x98] sm:$0xff] %vm1794, %v1641
        %1815 = vst.msk [vmem:[#allocation2 + $0xa0] sm:$0xff] %vm1794, %v1643
        %1816 = vst.msk [vmem:[#allocation2 + $0xa8] sm:$0xff] %vm1794, %v1645
        %1817 = vst.msk [vmem:[#allocation2 + $0xb0] sm:$0xff] %vm1794, %v1647
        %1818 = vst.msk [vmem:[#allocation2 + $0xb8] sm:$0xff] %vm1794, %v1649
        %1819 = vst.msk [vmem:[#allocation2 + $0xc0] sm:$0xff] %vm1794, %v1651
        %1820 = vst.msk [vmem:[#allocation2 + $0xc8] sm:$0xff] %vm1794, %v1653
        %1821 = vst.msk [vmem:[#allocation2 + $0xd0] sm:$0xff] %vm1794, %v1655
        %1822 = vst.msk [vmem:[#allocation2 + $0xd8] sm:$0xff] %vm1794, %v1657
        %1823 = vst.msk [vmem:[#allocation2 + $0xe0] sm:$0xff] %vm1794, %v1659
        %1824 = vst.msk [vmem:[#allocation2 + $0xe8] sm:$0xff] %vm1794, %v1661
        %1825 = vst.msk [vmem:[#allocation2 + $0xf0] sm:$0xff] %vm1794, %v1663
        %1826 = vst.msk [vmem:[#allocation2 + $0xf8] sm:$0xff] %vm1794, %v1665
        %1827 = vst.msk [vmem:[#allocation2 + $0x100] sm:$0xff] %vm1794, %v1667
        %1828 = vst.msk [vmem:[#allocation2 + $0x108] sm:$0xff] %vm1794, %v1669
        %1829 = vst.msk [vmem:[#allocation2 + $0x110] sm:$0xff] %vm1794, %v1671
        %1830 = vst.msk [vmem:[#allocation2 + $0x118] sm:$0xff] %vm1794, %v1673
        %1831 = vst.msk [vmem:[#allocation2 + $0x120] sm:$0xff] %vm1794, %v1675
        %1832 = vst.msk [vmem:[#allocation2 + $0x128] sm:$0xff] %vm1794, %v1677
        %1833 = vst.msk [vmem:[#allocation2 + $0x130] sm:$0xff] %vm1794, %v1679
        %1834 = vst.msk [vmem:[#allocation2 + $0x138] sm:$0xff] %vm1794, %v1681
        %1835 = vst.msk [vmem:[#allocation2 + $0x140] sm:$0xff] %vm1794, %v1683
        %1836 = vst.msk [vmem:[#allocation2 + $0x148] sm:$0xff] %vm1794, %v1685
        %1837 = vst.msk [vmem:[#allocation2 + $0x150] sm:$0xff] %vm1794, %v1687
        %1838 = vst.msk [vmem:[#allocation2 + $0x158] sm:$0xff] %vm1794, %v1689
        %1839 = vst.msk [vmem:[#allocation2 + $0x160] sm:$0xff] %vm1794, %v1691
        %1840 = vst.msk [vmem:[#allocation2 + $0x168] sm:$0xff] %vm1794, %v1693
        %1841 = vst.msk [vmem:[#allocation2 + $0x170] sm:$0xff] %vm1794, %v1695
        %1842 = vst.msk [vmem:[#allocation2 + $0x178] sm:$0xff] %vm1794, %v1697
        %1843 = vst.msk [vmem:[#allocation2 + $0x180] sm:$0xff] %vm1794, %v1699
        %1844 = vst.msk [vmem:[#allocation2 + $0x188] sm:$0xff] %vm1794, %v1701
        %1845 = vst.msk [vmem:[#allocation2 + $0x190] sm:$0xff] %vm1794, %v1703
        %1846 = vst.msk [vmem:[#allocation2 + $0x198] sm:$0xff] %vm1794, %v1705
        %1847 = vst.msk [vmem:[#allocation2 + $0x1a0] sm:$0xff] %vm1794, %v1707
        %1848 = vst.msk [vmem:[#allocation2 + $0x1a8] sm:$0xff] %vm1794, %v1709
        %1849 = vst.msk [vmem:[#allocation2 + $0x1b0] sm:$0xff] %vm1794, %v1711
        %1850 = vst.msk [vmem:[#allocation2 + $0x1b8] sm:$0xff] %vm1794, %v1713
        %1851 = vst.msk [vmem:[#allocation2 + $0x1c0] sm:$0xff] %vm1794, %v1715
        %1852 = vst.msk [vmem:[#allocation2 + $0x1c8] sm:$0xff] %vm1794, %v1717
        %1853 = vst.msk [vmem:[#allocation2 + $0x1d0] sm:$0xff] %vm1794, %v1719
        %1854 = vst.msk [vmem:[#allocation2 + $0x1d8] sm:$0xff] %vm1794, %v1721
        %1855 = vst.msk [vmem:[#allocation2 + $0x1e0] sm:$0xff] %vm1794, %v1723
        %1856 = vst.msk [vmem:[#allocation2 + $0x1e8] sm:$0xff] %vm1794, %v1725
        %1857 = vst.msk [vmem:[#allocation2 + $0x1f0] sm:$0xff] %vm1794, %v1727
        %1858 = vst.msk [vmem:[#allocation2 + $0x1f8] sm:$0xff] %vm1794, %v1729
        %v1859 = vld [vmem:[%s1088 + $0x2] sm:$0xff]
        %v1860 = vld [vmem:[%s1088 + $0xa] sm:$0xff]
        %v1861 = vld [vmem:[%s1088 + $0x12] sm:$0xff]
        %v1862 = vld [vmem:[%s1088 + $0x1a] sm:$0xff]
        %v1863 = vld [vmem:[%s1088 + $0x2a] sm:$0xff]
        %v1864 = vld [vmem:[%s1088 + $0x32] sm:$0xff]
        %v1865 = vld [vmem:[%s1088 + $0x3a] sm:$0xff]
        %v1866 = vld [vmem:[%s1088 + $0x42] sm:$0xff]
        %v1867 = vld [vmem:[%s1088 + $0x52] sm:$0xff]
        %v1868 = vld [vmem:[%s1088 + $0x5a] sm:$0xff]
        %v1869 = vld [vmem:[%s1088 + $0x62] sm:$0xff]
        %v1870 = vld [vmem:[%s1088 + $0x6a] sm:$0xff]
        %v1871 = vld [vmem:[%s1088 + $0x7a] sm:$0xff]
        %v1872 = vld [vmem:[%s1088 + $0x82] sm:$0xff]
        %v1873 = vld [vmem:[%s1088 + $0x8a] sm:$0xff]
        %v1874 = vld [vmem:[%s1088 + $0x92] sm:$0xff]
        %v1875 = vld [vmem:[%s1088 + $0xa2] sm:$0xff]
        %v1876 = vld [vmem:[%s1088 + $0xaa] sm:$0xff]
        %v1877 = vld [vmem:[%s1088 + $0xb2] sm:$0xff]
        %v1878 = vld [vmem:[%s1088 + $0xba] sm:$0xff]
        %v1879 = vld [vmem:[%s1088 + $0xca] sm:$0xff]
        %v1880 = vld [vmem:[%s1088 + $0xd2] sm:$0xff]
        %v1881 = vld [vmem:[%s1088 + $0xda] sm:$0xff]
        %v1882 = vld [vmem:[%s1088 + $0xe2] sm:$0xff]
        %v1883 = vld [vmem:[%s1088 + $0xf2] sm:$0xff]
        %v1884 = vld [vmem:[%s1088 + $0xfa] sm:$0xff]
        %v1885 = vld [vmem:[%s1088 + $0x102] sm:$0xff]
        %v1886 = vld [vmem:[%s1088 + $0x10a] sm:$0xff]
        %v1887 = vld [vmem:[%s1088 + $0x11a] sm:$0xff]
        %v1888 = vld [vmem:[%s1088 + $0x122] sm:$0xff]
        %v1889 = vld [vmem:[%s1088 + $0x12a] sm:$0xff]
        %v1890 = vld [vmem:[%s1088 + $0x132] sm:$0xff]
        %v1891 = vld [vmem:[%s1088 + $0x142] sm:$0xff]
        %v1892 = vld [vmem:[%s1088 + $0x14a] sm:$0xff]
        %v1893 = vld [vmem:[%s1088 + $0x152] sm:$0xff]
        %v1894 = vld [vmem:[%s1088 + $0x15a] sm:$0xff]
        %v1895 = vld [vmem:[%s1088 + $0x16a] sm:$0xff]
        %v1896 = vld [vmem:[%s1088 + $0x172] sm:$0xff]
        %v1897 = vld [vmem:[%s1088 + $0x17a] sm:$0xff]
        %v1898 = vld [vmem:[%s1088 + $0x182] sm:$0xff]
        %v1899 = vld [vmem:[%s1088 + $0x192] sm:$0xff]
        %v1900 = vld [vmem:[%s1088 + $0x19a] sm:$0xff]
        %v1901 = vld [vmem:[%s1088 + $0x1a2] sm:$0xff]
        %v1902 = vld [vmem:[%s1088 + $0x1aa] sm:$0xff]
        %v1903 = vld [vmem:[%s1088 + $0x1ba] sm:$0xff]
        %v1904 = vld [vmem:[%s1088 + $0x1c2] sm:$0xff]
        %v1905 = vld [vmem:[%s1088 + $0x1ca] sm:$0xff]
        %v1906 = vld [vmem:[%s1088 + $0x1d2] sm:$0xff]
        %v1907 = vld [vmem:[%s1088 + $0x1e2] sm:$0xff]
        %v1908 = vld [vmem:[%s1088 + $0x1ea] sm:$0xff]
        %v1909 = vld [vmem:[%s1088 + $0x1f2] sm:$0xff]
        %v1910 = vld [vmem:[%s1088 + $0x1fa] sm:$0xff]
        %v1911 = vld [vmem:[%s1088 + $0x20a] sm:$0xff]
        %v1912 = vld [vmem:[%s1088 + $0x212] sm:$0xff]
        %v1913 = vld [vmem:[%s1088 + $0x21a] sm:$0xff]
        %v1914 = vld [vmem:[%s1088 + $0x222] sm:$0xff]
        %v1915 = vld [vmem:[%s1088 + $0x232] sm:$0xff]
        %v1916 = vld [vmem:[%s1088 + $0x23a] sm:$0xff]
        %v1917 = vld [vmem:[%s1088 + $0x242] sm:$0xff]
        %v1918 = vld [vmem:[%s1088 + $0x24a] sm:$0xff]
        %v1919 = vld [vmem:[%s1088 + $0x25a] sm:$0xff]
        %v1920 = vld [vmem:[%s1088 + $0x262] sm:$0xff]
        %v1921 = vld [vmem:[%s1088 + $0x26a] sm:$0xff]
        %v1922 = vld [vmem:[%s1088 + $0x272] sm:$0xff]
        %1987 = vrot.lane.b32.xlu0 %v1859, 20
        %v1988 = vpop.permute.xlu0 %1987
        %1989 = vrot.lane.b32.xlu0 %v1860, 20
        %v1990 = vpop.permute.xlu0 %1989
        %1991 = vrot.lane.b32.xlu0 %v1861, 20
        %v1992 = vpop.permute.xlu0 %1991
        %1993 = vrot.lane.b32.xlu0 %v1862, 20
        %v1994 = vpop.permute.xlu0 %1993
        %1995 = vrot.lane.b32.xlu0 %v1863, 20
        %v1996 = vpop.permute.xlu0 %1995
        %1997 = vrot.lane.b32.xlu0 %v1864, 20
        %v1998 = vpop.permute.xlu0 %1997
        %1999 = vrot.lane.b32.xlu0 %v1865, 20
        %v2000 = vpop.permute.xlu0 %1999
        %2001 = vrot.lane.b32.xlu0 %v1866, 20
        %v2002 = vpop.permute.xlu0 %2001
        %2003 = vrot.lane.b32.xlu0 %v1867, 20
        %v2004 = vpop.permute.xlu0 %2003
        %2005 = vrot.lane.b32.xlu0 %v1868, 20
        %v2006 = vpop.permute.xlu0 %2005
        %2007 = vrot.lane.b32.xlu0 %v1869, 20
        %v2008 = vpop.permute.xlu0 %2007
        %2009 = vrot.lane.b32.xlu0 %v1870, 20
        %v2010 = vpop.permute.xlu0 %2009
        %2011 = vrot.lane.b32.xlu0 %v1871, 20
        %v2012 = vpop.permute.xlu0 %2011
        %2013 = vrot.lane.b32.xlu0 %v1872, 20
        %v2014 = vpop.permute.xlu0 %2013
        %2015 = vrot.lane.b32.xlu0 %v1873, 20
        %v2016 = vpop.permute.xlu0 %2015
        %2017 = vrot.lane.b32.xlu0 %v1874, 20
        %v2018 = vpop.permute.xlu0 %2017
        %2019 = vrot.lane.b32.xlu0 %v1875, 20
        %v2020 = vpop.permute.xlu0 %2019
        %2021 = vrot.lane.b32.xlu0 %v1876, 20
        %v2022 = vpop.permute.xlu0 %2021
        %2023 = vrot.lane.b32.xlu0 %v1877, 20
        %v2024 = vpop.permute.xlu0 %2023
        %2025 = vrot.lane.b32.xlu0 %v1878, 20
        %v2026 = vpop.permute.xlu0 %2025
        %2027 = vrot.lane.b32.xlu0 %v1879, 20
        %v2028 = vpop.permute.xlu0 %2027
        %2029 = vrot.lane.b32.xlu0 %v1880, 20
        %v2030 = vpop.permute.xlu0 %2029
        %2031 = vrot.lane.b32.xlu0 %v1881, 20
        %v2032 = vpop.permute.xlu0 %2031
        %2033 = vrot.lane.b32.xlu0 %v1882, 20
        %v2034 = vpop.permute.xlu0 %2033
        %2035 = vrot.lane.b32.xlu0 %v1883, 20
        %v2036 = vpop.permute.xlu0 %2035
        %2037 = vrot.lane.b32.xlu0 %v1884, 20
        %v2038 = vpop.permute.xlu0 %2037
        %2039 = vrot.lane.b32.xlu0 %v1885, 20
        %v2040 = vpop.permute.xlu0 %2039
        %2041 = vrot.lane.b32.xlu0 %v1886, 20
        %v2042 = vpop.permute.xlu0 %2041
        %2043 = vrot.lane.b32.xlu0 %v1887, 20
        %v2044 = vpop.permute.xlu0 %2043
        %2045 = vrot.lane.b32.xlu0 %v1888, 20
        %v2046 = vpop.permute.xlu0 %2045
        %2047 = vrot.lane.b32.xlu0 %v1889, 20
        %v2048 = vpop.permute.xlu0 %2047
        %2049 = vrot.lane.b32.xlu0 %v1890, 20
        %v2050 = vpop.permute.xlu0 %2049
        %2051 = vrot.lane.b32.xlu0 %v1891, 20
        %v2052 = vpop.permute.xlu0 %2051
        %2053 = vrot.lane.b32.xlu0 %v1892, 20
        %v2054 = vpop.permute.xlu0 %2053
        %2055 = vrot.lane.b32.xlu0 %v1893, 20
        %v2056 = vpop.permute.xlu0 %2055
        %2057 = vrot.lane.b32.xlu0 %v1894, 20
        %v2058 = vpop.permute.xlu0 %2057
        %2059 = vrot.lane.b32.xlu0 %v1895, 20
        %v2060 = vpop.permute.xlu0 %2059
        %2061 = vrot.lane.b32.xlu0 %v1896, 20
        %v2062 = vpop.permute.xlu0 %2061
        %2063 = vrot.lane.b32.xlu0 %v1897, 20
        %v2064 = vpop.permute.xlu0 %2063
        %2065 = vrot.lane.b32.xlu0 %v1898, 20
        %v2066 = vpop.permute.xlu0 %2065
        %2067 = vrot.lane.b32.xlu0 %v1899, 20
        %v2068 = vpop.permute.xlu0 %2067
        %2069 = vrot.lane.b32.xlu0 %v1900, 20
        %v2070 = vpop.permute.xlu0 %2069
        %2071 = vrot.lane.b32.xlu0 %v1901, 20
        %v2072 = vpop.permute.xlu0 %2071
        %2073 = vrot.lane.b32.xlu0 %v1902, 20
        %v2074 = vpop.permute.xlu0 %2073
        %2075 = vrot.lane.b32.xlu0 %v1903, 20
        %v2076 = vpop.permute.xlu0 %2075
        %2077 = vrot.lane.b32.xlu0 %v1904, 20
        %v2078 = vpop.permute.xlu0 %2077
        %2079 = vrot.lane.b32.xlu0 %v1905, 20
        %v2080 = vpop.permute.xlu0 %2079
        %2081 = vrot.lane.b32.xlu0 %v1906, 20
        %v2082 = vpop.permute.xlu0 %2081
        %2083 = vrot.lane.b32.xlu0 %v1907, 20
        %v2084 = vpop.permute.xlu0 %2083
        %2085 = vrot.lane.b32.xlu0 %v1908, 20
        %v2086 = vpop.permute.xlu0 %2085
        %2087 = vrot.lane.b32.xlu0 %v1909, 20
        %v2088 = vpop.permute.xlu0 %2087
        %2089 = vrot.lane.b32.xlu0 %v1910, 20
        %v2090 = vpop.permute.xlu0 %2089
        %2091 = vrot.lane.b32.xlu0 %v1911, 20
        %v2092 = vpop.permute.xlu0 %2091
        %2093 = vrot.lane.b32.xlu0 %v1912, 20
        %v2094 = vpop.permute.xlu0 %2093
        %2095 = vrot.lane.b32.xlu0 %v1913, 20
        %v2096 = vpop.permute.xlu0 %2095
        %2097 = vrot.lane.b32.xlu0 %v1914, 20
        %v2098 = vpop.permute.xlu0 %2097
        %2099 = vrot.lane.b32.xlu0 %v1915, 20
        %v2100 = vpop.permute.xlu0 %2099
        %2101 = vrot.lane.b32.xlu0 %v1916, 20
        %v2102 = vpop.permute.xlu0 %2101
        %2103 = vrot.lane.b32.xlu0 %v1917, 20
        %v2104 = vpop.permute.xlu0 %2103
        %2105 = vrot.lane.b32.xlu0 %v1918, 20
        %v2106 = vpop.permute.xlu0 %2105
        %2107 = vrot.lane.b32.xlu0 %v1919, 20
        %v2108 = vpop.permute.xlu0 %2107
        %2109 = vrot.lane.b32.xlu0 %v1920, 20
        %v2110 = vpop.permute.xlu0 %2109
        %2111 = vrot.lane.b32.xlu0 %v1921, 20
        %v2112 = vpop.permute.xlu0 %2111
        %2113 = vrot.lane.b32.xlu0 %v1922, 20
        %v2114 = vpop.permute.xlu0 %2113
        %vm2179 = vcmask 195744
        %2180 = vst.msk [vmem:[#allocation2] sm:$0xff] %vm2179, %v1988
        %2181 = vst.msk [vmem:[#allocation2 + $0x8] sm:$0xff] %vm2179, %v1990
        %2182 = vst.msk [vmem:[#allocation2 + $0x10] sm:$0xff] %vm2179, %v1992
        %2183 = vst.msk [vmem:[#allocation2 + $0x18] sm:$0xff] %vm2179, %v1994
        %2184 = vst.msk [vmem:[#allocation2 + $0x20] sm:$0xff] %vm2179, %v1996
        %2185 = vst.msk [vmem:[#allocation2 + $0x28] sm:$0xff] %vm2179, %v1998
        %2186 = vst.msk [vmem:[#allocation2 + $0x30] sm:$0xff] %vm2179, %v2000
        %2187 = vst.msk [vmem:[#allocation2 + $0x38] sm:$0xff] %vm2179, %v2002
        %2188 = vst.msk [vmem:[#allocation2 + $0x40] sm:$0xff] %vm2179, %v2004
        %2189 = vst.msk [vmem:[#allocation2 + $0x48] sm:$0xff] %vm2179, %v2006
        %2190 = vst.msk [vmem:[#allocation2 + $0x50] sm:$0xff] %vm2179, %v2008
        %2191 = vst.msk [vmem:[#allocation2 + $0x58] sm:$0xff] %vm2179, %v2010
        %2192 = vst.msk [vmem:[#allocation2 + $0x60] sm:$0xff] %vm2179, %v2012
        %2193 = vst.msk [vmem:[#allocation2 + $0x68] sm:$0xff] %vm2179, %v2014
        %2194 = vst.msk [vmem:[#allocation2 + $0x70] sm:$0xff] %vm2179, %v2016
        %2195 = vst.msk [vmem:[#allocation2 + $0x78] sm:$0xff] %vm2179, %v2018
        %2196 = vst.msk [vmem:[#allocation2 + $0x80] sm:$0xff] %vm2179, %v2020
        %2197 = vst.msk [vmem:[#allocation2 + $0x88] sm:$0xff] %vm2179, %v2022
        %2198 = vst.msk [vmem:[#allocation2 + $0x90] sm:$0xff] %vm2179, %v2024
        %2199 = vst.msk [vmem:[#allocation2 + $0x98] sm:$0xff] %vm2179, %v2026
        %2200 = vst.msk [vmem:[#allocation2 + $0xa0] sm:$0xff] %vm2179, %v2028
        %2201 = vst.msk [vmem:[#allocation2 + $0xa8] sm:$0xff] %vm2179, %v2030
        %2202 = vst.msk [vmem:[#allocation2 + $0xb0] sm:$0xff] %vm2179, %v2032
        %2203 = vst.msk [vmem:[#allocation2 + $0xb8] sm:$0xff] %vm2179, %v2034
        %2204 = vst.msk [vmem:[#allocation2 + $0xc0] sm:$0xff] %vm2179, %v2036
        %2205 = vst.msk [vmem:[#allocation2 + $0xc8] sm:$0xff] %vm2179, %v2038
        %2206 = vst.msk [vmem:[#allocation2 + $0xd0] sm:$0xff] %vm2179, %v2040
        %2207 = vst.msk [vmem:[#allocation2 + $0xd8] sm:$0xff] %vm2179, %v2042
        %2208 = vst.msk [vmem:[#allocation2 + $0xe0] sm:$0xff] %vm2179, %v2044
        %2209 = vst.msk [vmem:[#allocation2 + $0xe8] sm:$0xff] %vm2179, %v2046
        %2210 = vst.msk [vmem:[#allocation2 + $0xf0] sm:$0xff] %vm2179, %v2048
        %2211 = vst.msk [vmem:[#allocation2 + $0xf8] sm:$0xff] %vm2179, %v2050
        %2212 = vst.msk [vmem:[#allocation2 + $0x100] sm:$0xff] %vm2179, %v2052
        %2213 = vst.msk [vmem:[#allocation2 + $0x108] sm:$0xff] %vm2179, %v2054
        %2214 = vst.msk [vmem:[#allocation2 + $0x110] sm:$0xff] %vm2179, %v2056
        %2215 = vst.msk [vmem:[#allocation2 + $0x118] sm:$0xff] %vm2179, %v2058
        %2216 = vst.msk [vmem:[#allocation2 + $0x120] sm:$0xff] %vm2179, %v2060
        %2217 = vst.msk [vmem:[#allocation2 + $0x128] sm:$0xff] %vm2179, %v2062
        %2218 = vst.msk [vmem:[#allocation2 + $0x130] sm:$0xff] %vm2179, %v2064
        %2219 = vst.msk [vmem:[#allocation2 + $0x138] sm:$0xff] %vm2179, %v2066
        %2220 = vst.msk [vmem:[#allocation2 + $0x140] sm:$0xff] %vm2179, %v2068
        %2221 = vst.msk [vmem:[#allocation2 + $0x148] sm:$0xff] %vm2179, %v2070
        %2222 = vst.msk [vmem:[#allocation2 + $0x150] sm:$0xff] %vm2179, %v2072
        %2223 = vst.msk [vmem:[#allocation2 + $0x158] sm:$0xff] %vm2179, %v2074
        %2224 = vst.msk [vmem:[#allocation2 + $0x160] sm:$0xff] %vm2179, %v2076
        %2225 = vst.msk [vmem:[#allocation2 + $0x168] sm:$0xff] %vm2179, %v2078
        %2226 = vst.msk [vmem:[#allocation2 + $0x170] sm:$0xff] %vm2179, %v2080
        %2227 = vst.msk [vmem:[#allocation2 + $0x178] sm:$0xff] %vm2179, %v2082
        %2228 = vst.msk [vmem:[#allocation2 + $0x180] sm:$0xff] %vm2179, %v2084
        %2229 = vst.msk [vmem:[#allocation2 + $0x188] sm:$0xff] %vm2179, %v2086
        %2230 = vst.msk [vmem:[#allocation2 + $0x190] sm:$0xff] %vm2179, %v2088
        %2231 = vst.msk [vmem:[#allocation2 + $0x198] sm:$0xff] %vm2179, %v2090
        %2232 = vst.msk [vmem:[#allocation2 + $0x1a0] sm:$0xff] %vm2179, %v2092
        %2233 = vst.msk [vmem:[#allocation2 + $0x1a8] sm:$0xff] %vm2179, %v2094
        %2234 = vst.msk [vmem:[#allocation2 + $0x1b0] sm:$0xff] %vm2179, %v2096
        %2235 = vst.msk [vmem:[#allocation2 + $0x1b8] sm:$0xff] %vm2179, %v2098
        %2236 = vst.msk [vmem:[#allocation2 + $0x1c0] sm:$0xff] %vm2179, %v2100
        %2237 = vst.msk [vmem:[#allocation2 + $0x1c8] sm:$0xff] %vm2179, %v2102
        %2238 = vst.msk [vmem:[#allocation2 + $0x1d0] sm:$0xff] %vm2179, %v2104
        %2239 = vst.msk [vmem:[#allocation2 + $0x1d8] sm:$0xff] %vm2179, %v2106
        %2240 = vst.msk [vmem:[#allocation2 + $0x1e0] sm:$0xff] %vm2179, %v2108
        %2241 = vst.msk [vmem:[#allocation2 + $0x1e8] sm:$0xff] %vm2179, %v2110
        %2242 = vst.msk [vmem:[#allocation2 + $0x1f0] sm:$0xff] %vm2179, %v2112
        %2243 = vst.msk [vmem:[#allocation2 + $0x1f8] sm:$0xff] %vm2179, %v2114
        %s2244 = sadd.s32 %s184, 2
        %s2245 = smul.u32 %s2244, 40
        %s2246 = scalar_lea.vmem %s182, %s2245
        %v2247 = vld [vmem:[%s2246] sm:$0xff]
        %v2248 = vld [vmem:[%s2246 + $0x8] sm:$0xff]
        %v2249 = vld [vmem:[%s2246 + $0x10] sm:$0xff]
        %v2250 = vld [vmem:[%s2246 + $0x18] sm:$0xff]
        %v2251 = vld [vmem:[%s2246 + $0x28] sm:$0xff]
        %v2252 = vld [vmem:[%s2246 + $0x30] sm:$0xff]
        %v2253 = vld [vmem:[%s2246 + $0x38] sm:$0xff]
        %v2254 = vld [vmem:[%s2246 + $0x40] sm:$0xff]
        %v2255 = vld [vmem:[%s2246 + $0x50] sm:$0xff]
        %v2256 = vld [vmem:[%s2246 + $0x58] sm:$0xff]
        %v2257 = vld [vmem:[%s2246 + $0x60] sm:$0xff]
        %v2258 = vld [vmem:[%s2246 + $0x68] sm:$0xff]
        %v2259 = vld [vmem:[%s2246 + $0x78] sm:$0xff]
        %v2260 = vld [vmem:[%s2246 + $0x80] sm:$0xff]
        %v2261 = vld [vmem:[%s2246 + $0x88] sm:$0xff]
        %v2262 = vld [vmem:[%s2246 + $0x90] sm:$0xff]
        %v2263 = vld [vmem:[%s2246 + $0xa0] sm:$0xff]
        %v2264 = vld [vmem:[%s2246 + $0xa8] sm:$0xff]
        %v2265 = vld [vmem:[%s2246 + $0xb0] sm:$0xff]
        %v2266 = vld [vmem:[%s2246 + $0xb8] sm:$0xff]
        %v2267 = vld [vmem:[%s2246 + $0xc8] sm:$0xff]
        %v2268 = vld [vmem:[%s2246 + $0xd0] sm:$0xff]
        %v2269 = vld [vmem:[%s2246 + $0xd8] sm:$0xff]
        %v2270 = vld [vmem:[%s2246 + $0xe0] sm:$0xff]
        %v2271 = vld [vmem:[%s2246 + $0xf0] sm:$0xff]
        %v2272 = vld [vmem:[%s2246 + $0xf8] sm:$0xff]
        %v2273 = vld [vmem:[%s2246 + $0x100] sm:$0xff]
        %v2274 = vld [vmem:[%s2246 + $0x108] sm:$0xff]
        %v2275 = vld [vmem:[%s2246 + $0x118] sm:$0xff]
        %v2276 = vld [vmem:[%s2246 + $0x120] sm:$0xff]
        %v2277 = vld [vmem:[%s2246 + $0x128] sm:$0xff]
        %v2278 = vld [vmem:[%s2246 + $0x130] sm:$0xff]
        %v2279 = vld [vmem:[%s2246 + $0x140] sm:$0xff]
        %v2280 = vld [vmem:[%s2246 + $0x148] sm:$0xff]
        %v2281 = vld [vmem:[%s2246 + $0x150] sm:$0xff]
        %v2282 = vld [vmem:[%s2246 + $0x158] sm:$0xff]
        %v2283 = vld [vmem:[%s2246 + $0x168] sm:$0xff]
        %v2284 = vld [vmem:[%s2246 + $0x170] sm:$0xff]
        %v2285 = vld [vmem:[%s2246 + $0x178] sm:$0xff]
        %v2286 = vld [vmem:[%s2246 + $0x180] sm:$0xff]
        %v2287 = vld [vmem:[%s2246 + $0x190] sm:$0xff]
        %v2288 = vld [vmem:[%s2246 + $0x198] sm:$0xff]
        %v2289 = vld [vmem:[%s2246 + $0x1a0] sm:$0xff]
        %v2290 = vld [vmem:[%s2246 + $0x1a8] sm:$0xff]
        %v2291 = vld [vmem:[%s2246 + $0x1b8] sm:$0xff]
        %v2292 = vld [vmem:[%s2246 + $0x1c0] sm:$0xff]
        %v2293 = vld [vmem:[%s2246 + $0x1c8] sm:$0xff]
        %v2294 = vld [vmem:[%s2246 + $0x1d0] sm:$0xff]
        %v2295 = vld [vmem:[%s2246 + $0x1e0] sm:$0xff]
        %v2296 = vld [vmem:[%s2246 + $0x1e8] sm:$0xff]
        %v2297 = vld [vmem:[%s2246 + $0x1f0] sm:$0xff]
        %v2298 = vld [vmem:[%s2246 + $0x1f8] sm:$0xff]
        %v2299 = vld [vmem:[%s2246 + $0x208] sm:$0xff]
        %v2300 = vld [vmem:[%s2246 + $0x210] sm:$0xff]
        %v2301 = vld [vmem:[%s2246 + $0x218] sm:$0xff]
        %v2302 = vld [vmem:[%s2246 + $0x220] sm:$0xff]
        %v2303 = vld [vmem:[%s2246 + $0x230] sm:$0xff]
        %v2304 = vld [vmem:[%s2246 + $0x238] sm:$0xff]
        %v2305 = vld [vmem:[%s2246 + $0x240] sm:$0xff]
        %v2306 = vld [vmem:[%s2246 + $0x248] sm:$0xff]
        %v2307 = vld [vmem:[%s2246 + $0x258] sm:$0xff]
        %v2308 = vld [vmem:[%s2246 + $0x260] sm:$0xff]
        %v2309 = vld [vmem:[%s2246 + $0x268] sm:$0xff]
        %v2310 = vld [vmem:[%s2246 + $0x270] sm:$0xff]
        %2375 = vrot.lane.b32.xlu0 %v2247, 24
        %v2376 = vpop.permute.xlu0 %2375
        %2377 = vrot.lane.b32.xlu0 %v2248, 24
        %v2378 = vpop.permute.xlu0 %2377
        %2379 = vrot.lane.b32.xlu0 %v2249, 24
        %v2380 = vpop.permute.xlu0 %2379
        %2381 = vrot.lane.b32.xlu0 %v2250, 24
        %v2382 = vpop.permute.xlu0 %2381
        %2383 = vrot.lane.b32.xlu0 %v2251, 24
        %v2384 = vpop.permute.xlu0 %2383
        %2385 = vrot.lane.b32.xlu0 %v2252, 24
        %v2386 = vpop.permute.xlu0 %2385
        %2387 = vrot.lane.b32.xlu0 %v2253, 24
        %v2388 = vpop.permute.xlu0 %2387
        %2389 = vrot.lane.b32.xlu0 %v2254, 24
        %v2390 = vpop.permute.xlu0 %2389
        %2391 = vrot.lane.b32.xlu0 %v2255, 24
        %v2392 = vpop.permute.xlu0 %2391
        %2393 = vrot.lane.b32.xlu0 %v2256, 24
        %v2394 = vpop.permute.xlu0 %2393
        %2395 = vrot.lane.b32.xlu0 %v2257, 24
        %v2396 = vpop.permute.xlu0 %2395
        %2397 = vrot.lane.b32.xlu0 %v2258, 24
        %v2398 = vpop.permute.xlu0 %2397
        %2399 = vrot.lane.b32.xlu0 %v2259, 24
        %v2400 = vpop.permute.xlu0 %2399
        %2401 = vrot.lane.b32.xlu0 %v2260, 24
        %v2402 = vpop.permute.xlu0 %2401
        %2403 = vrot.lane.b32.xlu0 %v2261, 24
        %v2404 = vpop.permute.xlu0 %2403
        %2405 = vrot.lane.b32.xlu0 %v2262, 24
        %v2406 = vpop.permute.xlu0 %2405
        %2407 = vrot.lane.b32.xlu0 %v2263, 24
        %v2408 = vpop.permute.xlu0 %2407
        %2409 = vrot.lane.b32.xlu0 %v2264, 24
        %v2410 = vpop.permute.xlu0 %2409
        %2411 = vrot.lane.b32.xlu0 %v2265, 24
        %v2412 = vpop.permute.xlu0 %2411
        %2413 = vrot.lane.b32.xlu0 %v2266, 24
        %v2414 = vpop.permute.xlu0 %2413
        %2415 = vrot.lane.b32.xlu0 %v2267, 24
        %v2416 = vpop.permute.xlu0 %2415
        %2417 = vrot.lane.b32.xlu0 %v2268, 24
        %v2418 = vpop.permute.xlu0 %2417
        %2419 = vrot.lane.b32.xlu0 %v2269, 24
        %v2420 = vpop.permute.xlu0 %2419
        %2421 = vrot.lane.b32.xlu0 %v2270, 24
        %v2422 = vpop.permute.xlu0 %2421
        %2423 = vrot.lane.b32.xlu0 %v2271, 24
        %v2424 = vpop.permute.xlu0 %2423
        %2425 = vrot.lane.b32.xlu0 %v2272, 24
        %v2426 = vpop.permute.xlu0 %2425
        %2427 = vrot.lane.b32.xlu0 %v2273, 24
        %v2428 = vpop.permute.xlu0 %2427
        %2429 = vrot.lane.b32.xlu0 %v2274, 24
        %v2430 = vpop.permute.xlu0 %2429
        %2431 = vrot.lane.b32.xlu0 %v2275, 24
        %v2432 = vpop.permute.xlu0 %2431
        %2433 = vrot.lane.b32.xlu0 %v2276, 24
        %v2434 = vpop.permute.xlu0 %2433
        %2435 = vrot.lane.b32.xlu0 %v2277, 24
        %v2436 = vpop.permute.xlu0 %2435
        %2437 = vrot.lane.b32.xlu0 %v2278, 24
        %v2438 = vpop.permute.xlu0 %2437
        %2439 = vrot.lane.b32.xlu0 %v2279, 24
        %v2440 = vpop.permute.xlu0 %2439
        %2441 = vrot.lane.b32.xlu0 %v2280, 24
        %v2442 = vpop.permute.xlu0 %2441
        %2443 = vrot.lane.b32.xlu0 %v2281, 24
        %v2444 = vpop.permute.xlu0 %2443
        %2445 = vrot.lane.b32.xlu0 %v2282, 24
        %v2446 = vpop.permute.xlu0 %2445
        %2447 = vrot.lane.b32.xlu0 %v2283, 24
        %v2448 = vpop.permute.xlu0 %2447
        %2449 = vrot.lane.b32.xlu0 %v2284, 24
        %v2450 = vpop.permute.xlu0 %2449
        %2451 = vrot.lane.b32.xlu0 %v2285, 24
        %v2452 = vpop.permute.xlu0 %2451
        %2453 = vrot.lane.b32.xlu0 %v2286, 24
        %v2454 = vpop.permute.xlu0 %2453
        %2455 = vrot.lane.b32.xlu0 %v2287, 24
        %v2456 = vpop.permute.xlu0 %2455
        %2457 = vrot.lane.b32.xlu0 %v2288, 24
        %v2458 = vpop.permute.xlu0 %2457
        %2459 = vrot.lane.b32.xlu0 %v2289, 24
        %v2460 = vpop.permute.xlu0 %2459
        %2461 = vrot.lane.b32.xlu0 %v2290, 24
        %v2462 = vpop.permute.xlu0 %2461
        %2463 = vrot.lane.b32.xlu0 %v2291, 24
        %v2464 = vpop.permute.xlu0 %2463
        %2465 = vrot.lane.b32.xlu0 %v2292, 24
        %v2466 = vpop.permute.xlu0 %2465
        %2467 = vrot.lane.b32.xlu0 %v2293, 24
        %v2468 = vpop.permute.xlu0 %2467
        %2469 = vrot.lane.b32.xlu0 %v2294, 24
        %v2470 = vpop.permute.xlu0 %2469
        %2471 = vrot.lane.b32.xlu0 %v2295, 24
        %v2472 = vpop.permute.xlu0 %2471
        %2473 = vrot.lane.b32.xlu0 %v2296, 24
        %v2474 = vpop.permute.xlu0 %2473
        %2475 = vrot.lane.b32.xlu0 %v2297, 24
        %v2476 = vpop.permute.xlu0 %2475
        %2477 = vrot.lane.b32.xlu0 %v2298, 24
        %v2478 = vpop.permute.xlu0 %2477
        %2479 = vrot.lane.b32.xlu0 %v2299, 24
        %v2480 = vpop.permute.xlu0 %2479
        %2481 = vrot.lane.b32.xlu0 %v2300, 24
        %v2482 = vpop.permute.xlu0 %2481
        %2483 = vrot.lane.b32.xlu0 %v2301, 24
        %v2484 = vpop.permute.xlu0 %2483
        %2485 = vrot.lane.b32.xlu0 %v2302, 24
        %v2486 = vpop.permute.xlu0 %2485
        %2487 = vrot.lane.b32.xlu0 %v2303, 24
        %v2488 = vpop.permute.xlu0 %2487
        %2489 = vrot.lane.b32.xlu0 %v2304, 24
        %v2490 = vpop.permute.xlu0 %2489
        %2491 = vrot.lane.b32.xlu0 %v2305, 24
        %v2492 = vpop.permute.xlu0 %2491
        %2493 = vrot.lane.b32.xlu0 %v2306, 24
        %v2494 = vpop.permute.xlu0 %2493
        %2495 = vrot.lane.b32.xlu0 %v2307, 24
        %v2496 = vpop.permute.xlu0 %2495
        %2497 = vrot.lane.b32.xlu0 %v2308, 24
        %v2498 = vpop.permute.xlu0 %2497
        %2499 = vrot.lane.b32.xlu0 %v2309, 24
        %v2500 = vpop.permute.xlu0 %2499
        %2501 = vrot.lane.b32.xlu0 %v2310, 24
        %v2502 = vpop.permute.xlu0 %2501
        %vm2567 = vcmask 228544
        %2568 = vst.msk [vmem:[#allocation2] sm:$0xff] %vm2567, %v2376
        %2569 = vst.msk [vmem:[#allocation2 + $0x8] sm:$0xff] %vm2567, %v2378
        %2570 = vst.msk [vmem:[#allocation2 + $0x10] sm:$0xff] %vm2567, %v2380
        %2571 = vst.msk [vmem:[#allocation2 + $0x18] sm:$0xff] %vm2567, %v2382
        %2572 = vst.msk [vmem:[#allocation2 + $0x20] sm:$0xff] %vm2567, %v2384
        %2573 = vst.msk [vmem:[#allocation2 + $0x28] sm:$0xff] %vm2567, %v2386
        %2574 = vst.msk [vmem:[#allocation2 + $0x30] sm:$0xff] %vm2567, %v2388
        %2575 = vst.msk [vmem:[#allocation2 + $0x38] sm:$0xff] %vm2567, %v2390
        %2576 = vst.msk [vmem:[#allocation2 + $0x40] sm:$0xff] %vm2567, %v2392
        %2577 = vst.msk [vmem:[#allocation2 + $0x48] sm:$0xff] %vm2567, %v2394
        %2578 = vst.msk [vmem:[#allocation2 + $0x50] sm:$0xff] %vm2567, %v2396
        %2579 = vst.msk [vmem:[#allocation2 + $0x58] sm:$0xff] %vm2567, %v2398
        %2580 = vst.msk [vmem:[#allocation2 + $0x60] sm:$0xff] %vm2567, %v2400
        %2581 = vst.msk [vmem:[#allocation2 + $0x68] sm:$0xff] %vm2567, %v2402
        %2582 = vst.msk [vmem:[#allocation2 + $0x70] sm:$0xff] %vm2567, %v2404
        %2583 = vst.msk [vmem:[#allocation2 + $0x78] sm:$0xff] %vm2567, %v2406
        %2584 = vst.msk [vmem:[#allocation2 + $0x80] sm:$0xff] %vm2567, %v2408
        %2585 = vst.msk [vmem:[#allocation2 + $0x88] sm:$0xff] %vm2567, %v2410
        %2586 = vst.msk [vmem:[#allocation2 + $0x90] sm:$0xff] %vm2567, %v2412
        %2587 = vst.msk [vmem:[#allocation2 + $0x98] sm:$0xff] %vm2567, %v2414
        %2588 = vst.msk [vmem:[#allocation2 + $0xa0] sm:$0xff] %vm2567, %v2416
        %2589 = vst.msk [vmem:[#allocation2 + $0xa8] sm:$0xff] %vm2567, %v2418
        %2590 = vst.msk [vmem:[#allocation2 + $0xb0] sm:$0xff] %vm2567, %v2420
        %2591 = vst.msk [vmem:[#allocation2 + $0xb8] sm:$0xff] %vm2567, %v2422
        %2592 = vst.msk [vmem:[#allocation2 + $0xc0] sm:$0xff] %vm2567, %v2424
        %2593 = vst.msk [vmem:[#allocation2 + $0xc8] sm:$0xff] %vm2567, %v2426
        %2594 = vst.msk [vmem:[#allocation2 + $0xd0] sm:$0xff] %vm2567, %v2428
        %2595 = vst.msk [vmem:[#allocation2 + $0xd8] sm:$0xff] %vm2567, %v2430
        %2596 = vst.msk [vmem:[#allocation2 + $0xe0] sm:$0xff] %vm2567, %v2432
        %2597 = vst.msk [vmem:[#allocation2 + $0xe8] sm:$0xff] %vm2567, %v2434
        %2598 = vst.msk [vmem:[#allocation2 + $0xf0] sm:$0xff] %vm2567, %v2436
        %2599 = vst.msk [vmem:[#allocation2 + $0xf8] sm:$0xff] %vm2567, %v2438
        %2600 = vst.msk [vmem:[#allocation2 + $0x100] sm:$0xff] %vm2567, %v2440
        %2601 = vst.msk [vmem:[#allocation2 + $0x108] sm:$0xff] %vm2567, %v2442
        %2602 = vst.msk [vmem:[#allocation2 + $0x110] sm:$0xff] %vm2567, %v2444
        %2603 = vst.msk [vmem:[#allocation2 + $0x118] sm:$0xff] %vm2567, %v2446
        %2604 = vst.msk [vmem:[#allocation2 + $0x120] sm:$0xff] %vm2567, %v2448
        %2605 = vst.msk [vmem:[#allocation2 + $0x128] sm:$0xff] %vm2567, %v2450
        %2606 = vst.msk [vmem:[#allocation2 + $0x130] sm:$0xff] %vm2567, %v2452
        %2607 = vst.msk [vmem:[#allocation2 + $0x138] sm:$0xff] %vm2567, %v2454
        %2608 = vst.msk [vmem:[#allocation2 + $0x140] sm:$0xff] %vm2567, %v2456
        %2609 = vst.msk [vmem:[#allocation2 + $0x148] sm:$0xff] %vm2567, %v2458
        %2610 = vst.msk [vmem:[#allocation2 + $0x150] sm:$0xff] %vm2567, %v2460
        %2611 = vst.msk [vmem:[#allocation2 + $0x158] sm:$0xff] %vm2567, %v2462
        %2612 = vst.msk [vmem:[#allocation2 + $0x160] sm:$0xff] %vm2567, %v2464
        %2613 = vst.msk [vmem:[#allocation2 + $0x168] sm:$0xff] %vm2567, %v2466
        %2614 = vst.msk [vmem:[#allocation2 + $0x170] sm:$0xff] %vm2567, %v2468
        %2615 = vst.msk [vmem:[#allocation2 + $0x178] sm:$0xff] %vm2567, %v2470
        %2616 = vst.msk [vmem:[#allocation2 + $0x180] sm:$0xff] %vm2567, %v2472
        %2617 = vst.msk [vmem:[#allocation2 + $0x188] sm:$0xff] %vm2567, %v2474
        %2618 = vst.msk [vmem:[#allocation2 + $0x190] sm:$0xff] %vm2567, %v2476
        %2619 = vst.msk [vmem:[#allocation2 + $0x198] sm:$0xff] %vm2567, %v2478
        %2620 = vst.msk [vmem:[#allocation2 + $0x1a0] sm:$0xff] %vm2567, %v2480
        %2621 = vst.msk [vmem:[#allocation2 + $0x1a8] sm:$0xff] %vm2567, %v2482
        %2622 = vst.msk [vmem:[#allocation2 + $0x1b0] sm:$0xff] %vm2567, %v2484
        %2623 = vst.msk [vmem:[#allocation2 + $0x1b8] sm:$0xff] %vm2567, %v2486
        %2624 = vst.msk [vmem:[#allocation2 + $0x1c0] sm:$0xff] %vm2567, %v2488
        %2625 = vst.msk [vmem:[#allocation2 + $0x1c8] sm:$0xff] %vm2567, %v2490
        %2626 = vst.msk [vmem:[#allocation2 + $0x1d0] sm:$0xff] %vm2567, %v2492
        %2627 = vst.msk [vmem:[#allocation2 + $0x1d8] sm:$0xff] %vm2567, %v2494
        %2628 = vst.msk [vmem:[#allocation2 + $0x1e0] sm:$0xff] %vm2567, %v2496
        %2629 = vst.msk [vmem:[#allocation2 + $0x1e8] sm:$0xff] %vm2567, %v2498
        %2630 = vst.msk [vmem:[#allocation2 + $0x1f0] sm:$0xff] %vm2567, %v2500
        %2631 = vst.msk [vmem:[#allocation2 + $0x1f8] sm:$0xff] %vm2567, %v2502
        %v2632 = vld [vmem:[%s2246 + $0x1] sm:$0xff]
        %v2633 = vld [vmem:[%s2246 + $0x9] sm:$0xff]
        %v2634 = vld [vmem:[%s2246 + $0x11] sm:$0xff]
        %v2635 = vld [vmem:[%s2246 + $0x19] sm:$0xff]
        %v2636 = vld [vmem:[%s2246 + $0x29] sm:$0xff]
        %v2637 = vld [vmem:[%s2246 + $0x31] sm:$0xff]
        %v2638 = vld [vmem:[%s2246 + $0x39] sm:$0xff]
        %v2639 = vld [vmem:[%s2246 + $0x41] sm:$0xff]
        %v2640 = vld [vmem:[%s2246 + $0x51] sm:$0xff]
        %v2641 = vld [vmem:[%s2246 + $0x59] sm:$0xff]
        %v2642 = vld [vmem:[%s2246 + $0x61] sm:$0xff]
        %v2643 = vld [vmem:[%s2246 + $0x69] sm:$0xff]
        %v2644 = vld [vmem:[%s2246 + $0x79] sm:$0xff]
        %v2645 = vld [vmem:[%s2246 + $0x81] sm:$0xff]
        %v2646 = vld [vmem:[%s2246 + $0x89] sm:$0xff]
        %v2647 = vld [vmem:[%s2246 + $0x91] sm:$0xff]
        %v2648 = vld [vmem:[%s2246 + $0xa1] sm:$0xff]
        %v2649 = vld [vmem:[%s2246 + $0xa9] sm:$0xff]
        %v2650 = vld [vmem:[%s2246 + $0xb1] sm:$0xff]
        %v2651 = vld [vmem:[%s2246 + $0xb9] sm:$0xff]
        %v2652 = vld [vmem:[%s2246 + $0xc9] sm:$0xff]
        %v2653 = vld [vmem:[%s2246 + $0xd1] sm:$0xff]
        %v2654 = vld [vmem:[%s2246 + $0xd9] sm:$0xff]
        %v2655 = vld [vmem:[%s2246 + $0xe1] sm:$0xff]
        %v2656 = vld [vmem:[%s2246 + $0xf1] sm:$0xff]
        %v2657 = vld [vmem:[%s2246 + $0xf9] sm:$0xff]
        %v2658 = vld [vmem:[%s2246 + $0x101] sm:$0xff]
        %v2659 = vld [vmem:[%s2246 + $0x109] sm:$0xff]
        %v2660 = vld [vmem:[%s2246 + $0x119] sm:$0xff]
        %v2661 = vld [vmem:[%s2246 + $0x121] sm:$0xff]
        %v2662 = vld [vmem:[%s2246 + $0x129] sm:$0xff]
        %v2663 = vld [vmem:[%s2246 + $0x131] sm:$0xff]
        %v2664 = vld [vmem:[%s2246 + $0x141] sm:$0xff]
        %v2665 = vld [vmem:[%s2246 + $0x149] sm:$0xff]
        %v2666 = vld [vmem:[%s2246 + $0x151] sm:$0xff]
        %v2667 = vld [vmem:[%s2246 + $0x159] sm:$0xff]
        %v2668 = vld [vmem:[%s2246 + $0x169] sm:$0xff]
        %v2669 = vld [vmem:[%s2246 + $0x171] sm:$0xff]
        %v2670 = vld [vmem:[%s2246 + $0x179] sm:$0xff]
        %v2671 = vld [vmem:[%s2246 + $0x181] sm:$0xff]
        %v2672 = vld [vmem:[%s2246 + $0x191] sm:$0xff]
        %v2673 = vld [vmem:[%s2246 + $0x199] sm:$0xff]
        %v2674 = vld [vmem:[%s2246 + $0x1a1] sm:$0xff]
        %v2675 = vld [vmem:[%s2246 + $0x1a9] sm:$0xff]
        %v2676 = vld [vmem:[%s2246 + $0x1b9] sm:$0xff]
        %v2677 = vld [vmem:[%s2246 + $0x1c1] sm:$0xff]
        %v2678 = vld [vmem:[%s2246 + $0x1c9] sm:$0xff]
        %v2679 = vld [vmem:[%s2246 + $0x1d1] sm:$0xff]
        %v2680 = vld [vmem:[%s2246 + $0x1e1] sm:$0xff]
        %v2681 = vld [vmem:[%s2246 + $0x1e9] sm:$0xff]
        %v2682 = vld [vmem:[%s2246 + $0x1f1] sm:$0xff]
        %v2683 = vld [vmem:[%s2246 + $0x1f9] sm:$0xff]
        %v2684 = vld [vmem:[%s2246 + $0x209] sm:$0xff]
        %v2685 = vld [vmem:[%s2246 + $0x211] sm:$0xff]
        %v2686 = vld [vmem:[%s2246 + $0x219] sm:$0xff]
        %v2687 = vld [vmem:[%s2246 + $0x221] sm:$0xff]
        %v2688 = vld [vmem:[%s2246 + $0x231] sm:$0xff]
        %v2689 = vld [vmem:[%s2246 + $0x239] sm:$0xff]
        %v2690 = vld [vmem:[%s2246 + $0x241] sm:$0xff]
        %v2691 = vld [vmem:[%s2246 + $0x249] sm:$0xff]
        %v2692 = vld [vmem:[%s2246 + $0x259] sm:$0xff]
        %v2693 = vld [vmem:[%s2246 + $0x261] sm:$0xff]
        %v2694 = vld [vmem:[%s2246 + $0x269] sm:$0xff]
        %v2695 = vld [vmem:[%s2246 + $0x271] sm:$0xff]
        %2760 = vrot.lane.b32.xlu0 %v2632, 28
        %v2761 = vpop.permute.xlu0 %2760
        %2762 = vrot.lane.b32.xlu0 %v2633, 28
        %v2763 = vpop.permute.xlu0 %2762
        %2764 = vrot.lane.b32.xlu0 %v2634, 28
        %v2765 = vpop.permute.xlu0 %2764
        %2766 = vrot.lane.b32.xlu0 %v2635, 28
        %v2767 = vpop.permute.xlu0 %2766
        %2768 = vrot.lane.b32.xlu0 %v2636, 28
        %v2769 = vpop.permute.xlu0 %2768
        %2770 = vrot.lane.b32.xlu0 %v2637, 28
        %v2771 = vpop.permute.xlu0 %2770
        %2772 = vrot.lane.b32.xlu0 %v2638, 28
        %v2773 = vpop.permute.xlu0 %2772
        %2774 = vrot.lane.b32.xlu0 %v2639, 28
        %v2775 = vpop.permute.xlu0 %2774
        %2776 = vrot.lane.b32.xlu0 %v2640, 28
        %v2777 = vpop.permute.xlu0 %2776
        %2778 = vrot.lane.b32.xlu0 %v2641, 28
        %v2779 = vpop.permute.xlu0 %2778
        %2780 = vrot.lane.b32.xlu0 %v2642, 28
        %v2781 = vpop.permute.xlu0 %2780
        %2782 = vrot.lane.b32.xlu0 %v2643, 28
        %v2783 = vpop.permute.xlu0 %2782
        %2784 = vrot.lane.b32.xlu0 %v2644, 28
        %v2785 = vpop.permute.xlu0 %2784
        %2786 = vrot.lane.b32.xlu0 %v2645, 28
        %v2787 = vpop.permute.xlu0 %2786
        %2788 = vrot.lane.b32.xlu0 %v2646, 28
        %v2789 = vpop.permute.xlu0 %2788
        %2790 = vrot.lane.b32.xlu0 %v2647, 28
        %v2791 = vpop.permute.xlu0 %2790
        %2792 = vrot.lane.b32.xlu0 %v2648, 28
        %v2793 = vpop.permute.xlu0 %2792
        %2794 = vrot.lane.b32.xlu0 %v2649, 28
        %v2795 = vpop.permute.xlu0 %2794
        %2796 = vrot.lane.b32.xlu0 %v2650, 28
        %v2797 = vpop.permute.xlu0 %2796
        %2798 = vrot.lane.b32.xlu0 %v2651, 28
        %v2799 = vpop.permute.xlu0 %2798
        %2800 = vrot.lane.b32.xlu0 %v2652, 28
        %v2801 = vpop.permute.xlu0 %2800
        %2802 = vrot.lane.b32.xlu0 %v2653, 28
        %v2803 = vpop.permute.xlu0 %2802
        %2804 = vrot.lane.b32.xlu0 %v2654, 28
        %v2805 = vpop.permute.xlu0 %2804
        %2806 = vrot.lane.b32.xlu0 %v2655, 28
        %v2807 = vpop.permute.xlu0 %2806
        %2808 = vrot.lane.b32.xlu0 %v2656, 28
        %v2809 = vpop.permute.xlu0 %2808
        %2810 = vrot.lane.b32.xlu0 %v2657, 28
        %v2811 = vpop.permute.xlu0 %2810
        %2812 = vrot.lane.b32.xlu0 %v2658, 28
        %v2813 = vpop.permute.xlu0 %2812
        %2814 = vrot.lane.b32.xlu0 %v2659, 28
        %v2815 = vpop.permute.xlu0 %2814
        %2816 = vrot.lane.b32.xlu0 %v2660, 28
        %v2817 = vpop.permute.xlu0 %2816
        %2818 = vrot.lane.b32.xlu0 %v2661, 28
        %v2819 = vpop.permute.xlu0 %2818
        %2820 = vrot.lane.b32.xlu0 %v2662, 28
        %v2821 = vpop.permute.xlu0 %2820
        %2822 = vrot.lane.b32.xlu0 %v2663, 28
        %v2823 = vpop.permute.xlu0 %2822
        %2824 = vrot.lane.b32.xlu0 %v2664, 28
        %v2825 = vpop.permute.xlu0 %2824
        %2826 = vrot.lane.b32.xlu0 %v2665, 28
        %v2827 = vpop.permute.xlu0 %2826
        %2828 = vrot.lane.b32.xlu0 %v2666, 28
        %v2829 = vpop.permute.xlu0 %2828
        %2830 = vrot.lane.b32.xlu0 %v2667, 28
        %v2831 = vpop.permute.xlu0 %2830
        %2832 = vrot.lane.b32.xlu0 %v2668, 28
        %v2833 = vpop.permute.xlu0 %2832
        %2834 = vrot.lane.b32.xlu0 %v2669, 28
        %v2835 = vpop.permute.xlu0 %2834
        %2836 = vrot.lane.b32.xlu0 %v2670, 28
        %v2837 = vpop.permute.xlu0 %2836
        %2838 = vrot.lane.b32.xlu0 %v2671, 28
        %v2839 = vpop.permute.xlu0 %2838
        %2840 = vrot.lane.b32.xlu0 %v2672, 28
        %v2841 = vpop.permute.xlu0 %2840
        %2842 = vrot.lane.b32.xlu0 %v2673, 28
        %v2843 = vpop.permute.xlu0 %2842
        %2844 = vrot.lane.b32.xlu0 %v2674, 28
        %v2845 = vpop.permute.xlu0 %2844
        %2846 = vrot.lane.b32.xlu0 %v2675, 28
        %v2847 = vpop.permute.xlu0 %2846
        %2848 = vrot.lane.b32.xlu0 %v2676, 28
        %v2849 = vpop.permute.xlu0 %2848
        %2850 = vrot.lane.b32.xlu0 %v2677, 28
        %v2851 = vpop.permute.xlu0 %2850
        %2852 = vrot.lane.b32.xlu0 %v2678, 28
        %v2853 = vpop.permute.xlu0 %2852
        %2854 = vrot.lane.b32.xlu0 %v2679, 28
        %v2855 = vpop.permute.xlu0 %2854
        %2856 = vrot.lane.b32.xlu0 %v2680, 28
        %v2857 = vpop.permute.xlu0 %2856
        %2858 = vrot.lane.b32.xlu0 %v2681, 28
        %v2859 = vpop.permute.xlu0 %2858
        %2860 = vrot.lane.b32.xlu0 %v2682, 28
        %v2861 = vpop.permute.xlu0 %2860
        %2862 = vrot.lane.b32.xlu0 %v2683, 28
        %v2863 = vpop.permute.xlu0 %2862
        %2864 = vrot.lane.b32.xlu0 %v2684, 28
        %v2865 = vpop.permute.xlu0 %2864
        %2866 = vrot.lane.b32.xlu0 %v2685, 28
        %v2867 = vpop.permute.xlu0 %2866
        %2868 = vrot.lane.b32.xlu0 %v2686, 28
        %v2869 = vpop.permute.xlu0 %2868
        %2870 = vrot.lane.b32.xlu0 %v2687, 28
        %v2871 = vpop.permute.xlu0 %2870
        %2872 = vrot.lane.b32.xlu0 %v2688, 28
        %v2873 = vpop.permute.xlu0 %2872
        %2874 = vrot.lane.b32.xlu0 %v2689, 28
        %v2875 = vpop.permute.xlu0 %2874
        %2876 = vrot.lane.b32.xlu0 %v2690, 28
        %v2877 = vpop.permute.xlu0 %2876
        %2878 = vrot.lane.b32.xlu0 %v2691, 28
        %v2879 = vpop.permute.xlu0 %2878
        %2880 = vrot.lane.b32.xlu0 %v2692, 28
        %v2881 = vpop.permute.xlu0 %2880
        %2882 = vrot.lane.b32.xlu0 %v2693, 28
        %v2883 = vpop.permute.xlu0 %2882
        %2884 = vrot.lane.b32.xlu0 %v2694, 28
        %v2885 = vpop.permute.xlu0 %2884
        %2886 = vrot.lane.b32.xlu0 %v2695, 28
        %v2887 = vpop.permute.xlu0 %2886
        %vm2952 = vcmask 261344
        %2953 = vst.msk [vmem:[#allocation2] sm:$0xff] %vm2952, %v2761
        %2954 = vst.msk [vmem:[#allocation2 + $0x8] sm:$0xff] %vm2952, %v2763
        %2955 = vst.msk [vmem:[#allocation2 + $0x10] sm:$0xff] %vm2952, %v2765
        %2956 = vst.msk [vmem:[#allocation2 + $0x18] sm:$0xff] %vm2952, %v2767
        %2957 = vst.msk [vmem:[#allocation2 + $0x20] sm:$0xff] %vm2952, %v2769
        %2958 = vst.msk [vmem:[#allocation2 + $0x28] sm:$0xff] %vm2952, %v2771
        %2959 = vst.msk [vmem:[#allocation2 + $0x30] sm:$0xff] %vm2952, %v2773
        %2960 = vst.msk [vmem:[#allocation2 + $0x38] sm:$0xff] %vm2952, %v2775
        %2961 = vst.msk [vmem:[#allocation2 + $0x40] sm:$0xff] %vm2952, %v2777
        %2962 = vst.msk [vmem:[#allocation2 + $0x48] sm:$0xff] %vm2952, %v2779
        %2963 = vst.msk [vmem:[#allocation2 + $0x50] sm:$0xff] %vm2952, %v2781
        %2964 = vst.msk [vmem:[#allocation2 + $0x58] sm:$0xff] %vm2952, %v2783
        %2965 = vst.msk [vmem:[#allocation2 + $0x60] sm:$0xff] %vm2952, %v2785
        %2966 = vst.msk [vmem:[#allocation2 + $0x68] sm:$0xff] %vm2952, %v2787
        %2967 = vst.msk [vmem:[#allocation2 + $0x70] sm:$0xff] %vm2952, %v2789
        %2968 = vst.msk [vmem:[#allocation2 + $0x78] sm:$0xff] %vm2952, %v2791
        %2969 = vst.msk [vmem:[#allocation2 + $0x80] sm:$0xff] %vm2952, %v2793
        %2970 = vst.msk [vmem:[#allocation2 + $0x88] sm:$0xff] %vm2952, %v2795
        %2971 = vst.msk [vmem:[#allocation2 + $0x90] sm:$0xff] %vm2952, %v2797
        %2972 = vst.msk [vmem:[#allocation2 + $0x98] sm:$0xff] %vm2952, %v2799
        %2973 = vst.msk [vmem:[#allocation2 + $0xa0] sm:$0xff] %vm2952, %v2801
        %2974 = vst.msk [vmem:[#allocation2 + $0xa8] sm:$0xff] %vm2952, %v2803
        %2975 = vst.msk [vmem:[#allocation2 + $0xb0] sm:$0xff] %vm2952, %v2805
        %2976 = vst.msk [vmem:[#allocation2 + $0xb8] sm:$0xff] %vm2952, %v2807
        %2977 = vst.msk [vmem:[#allocation2 + $0xc0] sm:$0xff] %vm2952, %v2809
        %2978 = vst.msk [vmem:[#allocation2 + $0xc8] sm:$0xff] %vm2952, %v2811
        %2979 = vst.msk [vmem:[#allocation2 + $0xd0] sm:$0xff] %vm2952, %v2813
        %2980 = vst.msk [vmem:[#allocation2 + $0xd8] sm:$0xff] %vm2952, %v2815
        %2981 = vst.msk [vmem:[#allocation2 + $0xe0] sm:$0xff] %vm2952, %v2817
        %2982 = vst.msk [vmem:[#allocation2 + $0xe8] sm:$0xff] %vm2952, %v2819
        %2983 = vst.msk [vmem:[#allocation2 + $0xf0] sm:$0xff] %vm2952, %v2821
        %2984 = vst.msk [vmem:[#allocation2 + $0xf8] sm:$0xff] %vm2952, %v2823
        %2985 = vst.msk [vmem:[#allocation2 + $0x100] sm:$0xff] %vm2952, %v2825
        %2986 = vst.msk [vmem:[#allocation2 + $0x108] sm:$0xff] %vm2952, %v2827
        %2987 = vst.msk [vmem:[#allocation2 + $0x110] sm:$0xff] %vm2952, %v2829
        %2988 = vst.msk [vmem:[#allocation2 + $0x118] sm:$0xff] %vm2952, %v2831
        %2989 = vst.msk [vmem:[#allocation2 + $0x120] sm:$0xff] %vm2952, %v2833
        %2990 = vst.msk [vmem:[#allocation2 + $0x128] sm:$0xff] %vm2952, %v2835
        %2991 = vst.msk [vmem:[#allocation2 + $0x130] sm:$0xff] %vm2952, %v2837
        %2992 = vst.msk [vmem:[#allocation2 + $0x138] sm:$0xff] %vm2952, %v2839
        %2993 = vst.msk [vmem:[#allocation2 + $0x140] sm:$0xff] %vm2952, %v2841
        %2994 = vst.msk [vmem:[#allocation2 + $0x148] sm:$0xff] %vm2952, %v2843
        %2995 = vst.msk [vmem:[#allocation2 + $0x150] sm:$0xff] %vm2952, %v2845
        %2996 = vst.msk [vmem:[#allocation2 + $0x158] sm:$0xff] %vm2952, %v2847
        %2997 = vst.msk [vmem:[#allocation2 + $0x160] sm:$0xff] %vm2952, %v2849
        %2998 = vst.msk [vmem:[#allocation2 + $0x168] sm:$0xff] %vm2952, %v2851
        %2999 = vst.msk [vmem:[#allocation2 + $0x170] sm:$0xff] %vm2952, %v2853
        %3000 = vst.msk [vmem:[#allocation2 + $0x178] sm:$0xff] %vm2952, %v2855
        %3001 = vst.msk [vmem:[#allocation2 + $0x180] sm:$0xff] %vm2952, %v2857
        %3002 = vst.msk [vmem:[#allocation2 + $0x188] sm:$0xff] %vm2952, %v2859
        %3003 = vst.msk [vmem:[#allocation2 + $0x190] sm:$0xff] %vm2952, %v2861
        %3004 = vst.msk [vmem:[#allocation2 + $0x198] sm:$0xff] %vm2952, %v2863
        %3005 = vst.msk [vmem:[#allocation2 + $0x1a0] sm:$0xff] %vm2952, %v2865
        %3006 = vst.msk [vmem:[#allocation2 + $0x1a8] sm:$0xff] %vm2952, %v2867
        %3007 = vst.msk [vmem:[#allocation2 + $0x1b0] sm:$0xff] %vm2952, %v2869
        %3008 = vst.msk [vmem:[#allocation2 + $0x1b8] sm:$0xff] %vm2952, %v2871
        %3009 = vst.msk [vmem:[#allocation2 + $0x1c0] sm:$0xff] %vm2952, %v2873
        %3010 = vst.msk [vmem:[#allocation2 + $0x1c8] sm:$0xff] %vm2952, %v2875
        %3011 = vst.msk [vmem:[#allocation2 + $0x1d0] sm:$0xff] %vm2952, %v2877
        %3012 = vst.msk [vmem:[#allocation2 + $0x1d8] sm:$0xff] %vm2952, %v2879
        %3013 = vst.msk [vmem:[#allocation2 + $0x1e0] sm:$0xff] %vm2952, %v2881
        %3014 = vst.msk [vmem:[#allocation2 + $0x1e8] sm:$0xff] %vm2952, %v2883
        %3015 = vst.msk [vmem:[#allocation2 + $0x1f0] sm:$0xff] %vm2952, %v2885
        %3016 = vst.msk [vmem:[#allocation2 + $0x1f8] sm:$0xff] %vm2952, %v2887
        %v3017 = vld [vmem:[%s2246 + $0x2] sm:$0xff]
        %v3018 = vld [vmem:[%s2246 + $0xa] sm:$0xff]
        %v3019 = vld [vmem:[%s2246 + $0x12] sm:$0xff]
        %v3020 = vld [vmem:[%s2246 + $0x1a] sm:$0xff]
        %v3021 = vld [vmem:[%s2246 + $0x2a] sm:$0xff]
        %v3022 = vld [vmem:[%s2246 + $0x32] sm:$0xff]
        %v3023 = vld [vmem:[%s2246 + $0x3a] sm:$0xff]
        %v3024 = vld [vmem:[%s2246 + $0x42] sm:$0xff]
        %v3025 = vld [vmem:[%s2246 + $0x52] sm:$0xff]
        %v3026 = vld [vmem:[%s2246 + $0x5a] sm:$0xff]
        %v3027 = vld [vmem:[%s2246 + $0x62] sm:$0xff]
        %v3028 = vld [vmem:[%s2246 + $0x6a] sm:$0xff]
        %v3029 = vld [vmem:[%s2246 + $0x7a] sm:$0xff]
        %v3030 = vld [vmem:[%s2246 + $0x82] sm:$0xff]
        %v3031 = vld [vmem:[%s2246 + $0x8a] sm:$0xff]
        %v3032 = vld [vmem:[%s2246 + $0x92] sm:$0xff]
        %v3033 = vld [vmem:[%s2246 + $0xa2] sm:$0xff]
        %v3034 = vld [vmem:[%s2246 + $0xaa] sm:$0xff]
        %v3035 = vld [vmem:[%s2246 + $0xb2] sm:$0xff]
        %v3036 = vld [vmem:[%s2246 + $0xba] sm:$0xff]
        %v3037 = vld [vmem:[%s2246 + $0xca] sm:$0xff]
        %v3038 = vld [vmem:[%s2246 + $0xd2] sm:$0xff]
        %v3039 = vld [vmem:[%s2246 + $0xda] sm:$0xff]
        %v3040 = vld [vmem:[%s2246 + $0xe2] sm:$0xff]
        %v3041 = vld [vmem:[%s2246 + $0xf2] sm:$0xff]
        %v3042 = vld [vmem:[%s2246 + $0xfa] sm:$0xff]
        %v3043 = vld [vmem:[%s2246 + $0x102] sm:$0xff]
        %v3044 = vld [vmem:[%s2246 + $0x10a] sm:$0xff]
        %v3045 = vld [vmem:[%s2246 + $0x11a] sm:$0xff]
        %v3046 = vld [vmem:[%s2246 + $0x122] sm:$0xff]
        %v3047 = vld [vmem:[%s2246 + $0x12a] sm:$0xff]
        %v3048 = vld [vmem:[%s2246 + $0x132] sm:$0xff]
        %v3049 = vld [vmem:[%s2246 + $0x142] sm:$0xff]
        %v3050 = vld [vmem:[%s2246 + $0x14a] sm:$0xff]
        %v3051 = vld [vmem:[%s2246 + $0x152] sm:$0xff]
        %v3052 = vld [vmem:[%s2246 + $0x15a] sm:$0xff]
        %v3053 = vld [vmem:[%s2246 + $0x16a] sm:$0xff]
        %v3054 = vld [vmem:[%s2246 + $0x172] sm:$0xff]
        %v3055 = vld [vmem:[%s2246 + $0x17a] sm:$0xff]
        %v3056 = vld [vmem:[%s2246 + $0x182] sm:$0xff]
        %v3057 = vld [vmem:[%s2246 + $0x192] sm:$0xff]
        %v3058 = vld [vmem:[%s2246 + $0x19a] sm:$0xff]
        %v3059 = vld [vmem:[%s2246 + $0x1a2] sm:$0xff]
        %v3060 = vld [vmem:[%s2246 + $0x1aa] sm:$0xff]
        %v3061 = vld [vmem:[%s2246 + $0x1ba] sm:$0xff]
        %v3062 = vld [vmem:[%s2246 + $0x1c2] sm:$0xff]
        %v3063 = vld [vmem:[%s2246 + $0x1ca] sm:$0xff]
        %v3064 = vld [vmem:[%s2246 + $0x1d2] sm:$0xff]
        %v3065 = vld [vmem:[%s2246 + $0x1e2] sm:$0xff]
        %v3066 = vld [vmem:[%s2246 + $0x1ea] sm:$0xff]
        %v3067 = vld [vmem:[%s2246 + $0x1f2] sm:$0xff]
        %v3068 = vld [vmem:[%s2246 + $0x1fa] sm:$0xff]
        %v3069 = vld [vmem:[%s2246 + $0x20a] sm:$0xff]
        %v3070 = vld [vmem:[%s2246 + $0x212] sm:$0xff]
        %v3071 = vld [vmem:[%s2246 + $0x21a] sm:$0xff]
        %v3072 = vld [vmem:[%s2246 + $0x222] sm:$0xff]
        %v3073 = vld [vmem:[%s2246 + $0x232] sm:$0xff]
        %v3074 = vld [vmem:[%s2246 + $0x23a] sm:$0xff]
        %v3075 = vld [vmem:[%s2246 + $0x242] sm:$0xff]
        %v3076 = vld [vmem:[%s2246 + $0x24a] sm:$0xff]
        %v3077 = vld [vmem:[%s2246 + $0x25a] sm:$0xff]
        %v3078 = vld [vmem:[%s2246 + $0x262] sm:$0xff]
        %v3079 = vld [vmem:[%s2246 + $0x26a] sm:$0xff]
        %v3080 = vld [vmem:[%s2246 + $0x272] sm:$0xff]
        %3145 = vrot.lane.b32.xlu0 %v3017, 32
        %v3146 = vpop.permute.xlu0 %3145
        %3147 = vrot.lane.b32.xlu0 %v3018, 32
        %v3148 = vpop.permute.xlu0 %3147
        %3149 = vrot.lane.b32.xlu0 %v3019, 32
        %v3150 = vpop.permute.xlu0 %3149
        %3151 = vrot.lane.b32.xlu0 %v3020, 32
        %v3152 = vpop.permute.xlu0 %3151
        %3153 = vrot.lane.b32.xlu0 %v3021, 32
        %v3154 = vpop.permute.xlu0 %3153
        %3155 = vrot.lane.b32.xlu0 %v3022, 32
        %v3156 = vpop.permute.xlu0 %3155
        %3157 = vrot.lane.b32.xlu0 %v3023, 32
        %v3158 = vpop.permute.xlu0 %3157
        %3159 = vrot.lane.b32.xlu0 %v3024, 32
        %v3160 = vpop.permute.xlu0 %3159
        %3161 = vrot.lane.b32.xlu0 %v3025, 32
        %v3162 = vpop.permute.xlu0 %3161
        %3163 = vrot.lane.b32.xlu0 %v3026, 32
        %v3164 = vpop.permute.xlu0 %3163
        %3165 = vrot.lane.b32.xlu0 %v3027, 32
        %v3166 = vpop.permute.xlu0 %3165
        %3167 = vrot.lane.b32.xlu0 %v3028, 32
        %v3168 = vpop.permute.xlu0 %3167
        %3169 = vrot.lane.b32.xlu0 %v3029, 32
        %v3170 = vpop.permute.xlu0 %3169
        %3171 = vrot.lane.b32.xlu0 %v3030, 32
        %v3172 = vpop.permute.xlu0 %3171
        %3173 = vrot.lane.b32.xlu0 %v3031, 32
        %v3174 = vpop.permute.xlu0 %3173
        %3175 = vrot.lane.b32.xlu0 %v3032, 32
        %v3176 = vpop.permute.xlu0 %3175
        %3177 = vrot.lane.b32.xlu0 %v3033, 32
        %v3178 = vpop.permute.xlu0 %3177
        %3179 = vrot.lane.b32.xlu0 %v3034, 32
        %v3180 = vpop.permute.xlu0 %3179
        %3181 = vrot.lane.b32.xlu0 %v3035, 32
        %v3182 = vpop.permute.xlu0 %3181
        %3183 = vrot.lane.b32.xlu0 %v3036, 32
        %v3184 = vpop.permute.xlu0 %3183
        %3185 = vrot.lane.b32.xlu0 %v3037, 32
        %v3186 = vpop.permute.xlu0 %3185
        %3187 = vrot.lane.b32.xlu0 %v3038, 32
        %v3188 = vpop.permute.xlu0 %3187
        %3189 = vrot.lane.b32.xlu0 %v3039, 32
        %v3190 = vpop.permute.xlu0 %3189
        %3191 = vrot.lane.b32.xlu0 %v3040, 32
        %v3192 = vpop.permute.xlu0 %3191
        %3193 = vrot.lane.b32.xlu0 %v3041, 32
        %v3194 = vpop.permute.xlu0 %3193
        %3195 = vrot.lane.b32.xlu0 %v3042, 32
        %v3196 = vpop.permute.xlu0 %3195
        %3197 = vrot.lane.b32.xlu0 %v3043, 32
        %v3198 = vpop.permute.xlu0 %3197
        %3199 = vrot.lane.b32.xlu0 %v3044, 32
        %v3200 = vpop.permute.xlu0 %3199
        %3201 = vrot.lane.b32.xlu0 %v3045, 32
        %v3202 = vpop.permute.xlu0 %3201
        %3203 = vrot.lane.b32.xlu0 %v3046, 32
        %v3204 = vpop.permute.xlu0 %3203
        %3205 = vrot.lane.b32.xlu0 %v3047, 32
        %v3206 = vpop.permute.xlu0 %3205
        %3207 = vrot.lane.b32.xlu0 %v3048, 32
        %v3208 = vpop.permute.xlu0 %3207
        %3209 = vrot.lane.b32.xlu0 %v3049, 32
        %v3210 = vpop.permute.xlu0 %3209
        %3211 = vrot.lane.b32.xlu0 %v3050, 32
        %v3212 = vpop.permute.xlu0 %3211
        %3213 = vrot.lane.b32.xlu0 %v3051, 32
        %v3214 = vpop.permute.xlu0 %3213
        %3215 = vrot.lane.b32.xlu0 %v3052, 32
        %v3216 = vpop.permute.xlu0 %3215
        %3217 = vrot.lane.b32.xlu0 %v3053, 32
        %v3218 = vpop.permute.xlu0 %3217
        %3219 = vrot.lane.b32.xlu0 %v3054, 32
        %v3220 = vpop.permute.xlu0 %3219
        %3221 = vrot.lane.b32.xlu0 %v3055, 32
        %v3222 = vpop.permute.xlu0 %3221
        %3223 = vrot.lane.b32.xlu0 %v3056, 32
        %v3224 = vpop.permute.xlu0 %3223
        %3225 = vrot.lane.b32.xlu0 %v3057, 32
        %v3226 = vpop.permute.xlu0 %3225
        %3227 = vrot.lane.b32.xlu0 %v3058, 32
        %v3228 = vpop.permute.xlu0 %3227
        %3229 = vrot.lane.b32.xlu0 %v3059, 32
        %v3230 = vpop.permute.xlu0 %3229
        %3231 = vrot.lane.b32.xlu0 %v3060, 32
        %v3232 = vpop.permute.xlu0 %3231
        %3233 = vrot.lane.b32.xlu0 %v3061, 32
        %v3234 = vpop.permute.xlu0 %3233
        %3235 = vrot.lane.b32.xlu0 %v3062, 32
        %v3236 = vpop.permute.xlu0 %3235
        %3237 = vrot.lane.b32.xlu0 %v3063, 32
        %v3238 = vpop.permute.xlu0 %3237
        %3239 = vrot.lane.b32.xlu0 %v3064, 32
        %v3240 = vpop.permute.xlu0 %3239
        %3241 = vrot.lane.b32.xlu0 %v3065, 32
        %v3242 = vpop.permute.xlu0 %3241
        %3243 = vrot.lane.b32.xlu0 %v3066, 32
        %v3244 = vpop.permute.xlu0 %3243
        %3245 = vrot.lane.b32.xlu0 %v3067, 32
        %v3246 = vpop.permute.xlu0 %3245
        %3247 = vrot.lane.b32.xlu0 %v3068, 32
        %v3248 = vpop.permute.xlu0 %3247
        %3249 = vrot.lane.b32.xlu0 %v3069, 32
        %v3250 = vpop.permute.xlu0 %3249
        %3251 = vrot.lane.b32.xlu0 %v3070, 32
        %v3252 = vpop.permute.xlu0 %3251
        %3253 = vrot.lane.b32.xlu0 %v3071, 32
        %v3254 = vpop.permute.xlu0 %3253
        %3255 = vrot.lane.b32.xlu0 %v3072, 32
        %v3256 = vpop.permute.xlu0 %3255
        %3257 = vrot.lane.b32.xlu0 %v3073, 32
        %v3258 = vpop.permute.xlu0 %3257
        %3259 = vrot.lane.b32.xlu0 %v3074, 32
        %v3260 = vpop.permute.xlu0 %3259
        %3261 = vrot.lane.b32.xlu0 %v3075, 32
        %v3262 = vpop.permute.xlu0 %3261
        %3263 = vrot.lane.b32.xlu0 %v3076, 32
        %v3264 = vpop.permute.xlu0 %3263
        %3265 = vrot.lane.b32.xlu0 %v3077, 32
        %v3266 = vpop.permute.xlu0 %3265
        %3267 = vrot.lane.b32.xlu0 %v3078, 32
        %v3268 = vpop.permute.xlu0 %3267
        %3269 = vrot.lane.b32.xlu0 %v3079, 32
        %v3270 = vpop.permute.xlu0 %3269
        %3271 = vrot.lane.b32.xlu0 %v3080, 32
        %v3272 = vpop.permute.xlu0 %3271
        %vm3337 = vcmask 294144
        %3338 = vst.msk [vmem:[#allocation2] sm:$0xff] %vm3337, %v3146
        %3339 = vst.msk [vmem:[#allocation2 + $0x8] sm:$0xff] %vm3337, %v3148
        %3340 = vst.msk [vmem:[#allocation2 + $0x10] sm:$0xff] %vm3337, %v3150
        %3341 = vst.msk [vmem:[#allocation2 + $0x18] sm:$0xff] %vm3337, %v3152
        %3342 = vst.msk [vmem:[#allocation2 + $0x20] sm:$0xff] %vm3337, %v3154
        %3343 = vst.msk [vmem:[#allocation2 + $0x28] sm:$0xff] %vm3337, %v3156
        %3344 = vst.msk [vmem:[#allocation2 + $0x30] sm:$0xff] %vm3337, %v3158
        %3345 = vst.msk [vmem:[#allocation2 + $0x38] sm:$0xff] %vm3337, %v3160
        %3346 = vst.msk [vmem:[#allocation2 + $0x40] sm:$0xff] %vm3337, %v3162
        %3347 = vst.msk [vmem:[#allocation2 + $0x48] sm:$0xff] %vm3337, %v3164
        %3348 = vst.msk [vmem:[#allocation2 + $0x50] sm:$0xff] %vm3337, %v3166
        %3349 = vst.msk [vmem:[#allocation2 + $0x58] sm:$0xff] %vm3337, %v3168
        %3350 = vst.msk [vmem:[#allocation2 + $0x60] sm:$0xff] %vm3337, %v3170
        %3351 = vst.msk [vmem:[#allocation2 + $0x68] sm:$0xff] %vm3337, %v3172
        %3352 = vst.msk [vmem:[#allocation2 + $0x70] sm:$0xff] %vm3337, %v3174
        %3353 = vst.msk [vmem:[#allocation2 + $0x78] sm:$0xff] %vm3337, %v3176
        %3354 = vst.msk [vmem:[#allocation2 + $0x80] sm:$0xff] %vm3337, %v3178
        %3355 = vst.msk [vmem:[#allocation2 + $0x88] sm:$0xff] %vm3337, %v3180
        %3356 = vst.msk [vmem:[#allocation2 + $0x90] sm:$0xff] %vm3337, %v3182
        %3357 = vst.msk [vmem:[#allocation2 + $0x98] sm:$0xff] %vm3337, %v3184
        %3358 = vst.msk [vmem:[#allocation2 + $0xa0] sm:$0xff] %vm3337, %v3186
        %3359 = vst.msk [vmem:[#allocation2 + $0xa8] sm:$0xff] %vm3337, %v3188
        %3360 = vst.msk [vmem:[#allocation2 + $0xb0] sm:$0xff] %vm3337, %v3190
        %3361 = vst.msk [vmem:[#allocation2 + $0xb8] sm:$0xff] %vm3337, %v3192
        %3362 = vst.msk [vmem:[#allocation2 + $0xc0] sm:$0xff] %vm3337, %v3194
        %3363 = vst.msk [vmem:[#allocation2 + $0xc8] sm:$0xff] %vm3337, %v3196
        %3364 = vst.msk [vmem:[#allocation2 + $0xd0] sm:$0xff] %vm3337, %v3198
        %3365 = vst.msk [vmem:[#allocation2 + $0xd8] sm:$0xff] %vm3337, %v3200
        %3366 = vst.msk [vmem:[#allocation2 + $0xe0] sm:$0xff] %vm3337, %v3202
        %3367 = vst.msk [vmem:[#allocation2 + $0xe8] sm:$0xff] %vm3337, %v3204
        %3368 = vst.msk [vmem:[#allocation2 + $0xf0] sm:$0xff] %vm3337, %v3206
        %3369 = vst.msk [vmem:[#allocation2 + $0xf8] sm:$0xff] %vm3337, %v3208
        %3370 = vst.msk [vmem:[#allocation2 + $0x100] sm:$0xff] %vm3337, %v3210
        %3371 = vst.msk [vmem:[#allocation2 + $0x108] sm:$0xff] %vm3337, %v3212
        %3372 = vst.msk [vmem:[#allocation2 + $0x110] sm:$0xff] %vm3337, %v3214
        %3373 = vst.msk [vmem:[#allocation2 + $0x118] sm:$0xff] %vm3337, %v3216
        %3374 = vst.msk [vmem:[#allocation2 + $0x120] sm:$0xff] %vm3337, %v3218
        %3375 = vst.msk [vmem:[#allocation2 + $0x128] sm:$0xff] %vm3337, %v3220
        %3376 = vst.msk [vmem:[#allocation2 + $0x130] sm:$0xff] %vm3337, %v3222
        %3377 = vst.msk [vmem:[#allocation2 + $0x138] sm:$0xff] %vm3337, %v3224
        %3378 = vst.msk [vmem:[#allocation2 + $0x140] sm:$0xff] %vm3337, %v3226
        %3379 = vst.msk [vmem:[#allocation2 + $0x148] sm:$0xff] %vm3337, %v3228
        %3380 = vst.msk [vmem:[#allocation2 + $0x150] sm:$0xff] %vm3337, %v3230
        %3381 = vst.msk [vmem:[#allocation2 + $0x158] sm:$0xff] %vm3337, %v3232
        %3382 = vst.msk [vmem:[#allocation2 + $0x160] sm:$0xff] %vm3337, %v3234
        %3383 = vst.msk [vmem:[#allocation2 + $0x168] sm:$0xff] %vm3337, %v3236
        %3384 = vst.msk [vmem:[#allocation2 + $0x170] sm:$0xff] %vm3337, %v3238
        %3385 = vst.msk [vmem:[#allocation2 + $0x178] sm:$0xff] %vm3337, %v3240
        %3386 = vst.msk [vmem:[#allocation2 + $0x180] sm:$0xff] %vm3337, %v3242
        %3387 = vst.msk [vmem:[#allocation2 + $0x188] sm:$0xff] %vm3337, %v3244
        %3388 = vst.msk [vmem:[#allocation2 + $0x190] sm:$0xff] %vm3337, %v3246
        %3389 = vst.msk [vmem:[#allocation2 + $0x198] sm:$0xff] %vm3337, %v3248
        %3390 = vst.msk [vmem:[#allocation2 + $0x1a0] sm:$0xff] %vm3337, %v3250
        %3391 = vst.msk [vmem:[#allocation2 + $0x1a8] sm:$0xff] %vm3337, %v3252
        %3392 = vst.msk [vmem:[#allocation2 + $0x1b0] sm:$0xff] %vm3337, %v3254
        %3393 = vst.msk [vmem:[#allocation2 + $0x1b8] sm:$0xff] %vm3337, %v3256
        %3394 = vst.msk [vmem:[#allocation2 + $0x1c0] sm:$0xff] %vm3337, %v3258
        %3395 = vst.msk [vmem:[#allocation2 + $0x1c8] sm:$0xff] %vm3337, %v3260
        %3396 = vst.msk [vmem:[#allocation2 + $0x1d0] sm:$0xff] %vm3337, %v3262
        %3397 = vst.msk [vmem:[#allocation2 + $0x1d8] sm:$0xff] %vm3337, %v3264
        %3398 = vst.msk [vmem:[#allocation2 + $0x1e0] sm:$0xff] %vm3337, %v3266
        %3399 = vst.msk [vmem:[#allocation2 + $0x1e8] sm:$0xff] %vm3337, %v3268
        %3400 = vst.msk [vmem:[#allocation2 + $0x1f0] sm:$0xff] %vm3337, %v3270
        %3401 = vst.msk [vmem:[#allocation2 + $0x1f8] sm:$0xff] %vm3337, %v3272
        %v3402 = vld [vmem:[%s1] sm:$0xff]
        %v3403 = vld [vmem:[#allocation2] sm:$0xff]
        %v3404 = vld [vmem:[#allocation2 + $0x8] sm:$0xff]
        %v3405 = vld [vmem:[#allocation2 + $0x10] sm:$0xff]
        %v3406 = vld [vmem:[#allocation2 + $0x18] sm:$0xff]
        %v3407 = vld [vmem:[#allocation2 + $0x20] sm:$0xff]
        %v3408 = vld [vmem:[#allocation2 + $0x28] sm:$0xff]
        %v3409 = vld [vmem:[#allocation2 + $0x30] sm:$0xff]
        %v3410 = vld [vmem:[#allocation2 + $0x38] sm:$0xff]
        %v3411 = vld [vmem:[#allocation2 + $0x40] sm:$0xff]
        %v3412 = vld [vmem:[#allocation2 + $0x48] sm:$0xff]
        %v3413 = vld [vmem:[#allocation2 + $0x50] sm:$0xff]
        %v3414 = vld [vmem:[#allocation2 + $0x58] sm:$0xff]
        %v3415 = vld [vmem:[#allocation2 + $0x60] sm:$0xff]
        %v3416 = vld [vmem:[#allocation2 + $0x68] sm:$0xff]
        %v3417 = vld [vmem:[#allocation2 + $0x70] sm:$0xff]
        %v3418 = vld [vmem:[#allocation2 + $0x78] sm:$0xff]
        %v3419 = vld [vmem:[#allocation2 + $0x80] sm:$0xff]
        %v3420 = vld [vmem:[#allocation2 + $0x88] sm:$0xff]
        %v3421 = vld [vmem:[#allocation2 + $0x90] sm:$0xff]
        %v3422 = vld [vmem:[#allocation2 + $0x98] sm:$0xff]
        %v3423 = vld [vmem:[#allocation2 + $0xa0] sm:$0xff]
        %v3424 = vld [vmem:[#allocation2 + $0xa8] sm:$0xff]
        %v3425 = vld [vmem:[#allocation2 + $0xb0] sm:$0xff]
        %v3426 = vld [vmem:[#allocation2 + $0xb8] sm:$0xff]
        %v3427 = vld [vmem:[#allocation2 + $0xc0] sm:$0xff]
        %v3428 = vld [vmem:[#allocation2 + $0xc8] sm:$0xff]
        %v3429 = vld [vmem:[#allocation2 + $0xd0] sm:$0xff]
        %v3430 = vld [vmem:[#allocation2 + $0xd8] sm:$0xff]
        %v3431 = vld [vmem:[#allocation2 + $0xe0] sm:$0xff]
        %v3432 = vld [vmem:[#allocation2 + $0xe8] sm:$0xff]
        %v3433 = vld [vmem:[#allocation2 + $0xf0] sm:$0xff]
        %v3434 = vld [vmem:[#allocation2 + $0xf8] sm:$0xff]
        %v3435 = vld [vmem:[#allocation2 + $0x100] sm:$0xff]
        %v3436 = vld [vmem:[#allocation2 + $0x108] sm:$0xff]
        %v3437 = vld [vmem:[#allocation2 + $0x110] sm:$0xff]
        %v3438 = vld [vmem:[#allocation2 + $0x118] sm:$0xff]
        %v3439 = vld [vmem:[#allocation2 + $0x120] sm:$0xff]
        %v3440 = vld [vmem:[#allocation2 + $0x128] sm:$0xff]
        %v3441 = vld [vmem:[#allocation2 + $0x130] sm:$0xff]
        %v3442 = vld [vmem:[#allocation2 + $0x138] sm:$0xff]
        %v3443 = vld [vmem:[#allocation2 + $0x140] sm:$0xff]
        %v3444 = vld [vmem:[#allocation2 + $0x148] sm:$0xff]
        %v3445 = vld [vmem:[#allocation2 + $0x150] sm:$0xff]
        %v3446 = vld [vmem:[#allocation2 + $0x158] sm:$0xff]
        %v3447 = vld [vmem:[#allocation2 + $0x160] sm:$0xff]
        %v3448 = vld [vmem:[#allocation2 + $0x168] sm:$0xff]
        %v3449 = vld [vmem:[#allocation2 + $0x170] sm:$0xff]
        %v3450 = vld [vmem:[#allocation2 + $0x178] sm:$0xff]
        %v3451 = vld [vmem:[#allocation2 + $0x180] sm:$0xff]
        %v3452 = vld [vmem:[#allocation2 + $0x188] sm:$0xff]
        %v3453 = vld [vmem:[#allocation2 + $0x190] sm:$0xff]
        %v3454 = vld [vmem:[#allocation2 + $0x198] sm:$0xff]
        %v3455 = vld [vmem:[#allocation2 + $0x1a0] sm:$0xff]
        %v3456 = vld [vmem:[#allocation2 + $0x1a8] sm:$0xff]
        %v3457 = vld [vmem:[#allocation2 + $0x1b0] sm:$0xff]
        %v3458 = vld [vmem:[#allocation2 + $0x1b8] sm:$0xff]
        %v3459 = vld [vmem:[#allocation2 + $0x1c0] sm:$0xff]
        %v3460 = vld [vmem:[#allocation2 + $0x1c8] sm:$0xff]
        %v3461 = vld [vmem:[#allocation2 + $0x1d0] sm:$0xff]
        %v3462 = vld [vmem:[#allocation2 + $0x1d8] sm:$0xff]
        %v3463 = vld [vmem:[#allocation2 + $0x1e0] sm:$0xff]
        %v3464 = vld [vmem:[#allocation2 + $0x1e8] sm:$0xff]
        %v3465 = vld [vmem:[#allocation2 + $0x1f0] sm:$0xff]
        %v3466 = vld [vmem:[#allocation2 + $0x1f8] sm:$0xff]
        %v3467 = vld [vmem:[%s2] sm:$0xff]
        %3469 = vset.pattern.permute.xlu0 0
        %3470 = vperm.xlu0 %3469, %v3467
        %v3471 = vpop.permute.xlu0 %3470
        %vm3473 = vcmask 293888
        %v3475 = vsel %vm3473, %v3402, 0
        %v3478 = vsel %vm3473, %v3403, 0
        %v3481 = vsel %vm3473, %v3404, 0
        %v3484 = vsel %vm3473, %v3405, 0
        %v3487 = vsel %vm3473, %v3406, 0
        %v3490 = vsel %vm3473, %v3407, 0
        %v3493 = vsel %vm3473, %v3408, 0
        %v3496 = vsel %vm3473, %v3409, 0
        %v3499 = vsel %vm3473, %v3410, 0
        %v3502 = vsel %vm3473, %v3411, 0
        %v3505 = vsel %vm3473, %v3412, 0
        %v3508 = vsel %vm3473, %v3413, 0
        %v3511 = vsel %vm3473, %v3414, 0
        %v3514 = vsel %vm3473, %v3415, 0
        %v3517 = vsel %vm3473, %v3416, 0
        %v3520 = vsel %vm3473, %v3417, 0
        %v3523 = vsel %vm3473, %v3418, 0
        %v3526 = vsel %vm3473, %v3419, 0
        %v3529 = vsel %vm3473, %v3420, 0
        %v3532 = vsel %vm3473, %v3421, 0
        %v3535 = vsel %vm3473, %v3422, 0
        %v3538 = vsel %vm3473, %v3423, 0
        %v3541 = vsel %vm3473, %v3424, 0
        %v3544 = vsel %vm3473, %v3425, 0
        %v3547 = vsel %vm3473, %v3426, 0
        %v3550 = vsel %vm3473, %v3427, 0
        %v3553 = vsel %vm3473, %v3428, 0
        %v3556 = vsel %vm3473, %v3429, 0
        %v3559 = vsel %vm3473, %v3430, 0
        %v3562 = vsel %vm3473, %v3431, 0
        %v3565 = vsel %vm3473, %v3432, 0
        %v3568 = vsel %vm3473, %v3433, 0
        %v3571 = vsel %vm3473, %v3434, 0
        %v3574 = vsel %vm3473, %v3435, 0
        %v3577 = vsel %vm3473, %v3436, 0
        %v3580 = vsel %vm3473, %v3437, 0
        %v3583 = vsel %vm3473, %v3438, 0
        %v3586 = vsel %vm3473, %v3439, 0
        %v3589 = vsel %vm3473, %v3440, 0
        %v3592 = vsel %vm3473, %v3441, 0
        %v3595 = vsel %vm3473, %v3442, 0
        %v3598 = vsel %vm3473, %v3443, 0
        %v3601 = vsel %vm3473, %v3444, 0
        %v3604 = vsel %vm3473, %v3445, 0
        %v3607 = vsel %vm3473, %v3446, 0
        %v3610 = vsel %vm3473, %v3447, 0
        %v3613 = vsel %vm3473, %v3448, 0
        %v3616 = vsel %vm3473, %v3449, 0
        %v3619 = vsel %vm3473, %v3450, 0
        %v3622 = vsel %vm3473, %v3451, 0
        %v3625 = vsel %vm3473, %v3452, 0
        %v3628 = vsel %vm3473, %v3453, 0
        %v3631 = vsel %vm3473, %v3454, 0
        %v3634 = vsel %vm3473, %v3455, 0
        %v3637 = vsel %vm3473, %v3456, 0
        %v3640 = vsel %vm3473, %v3457, 0
        %v3643 = vsel %vm3473, %v3458, 0
        %v3646 = vsel %vm3473, %v3459, 0
        %v3649 = vsel %vm3473, %v3460, 0
        %v3652 = vsel %vm3473, %v3461, 0
        %v3655 = vsel %vm3473, %v3462, 0
        %v3658 = vsel %vm3473, %v3463, 0
        %v3661 = vsel %vm3473, %v3464, 0
        %v3664 = vsel %vm3473, %v3465, 0
        %v3667 = vsel %vm3473, %v3466, 0
        %3669 = vmatprep.subr.mxu0 0.0
        %3670 = vmatpush1.xpose.msra.mxu0 %v3478
        %3671 = vmatprep.subr.mxu0 0.0
        %3672 = vmatpush1.xpose.msra.mxu0 %v3481
        %3673 = vmatprep.subr.mxu0 0.0
        %3674 = vmatpush1.xpose.msra.mxu0 %v3484
        %3675 = vmatprep.subr.mxu0 0.0
        %3676 = vmatpush1.xpose.msra.mxu0 %v3487
        %3677 = vmatprep.subr.mxu0 0.0
        %3678 = vmatpush1.xpose.msra.mxu0 %v3490
        %3679 = vmatprep.subr.mxu0 0.0
        %3680 = vmatpush1.xpose.msra.mxu0 %v3493
        %3681 = vmatprep.subr.mxu0 0.0
        %3682 = vmatpush1.xpose.msra.mxu0 %v3496
        %3683 = vmatprep.subr.mxu0 0.0
        %3684 = vmatpush1.xpose.msra.mxu0 %v3499
        %3685 = vmatprep.subr.mxu0 0.0
        %3686 = vmatpush1.xpose.msra.mxu0 %v3502
        %3687 = vmatprep.subr.mxu0 0.0
        %3688 = vmatpush1.xpose.msra.mxu0 %v3505
        %3689 = vmatprep.subr.mxu0 0.0
        %3690 = vmatpush1.xpose.msra.mxu0 %v3508
        %3691 = vmatprep.subr.mxu0 0.0
        %3692 = vmatpush1.xpose.msra.mxu0 %v3511
        %3693 = vmatprep.subr.mxu0 0.0
        %3694 = vmatpush1.xpose.msra.mxu0 %v3514
        %3695 = vmatprep.subr.mxu0 0.0
        %3696 = vmatpush1.xpose.msra.mxu0 %v3517
        %3697 = vmatprep.subr.mxu0 0.0
        %3698 = vmatpush1.xpose.msra.mxu0 %v3520
        %3699 = vmatprep.subr.mxu0 0.0
        %3700 = vmatpush1.xpose.msra.mxu0 %v3523
        %3701 = vmatprep.subr.mxu0 0.0
        %3702 = vmatpush1.xpose.msra.mxu0 %v3526
        %3703 = vmatprep.subr.mxu0 0.0
        %3704 = vmatpush1.xpose.msra.mxu0 %v3529
        %3705 = vmatprep.subr.mxu0 0.0
        %3706 = vmatpush1.xpose.msra.mxu0 %v3532
        %3707 = vmatprep.subr.mxu0 0.0
        %3708 = vmatpush1.xpose.msra.mxu0 %v3535
        %3709 = vmatprep.subr.mxu0 0.0
        %3710 = vmatpush1.xpose.msra.mxu0 %v3538
        %3711 = vmatprep.subr.mxu0 0.0
        %3712 = vmatpush1.xpose.msra.mxu0 %v3541
        %3713 = vmatprep.subr.mxu0 0.0
        %3714 = vmatpush1.xpose.msra.mxu0 %v3544
        %3715 = vmatprep.subr.mxu0 0.0
        %3716 = vmatpush1.xpose.msra.mxu0 %v3547
        %3717 = vmatprep.subr.mxu0 0.0
        %3718 = vmatpush1.xpose.msra.mxu0 %v3550
        %3719 = vmatprep.subr.mxu0 0.0
        %3720 = vmatpush1.xpose.msra.mxu0 %v3553
        %3721 = vmatprep.subr.mxu0 0.0
        %3722 = vmatpush1.xpose.msra.mxu0 %v3556
        %3723 = vmatprep.subr.mxu0 0.0
        %3724 = vmatpush1.xpose.msra.mxu0 %v3559
        %3725 = vmatprep.subr.mxu0 0.0
        %3726 = vmatpush1.xpose.msra.mxu0 %v3562
        %3727 = vmatprep.subr.mxu0 0.0
        %3728 = vmatpush1.xpose.msra.mxu0 %v3565
        %3729 = vmatprep.subr.mxu0 0.0
        %3730 = vmatpush1.xpose.msra.mxu0 %v3568
        %3731 = vmatprep.subr.mxu0 0.0
        %3732 = vmatpush1.xpose.msra.mxu0 %v3571
        %3733 = vmatprep.mubr.f32.mxu0 0.0
        %3734 = vmatmul.mubr.f32.gmra.mrb[0].mxu0 %v3475
        %v3735 = vpop.f32.mrb[0].mxu0
        %v3736 = vadd.f32 %v3471, %v3735
        %v3737 = vpop.f32.mrb[0].mxu0
        %v3738 = vadd.f32 %v3471, %v3737
        %3739 = vdwg.mxu0
        %3740 = vmatprep.subr.mxu0 0.0
        %3741 = vmatpush1.xpose.msra.mxu0 %v3574
        %3742 = vmatprep.subr.mxu0 0.0
        %3743 = vmatpush1.xpose.msra.mxu0 %v3577
        %3744 = vmatprep.subr.mxu0 0.0
        %3745 = vmatpush1.xpose.msra.mxu0 %v3580
        %3746 = vmatprep.subr.mxu0 0.0
        %3747 = vmatpush1.xpose.msra.mxu0 %v3583
        %3748 = vmatprep.subr.mxu0 0.0
        %3749 = vmatpush1.xpose.msra.mxu0 %v3586
        %3750 = vmatprep.subr.mxu0 0.0
        %3751 = vmatpush1.xpose.msra.mxu0 %v3589
        %3752 = vmatprep.subr.mxu0 0.0
        %3753 = vmatpush1.xpose.msra.mxu0 %v3592
        %3754 = vmatprep.subr.mxu0 0.0
        %3755 = vmatpush1.xpose.msra.mxu0 %v3595
        %3756 = vmatprep.subr.mxu0 0.0
        %3757 = vmatpush1.xpose.msra.mxu0 %v3598
        %3758 = vmatprep.subr.mxu0 0.0
        %3759 = vmatpush1.xpose.msra.mxu0 %v3601
        %3760 = vmatprep.subr.mxu0 0.0
        %3761 = vmatpush1.xpose.msra.mxu0 %v3604
        %3762 = vmatprep.subr.mxu0 0.0
        %3763 = vmatpush1.xpose.msra.mxu0 %v3607
        %3764 = vmatprep.subr.mxu0 0.0
        %3765 = vmatpush1.xpose.msra.mxu0 %v3610
        %3766 = vmatprep.subr.mxu0 0.0
        %3767 = vmatpush1.xpose.msra.mxu0 %v3613
        %3768 = vmatprep.subr.mxu0 0.0
        %3769 = vmatpush1.xpose.msra.mxu0 %v3616
        %3770 = vmatprep.subr.mxu0 0.0
        %3771 = vmatpush1.xpose.msra.mxu0 %v3619
        %3772 = vmatprep.subr.mxu0 0.0
        %3773 = vmatpush1.xpose.msra.mxu0 %v3622
        %3774 = vmatprep.subr.mxu0 0.0
        %3775 = vmatpush1.xpose.msra.mxu0 %v3625
        %3776 = vmatprep.subr.mxu0 0.0
        %3777 = vmatpush1.xpose.msra.mxu0 %v3628
        %3778 = vmatprep.subr.mxu0 0.0
        %3779 = vmatpush1.xpose.msra.mxu0 %v3631
        %3780 = vmatprep.subr.mxu0 0.0
        %3781 = vmatpush1.xpose.msra.mxu0 %v3634
        %3782 = vmatprep.subr.mxu0 0.0
        %3783 = vmatpush1.xpose.msra.mxu0 %v3637
        %3784 = vmatprep.subr.mxu0 0.0
        %3785 = vmatpush1.xpose.msra.mxu0 %v3640
        %3786 = vmatprep.subr.mxu0 0.0
        %3787 = vmatpush1.xpose.msra.mxu0 %v3643
        %3788 = vmatprep.subr.mxu0 0.0
        %3789 = vmatpush1.xpose.msra.mxu0 %v3646
        %3790 = vmatprep.subr.mxu0 0.0
        %3791 = vmatpush1.xpose.msra.mxu0 %v3649
        %3792 = vmatprep.subr.mxu0 0.0
        %3793 = vmatpush1.xpose.msra.mxu0 %v3652
        %3794 = vmatprep.subr.mxu0 0.0
        %3795 = vmatpush1.xpose.msra.mxu0 %v3655
        %3796 = vmatprep.subr.mxu0 0.0
        %3797 = vmatpush1.xpose.msra.mxu0 %v3658
        %3798 = vmatprep.subr.mxu0 0.0
        %3799 = vmatpush1.xpose.msra.mxu0 %v3661
        %3800 = vmatprep.subr.mxu0 0.0
        %3801 = vmatpush1.xpose.msra.mxu0 %v3664
        %3802 = vmatprep.subr.mxu0 0.0
        %3803 = vmatpush1.xpose.msra.mxu0 %v3667
        %3804 = vmatprep.mubr.f32.mxu0 0.0
        %3805 = vmatmul.mubr.f32.gmra.mrb[0].mxu0 %v3475
        %v3806 = vpop.f32.mrb[0].mxu0
        %v3807 = vadd.f32 %v3471, %v3806
        %v3808 = vpop.f32.mrb[0].mxu0
        %v3809 = vadd.f32 %v3471, %v3808
        %3810 = vdwg.mxu0
        %3811 = vst [vmem:[%s177] sm:$0xff] %v3736
        %3812 = vst [vmem:[%s177 + $0x8] sm:$0xff] %v3738
        %3813 = vst [vmem:[%s177 + $0x10] sm:$0xff] %v3807
        %3814 = vst [vmem:[%s177 + $0x18] sm:$0xff] %v3809
        %s3815 = sand.u32 %s107, 1
        %s3816 = scalar_lea.sflag [#allocation4], %s3815
        %s3817 = sand.u32 %s107, 1
        %s3818 = smul.addr %s3817, 32
        %s3819 = scalar_lea.vmem [#allocation3], %s3818
        // Predicated region
        $region33: #{tpu_custom_call.1} parent=31 // pred_check
          %p3820 = pneg %p117
        $region34: #{tpu_custom_call.1} parent=31 // pred_check_branch
          %3822 = sbr.rel (%p3820) target = $region36
        $region35: #{tpu_custom_call.1} parent=31 // pred_region
          %s3823 = smul.u32 4, %s22
          %s3825 = ssub.s32 512, 512
          %3826 = vsyncadd %s3816, %s3825
          %s3827 = smul.addr %s21, 8
          %s3828 = sadd.s32 %s3823, %s3827
          %s3829 = smul.addr %s3828, 128
          %s3830 = scalar_lea.hbm %s3, %s3829
          %s3832 = sshll.u32 %s3819, 4
          %s3833 = int_to_ptr.vmem [resolvable:$true] %s3832
          %3835 = dma.vmem_to_hbm [thread:$0]  %s3833, 512, %s3830, %s3816
        $region36: #{tpu_custom_call.1} parent=31 // pred_fallthru
          _
      $region32: #{tpu_custom_call.1} parent=5 // pred_fallthru
        _
      %p3836 = scmp.le.s32.totalorder 2, %s12
      // Predicated region
      $region37: #{tpu_custom_call.1} parent=5 // pred_check
        %p3837 = pneg %p3836
      $region38: #{tpu_custom_call.1} parent=5 // pred_check_branch
        %3839 = sbr.rel (%p3837) target = $region40
      $region39: #{tpu_custom_call.1} parent=5 // pred_region
        %s3840 = ssub.s32 %s12, 2
        // Predicated region
        $region41: #{tpu_custom_call.1} parent=39 // pred_check
          %p3841 = pneg %p123
        $region42: #{tpu_custom_call.1} parent=39 // pred_check_branch
          %3843 = sbr.rel (%p3841) target = $region44
        $region43: #{tpu_custom_call.1} parent=39 // pred_region
          %s3844 = sand.u32 %s108, 1
          %s3845 = scalar_lea.sflag [#allocation4], %s3844
          %s3846 = sand.u32 %s108, 1
          %s3847 = smul.addr %s3846, 32
          %s3848 = scalar_lea.vmem [#allocation3], %s3847
          %3849 = dma.done %s3845, 512
        $region44: #{tpu_custom_call.1} parent=39 // pred_fallthru
          _
      $region40: #{tpu_custom_call.1} parent=5 // pred_fallthru
        _
    $region6: #{tpu_custom_call.1} parent=1 // loop_footer
      %s16 = sadd.s32 1, %s12
    $region7: #{tpu_custom_call.1} parent=1 // loop_footer_branch
      %11 = sbr.rel target = $region3
    $region8: #{tpu_custom_call.1} parent=1 // loop_exit
      _
    %3850 = vsyncpa [#allocation4], 1
    %s3851 = scalar_lea.sflag [#allocation4], 1
    %3852 = vsyncpa %s3851, 1

</llo_original>
